<compile_context>
chip_gen: v6e
topology: v6e:2x2x1
jax: 0.10.0
libtpu: 0.0.40
codegen_flags: <defaults>
</compile_context>

<pallas_src>
import functools

import jax
import jax.numpy as jnp
from jax.experimental import pallas as pl
from jax.experimental.pallas import tpu as pltpu


# ------------------------------ kernel helpers ------------------------------

def _leaky(x, slope=0.2):
    return jnp.where(x >= 0.0, x, slope * x)


# quadrant (qi, qj) order used for both the in-kernel lane-concat and the
# weight grouping in prepare_params -- MUST match.
_QUADS = ((0, 0), (0, 1), (1, 0), (1, 1))


def _scatter_phases(dst_ref, y, bsz, hh, c):
    """Scatter activation y (rows = (b, i, j) raster over a (2*hh, 2*hh) grid)
    into dst_ref = (4, bsz, hh+1, hh+1, c): the zero-padded (pad=1) phase-split
    layout consumed by the next stride-2 conv.  Phase p = (row%2)*2 + col%2.
    dst_ref's pad border must already be zero (zeroed once at kernel start)."""
    a = y.reshape(bsz, hh, 2, hh, 2, c)
    dst_ref[3, :, 0:hh, 0:hh, :] = a[:, :, 0, :, 0, :]
    dst_ref[2, :, 0:hh, 1:hh + 1, :] = a[:, :, 0, :, 1, :]
    dst_ref[1, :, 1:hh + 1, 0:hh, :] = a[:, :, 1, :, 0, :]
    dst_ref[0, :, 1:hh + 1, 1:hh + 1, :] = a[:, :, 1, :, 1, :]


def _conv_grouped(pr_ref, w_ref, w_base, bias, ho, ch):
    """k=4/s=2/p=1 conv as FOUR phase-grouped matmuls with K = 4*ch.

    pr_ref: (4, bsz, ho+1, ho+1, ch) padded phase planes (phase = ri*2 + rj).
    w_ref:  (8, 4*ch, ch) packed grouped weights; this conv uses rows
            [w_base, w_base+4).  Group weight order matches _QUADS.
    Returns LeakyReLU(conv), rows in (b, i, j) raster order: (bsz*ho*ho, ch).
    """
    acc = None
    for p in range(4):
        parts = [pr_ref[p, :, qi:qi + ho, qj:qj + ho, :] for (qi, qj) in _QUADS]
        cat = jnp.concatenate(parts, axis=-1)            # (bsz, ho, ho, 4*ch)
        cat2 = cat.reshape(-1, 4 * ch)                   # (bsz*ho*ho, 4*ch)
        term = jnp.dot(cat2, w_ref[w_base + p],
                       preferred_element_type=jnp.float32)
        acc = term if acc is None else acc + term
    return _leaky(acc + bias)


def _encoder_kernel(col_ref, cond_ref, w1_ref, w23_ref, cb_ref, mw0_ref,
                    mw12_ref, mb_ref, fcw_ref, fcb_ref, out_ref,
                    pr2_ref, pr3_ref, *, bsz, ch, h_in):
    ho2, ho3 = h_in // 4, h_in // 8

    # ---- conditioning MLP: 3 x (Linear + LeakyReLU(0.2)), M = bsz ----
    hv = _leaky(jnp.dot(cond_ref[...], mw0_ref[...],
                        preferred_element_type=jnp.float32) + mb_ref[0])
    hv = _leaky(jnp.dot(hv, mw12_ref[0],
                        preferred_element_type=jnp.float32) + mb_ref[1])
    hv = _leaky(jnp.dot(hv, mw12_ref[1],
                        preferred_element_type=jnp.float32) + mb_ref[2])

    # ---- conv1: single im2col GEMM, M = bsz*(h/2)^2, K = 16*cin ----
    # Dropout = eval-mode identity.
    # TODO(synk): training-mode dropout (random mask) not reproduced.
    y1 = _leaky(jnp.dot(col_ref[...], w1_ref[...],
                        preferred_element_type=jnp.float32) + cb_ref[0])

    # ---- zero the phase-split pad borders once (single kernel step);
    #      interiors are fully overwritten by the scatters below ----
    pr2_ref[...] = jnp.zeros(pr2_ref.shape, pr2_ref.dtype)
    pr3_ref[...] = jnp.zeros(pr3_ref.shape, pr3_ref.dtype)

    # ---- conv2 / conv3: 4 phase-grouped matmuls each (K = 4*ch) ----
    _scatter_phases(pr2_ref, y1, bsz, ho2, ch)
    y2 = _conv_grouped(pr2_ref, w23_ref, 0, cb_ref[1], ho2, ch)
    _scatter_phases(pr3_ref, y2, bsz, ho3, ch)
    y3 = _conv_grouped(pr3_ref, w23_ref, 4, cb_ref[2], ho3, ch)

    # ---- AdaptiveAvgPool2d(1) as the last conv's epilogue ----
    pooled = jnp.mean(y3.reshape(bsz, ho3 * ho3, ch), axis=1)     # (bsz, ch)

    # ---- concat -> BatchNorm1d(eval, folded) -> Linear; one (B,latent) store
    feat = jnp.concatenate([pooled, hv], axis=-1)                 # (bsz, ch+nd)
    out_ref[...] = (jnp.dot(feat, fcw_ref[...],
                            preferred_element_type=jnp.float32) + fcb_ref[...])


# ------------------------------ host-side glue ------------------------------

def _im2col_conv1(x_nchw):
    """Host-side im2col for the first k=4/s=2/p=1 conv.
    Returns (B*(H/2)*(W/2), 16*Cin), K ordered as tap-major (di*4+dj), then Cin
    (matches the (16*Cin, Ch) weight layout from prepare_params)."""
    b, cin, hgt, wdt = x_nchw.shape
    ho = hgt // 2
    xp = jnp.pad(jnp.transpose(x_nchw, (0, 2, 3, 1)),
                 ((0, 0), (1, 1), (1, 1), (0, 0)))                 # (b,H+2,W+2,cin)
    cols = [xp[:, di:di + 2 * ho:2, dj:dj + 2 * ho:2, :]
            for di in range(4) for dj in range(4)]                 # (b,ho,ho,cin) x16
    col = jnp.stack(cols, axis=3)                                  # (b,ho,ho,16,cin)
    return col.reshape(b * ho * ho, 16 * cin)


def encoder_forward(kp, x_nchw, cond):
    """Fused Encoder forward: one pallas_call, batch folded into matmul rows."""
    b, cin, h, w = x_nchw.shape
    assert h == w and h % 8 == 0, "spatial size must survive three stride-2 convs"
    ch = kp["cb"].shape[2]
    latent = kp["fcb"].shape[1]
    ho2, ho3 = h // 4, h // 8

    col = _im2col_conv1(x_nchw)                                    # (b*(h/2)^2, 16*cin)

    def full(arr):
        return pl.BlockSpec(arr.shape, lambda i, _nd=arr.ndim: (0,) * _nd)

    args = (col, cond, kp["w1"], kp["w23"], kp["cb"], kp["mw0"], kp["mw12"],
            kp["mb"], kp["fcw"], kp["fcb"])

    out = pl.pallas_call(
        functools.partial(_encoder_kernel, bsz=b, ch=ch, h_in=h),
        out_shape=jax.ShapeDtypeStruct((b, latent), jnp.float32),
        grid=(1,),
        in_specs=[full(a) for a in args],
        out_specs=pl.BlockSpec((b, latent), lambda i: (0, 0)),
        scratch_shapes=[
            pltpu.VMEM((4, b, ho2 + 1, ho2 + 1, ch), jnp.float32),
            pltpu.VMEM((4, b, ho3 + 1, ho3 + 1, ch), jnp.float32),
        ],
        compiler_params=pltpu.CompilerParams(
            dimension_semantics=("arbitrary",)),
    )(*args)
    return out


# --------------------------------- params -----------------------------------

def init_params(key, input_channels, hidden_dim, latent_dim, condition_dim, new_dim):
    """Deterministic parameters in PyTorch-like layout (used by the reference)."""
    ks = list(jax.random.split(key, 20))
    nk = iter(ks)

    def lin(fan_in, fan_out):
        w = jax.random.normal(next(nk), (fan_in, fan_out), jnp.float32) / jnp.sqrt(fan_in)
        bb = 0.1 * jax.random.normal(next(nk), (fan_out,), jnp.float32)
        return w, bb

    def conv(cin, cout):
        w = jax.random.normal(next(nk), (cout, cin, 4, 4), jnp.float32) / jnp.sqrt(cin * 16)
        bb = 0.1 * jax.random.normal(next(nk), (cout,), jnp.float32)
        return w, bb

    feat = hidden_dim + new_dim
    return {
        "mlp": [lin(condition_dim, new_dim), lin(new_dim, new_dim), lin(new_dim, new_dim)],
        "convs": [conv(input_channels, hidden_dim),
                  conv(hidden_dim, hidden_dim),
                  conv(hidden_dim, hidden_dim)],
        "bn_gamma": 1.0 + 0.1 * jax.random.normal(next(nk), (feat,), jnp.float32),
        "bn_beta": 0.1 * jax.random.normal(next(nk), (feat,), jnp.float32),
        "bn_mean": 0.1 * jax.random.normal(next(nk), (feat,), jnp.float32),
        "bn_var": jnp.abs(1.0 + 0.1 * jax.random.normal(next(nk), (feat,), jnp.float32)),
        "fc": lin(feat, latent_dim),
    }


def prepare_params(params):
    """One-time re-layout into the form the kernel consumes:
      w1  : (16*Cin, Ch)           conv1 im2col weight
      w23 : (8, 4*Ch, Ch)          conv2 (rows 0..3) / conv3 (rows 4..7) phase-
                                   grouped weights, group order == _QUADS
      cb  : (3, 1, Ch)             conv biases
      mw0 : (Cd, Nd); mw12: (2, Nd, Nd); mb: (3, 1, Nd)   cond-MLP params
      fcw : (Ch+Nd, latent); fcb: (1, latent)   fc with BatchNorm(eval) folded
    """
    w1_oihw, _ = params["convs"][0]
    ch, cin = w1_oihw.shape[0], w1_oihw.shape[1]
    w1 = jnp.transpose(w1_oihw, (2, 3, 1, 0)).reshape(16 * cin, ch)

    def group(w_oihw):
        cout, cin_, kh, kw = w_oihw.shape
        taps = jnp.transpose(w_oihw, (2, 3, 1, 0)).reshape(kh * kw, cin_, cout)
        groups = []
        for p in range(4):
            ri, rj = p // 2, p % 2
            parts = [taps[(2 * qi + ri) * 4 + (2 * qj + rj)] for (qi, qj) in _QUADS]
            groups.append(jnp.concatenate(parts, axis=0))          # (4*cin_, cout)
        return jnp.stack(groups, axis=0)                           # (4, 4*cin_, cout)

    w23 = jnp.concatenate([group(params["convs"][1][0]),
                           group(params["convs"][2][0])], axis=0)  # (8, 4*ch, ch)

    cb = jnp.stack([params["convs"][i][1] for i in range(3)], axis=0).reshape(3, 1, ch)

    mw0 = params["mlp"][0][0]
    mw12 = jnp.stack([params["mlp"][1][0], params["mlp"][2][0]], axis=0)
    nd = mw0.shape[1]
    mb = jnp.stack([bb for _, bb in params["mlp"]], axis=0).reshape(3, 1, nd)

    eps = 1e-5
    scale = params["bn_gamma"] / jnp.sqrt(params["bn_var"] + eps)
    shift = params["bn_beta"] - params["bn_mean"] * scale
    fc_w, fc_b = params["fc"]                       # (hidden+new, latent), (latent,)
    fcw = fc_w * scale[:, None]
    fcb = (fc_b + shift @ fc_w).reshape(1, -1)

    return {"w1": w1, "w23": w23, "cb": cb,
            "mw0": mw0, "mw12": mw12, "mb": mb,
            "fcw": fcw, "fcb": fcb}


# ------------------------- pure-JAX reference check --------------------------

def reference_forward(params, x_nchw, cond):
    def lrelu(v):
        return jnp.where(v >= 0, v, 0.2 * v)

    h = cond
    for w, bb in params["mlp"]:
        h = lrelu(jnp.dot(h, w) + bb)

    x = x_nchw
    for w_oihw, bb in params["convs"]:
        x = jax.lax.conv_general_dilated(
            x, w_oihw, window_strides=(2, 2), padding=((1, 1), (1, 1)),
            dimension_numbers=("NCHW", "OIHW", "NCHW"))
        x = lrelu(x + bb[None, :, None, None])

    x = jnp.mean(x, axis=(2, 3))
    feat = jnp.concatenate([x, h], axis=-1)
    eps = 1e-5
    xn = (feat - params["bn_mean"]) / jnp.sqrt(params["bn_var"] + eps)
    xn = xn * params["bn_gamma"] + params["bn_beta"]
    fc_w, fc_b = params["fc"]
    return jnp.dot(xn, fc_w) + fc_b


# ----------------------------------- main ------------------------------------

if __name__ == "__main__":
    # Small shapes consistent with the module's constructor.
    B, input_channels, spatial = 2, 4, 16
    hidden_dim, latent_dim = 32, 16
    condition_dim, new_dim = 64, 64

    key = jax.random.PRNGKey(0)
    kp_, kx, kc = jax.random.split(key, 3)

    params = init_params(kp_, input_channels, hidden_dim, latent_dim,
                         condition_dim, new_dim)
    kparams = prepare_params(params)     # one-time weight re-layout / BN fold

    x = jax.random.normal(kx, (B, input_channels, spatial, spatial), jnp.float32)  # NCHW
    cond = jax.random.normal(kc, (B, condition_dim), jnp.float32)

    out = jax.jit(encoder_forward)(kparams, x, cond)
    out = jax.block_until_ready(out)

    ref = jax.block_until_ready(reference_forward(params, x, cond))
    assert out.shape == (B, latent_dim), out.shape
    err = float(jnp.max(jnp.abs(out - ref)))
    assert jnp.allclose(out, ref, atol=1e-3, rtol=1e-3), err

    print("KERNEL_OK")
</pallas_src>

<mosaic_0001>
module attributes {stable_mosaic.version = 11 : i64} {
  func.func @_encoder_kernel(%arg0: i32, %arg1: memref<128x64xf32, #tpu.memory_space<vmem>>, %arg2: memref<2x64xf32, #tpu.memory_space<vmem>>, %arg3: memref<64x32xf32, #tpu.memory_space<vmem>>, %arg4: memref<8x128x32xf32, #tpu.memory_space<vmem>>, %arg5: memref<3x1x32xf32, #tpu.memory_space<vmem>>, %arg6: memref<64x64xf32, #tpu.memory_space<vmem>>, %arg7: memref<2x64x64xf32, #tpu.memory_space<vmem>>, %arg8: memref<3x1x64xf32, #tpu.memory_space<vmem>>, %arg9: memref<96x16xf32, #tpu.memory_space<vmem>>, %arg10: memref<1x16xf32, #tpu.memory_space<vmem>>, %arg11: memref<2x16xf32, #tpu.memory_space<vmem>>, %arg12: memref<4x2x5x5x32xf32, #tpu.memory_space<vmem>>, %arg13: memref<4x2x3x3x32xf32, #tpu.memory_space<vmem>>) attributes {dimension_semantics = [#tpu.dimension_semantics<arbitrary>], iteration_bounds = array<i64: 1>, scalar_prefetch = 0 : i64, scratch_operands = 2 : i64, tpu.core_type = #tpu.core_type<tc>, window_params = [{pipeline_mode = #tpu.pipeline_mode<synchronous>, transform_indices = @transform_0, window_bounds = array<i64: 128, 64>}, {pipeline_mode = #tpu.pipeline_mode<synchronous>, transform_indices = @transform_1, window_bounds = array<i64: 2, 64>}, {pipeline_mode = #tpu.pipeline_mode<synchronous>, transform_indices = @transform_2, window_bounds = array<i64: 64, 32>}, {pipeline_mode = #tpu.pipeline_mode<synchronous>, transform_indices = @transform_3, window_bounds = array<i64: 8, 128, 32>}, {pipeline_mode = #tpu.pipeline_mode<synchronous>, transform_indices = @transform_4, window_bounds = array<i64: 3, 1, 32>}, {pipeline_mode = #tpu.pipeline_mode<synchronous>, transform_indices = @transform_5, window_bounds = array<i64: 64, 64>}, {pipeline_mode = #tpu.pipeline_mode<synchronous>, transform_indices = @transform_6, window_bounds = array<i64: 2, 64, 64>}, {pipeline_mode = #tpu.pipeline_mode<synchronous>, transform_indices = @transform_7, window_bounds = array<i64: 3, 1, 64>}, {pipeline_mode = #tpu.pipeline_mode<synchronous>, transform_indices = @transform_8, window_bounds = array<i64: 96, 16>}, {pipeline_mode = #tpu.pipeline_mode<synchronous>, transform_indices = @transform_9, window_bounds = array<i64: 1, 16>}, {pipeline_mode = #tpu.pipeline_mode<synchronous>, transform_indices = @transform_10, window_bounds = array<i64: 2, 16>}]} {
    %c0 = arith.constant 0 : index
    %c0_0 = arith.constant 0 : index
    %0 = vector.load %arg2[%c0, %c0_0] : memref<2x64xf32, #tpu.memory_space<vmem>>, vector<2x64xf32>
    %c0_1 = arith.constant 0 : index
    %c0_2 = arith.constant 0 : index
    %1 = vector.load %arg6[%c0_1, %c0_2] : memref<64x64xf32, #tpu.memory_space<vmem>>, vector<64x64xf32>
    %cst = arith.constant dense<0.000000e+00> : vector<2x64xf32>
    %2 = tpu.matmul %0, %1, %cst {dimension_numbers = #tpu.dot_dimension_numbers<[1], [0], [0], [1], [0, 0, 1, 1], [], []>} : vector<2x64xf32>, vector<64x64xf32>, vector<2x64xf32> -> vector<2x64xf32>
    %c0_3 = arith.constant 0 : index
    %c0_4 = arith.constant 0 : index
    %c0_5 = arith.constant 0 : index
    %3 = vector.load %arg8[%c0_3, %c0_4, %c0_5] : memref<3x1x64xf32, #tpu.memory_space<vmem>>, vector<1x1x64xf32>
    %4 = vector.shape_cast %3 : vector<1x1x64xf32> to vector<1x64xf32>
    %5 = vector.broadcast %4 : vector<1x64xf32> to vector<2x64xf32>
    %6 = arith.addf %2, %5 : vector<2x64xf32>
    %cst_6 = arith.constant 0.000000e+00 : f32
    %7 = vector.broadcast %cst_6 : f32 to vector<2x64xf32>
    %8 = arith.cmpf oge, %6, %7 : vector<2x64xf32>
    %cst_7 = arith.constant 2.000000e-01 : f32
    %9 = vector.broadcast %cst_7 : f32 to vector<2x64xf32>
    %10 = arith.mulf %9, %6 : vector<2x64xf32>
    %11 = arith.select %8, %6, %10 : vector<2x64xi1>, vector<2x64xf32>
    %c0_8 = arith.constant 0 : index
    %c0_9 = arith.constant 0 : index
    %c0_10 = arith.constant 0 : index
    %12 = vector.load %arg7[%c0_8, %c0_9, %c0_10] : memref<2x64x64xf32, #tpu.memory_space<vmem>>, vector<1x64x64xf32>
    %13 = vector.shape_cast %12 : vector<1x64x64xf32> to vector<64x64xf32>
    %cst_11 = arith.constant dense<0.000000e+00> : vector<2x64xf32>
    %14 = tpu.matmul %11, %13, %cst_11 {dimension_numbers = #tpu.dot_dimension_numbers<[1], [0], [0], [1], [0, 0, 1, 1], [], []>} : vector<2x64xf32>, vector<64x64xf32>, vector<2x64xf32> -> vector<2x64xf32>
    %c1 = arith.constant 1 : index
    %c0_12 = arith.constant 0 : index
    %c0_13 = arith.constant 0 : index
    %15 = vector.load %arg8[%c1, %c0_12, %c0_13] : memref<3x1x64xf32, #tpu.memory_space<vmem>>, vector<1x1x64xf32>
    %16 = vector.shape_cast %15 : vector<1x1x64xf32> to vector<1x64xf32>
    %17 = vector.broadcast %16 : vector<1x64xf32> to vector<2x64xf32>
    %18 = arith.addf %14, %17 : vector<2x64xf32>
    %cst_14 = arith.constant 0.000000e+00 : f32
    %19 = vector.broadcast %cst_14 : f32 to vector<2x64xf32>
    %20 = arith.cmpf oge, %18, %19 : vector<2x64xf32>
    %cst_15 = arith.constant 2.000000e-01 : f32
    %21 = vector.broadcast %cst_15 : f32 to vector<2x64xf32>
    %22 = arith.mulf %21, %18 : vector<2x64xf32>
    %23 = arith.select %20, %18, %22 : vector<2x64xi1>, vector<2x64xf32>
    %c1_16 = arith.constant 1 : index
    %c0_17 = arith.constant 0 : index
    %c0_18 = arith.constant 0 : index
    %24 = vector.load %arg7[%c1_16, %c0_17, %c0_18] : memref<2x64x64xf32, #tpu.memory_space<vmem>>, vector<1x64x64xf32>
    %25 = vector.shape_cast %24 : vector<1x64x64xf32> to vector<64x64xf32>
    %cst_19 = arith.constant dense<0.000000e+00> : vector<2x64xf32>
    %26 = tpu.matmul %23, %25, %cst_19 {dimension_numbers = #tpu.dot_dimension_numbers<[1], [0], [0], [1], [0, 0, 1, 1], [], []>} : vector<2x64xf32>, vector<64x64xf32>, vector<2x64xf32> -> vector<2x64xf32>
    %c2 = arith.constant 2 : index
    %c0_20 = arith.constant 0 : index
    %c0_21 = arith.constant 0 : index
    %27 = vector.load %arg8[%c2, %c0_20, %c0_21] : memref<3x1x64xf32, #tpu.memory_space<vmem>>, vector<1x1x64xf32>
    %28 = vector.shape_cast %27 : vector<1x1x64xf32> to vector<1x64xf32>
    %29 = vector.broadcast %28 : vector<1x64xf32> to vector<2x64xf32>
    %30 = arith.addf %26, %29 : vector<2x64xf32>
    %cst_22 = arith.constant 0.000000e+00 : f32
    %31 = vector.broadcast %cst_22 : f32 to vector<2x64xf32>
    %32 = arith.cmpf oge, %30, %31 : vector<2x64xf32>
    %cst_23 = arith.constant 2.000000e-01 : f32
    %33 = vector.broadcast %cst_23 : f32 to vector<2x64xf32>
    %34 = arith.mulf %33, %30 : vector<2x64xf32>
    %35 = arith.select %32, %30, %34 : vector<2x64xi1>, vector<2x64xf32>
    %c0_24 = arith.constant 0 : index
    %c0_25 = arith.constant 0 : index
    %36 = vector.load %arg1[%c0_24, %c0_25] : memref<128x64xf32, #tpu.memory_space<vmem>>, vector<128x64xf32>
    %c0_26 = arith.constant 0 : index
    %c0_27 = arith.constant 0 : index
    %37 = vector.load %arg3[%c0_26, %c0_27] : memref<64x32xf32, #tpu.memory_space<vmem>>, vector<64x32xf32>
    %cst_28 = arith.constant dense<0.000000e+00> : vector<128x32xf32>
    %38 = tpu.matmul %36, %37, %cst_28 {dimension_numbers = #tpu.dot_dimension_numbers<[1], [0], [0], [1], [0, 0, 1, 1], [], []>} : vector<128x64xf32>, vector<64x32xf32>, vector<128x32xf32> -> vector<128x32xf32>
    %c0_29 = arith.constant 0 : index
    %c0_30 = arith.constant 0 : index
    %c0_31 = arith.constant 0 : index
    %39 = vector.load %arg5[%c0_29, %c0_30, %c0_31] : memref<3x1x32xf32, #tpu.memory_space<vmem>>, vector<1x1x32xf32>
    %40 = vector.shape_cast %39 : vector<1x1x32xf32> to vector<1x32xf32>
    %41 = vector.broadcast %40 : vector<1x32xf32> to vector<128x32xf32>
    %42 = arith.addf %38, %41 : vector<128x32xf32>
    %cst_32 = arith.constant 0.000000e+00 : f32
    %43 = vector.broadcast %cst_32 : f32 to vector<128x32xf32>
    %44 = arith.cmpf oge, %42, %43 : vector<128x32xf32>
    %cst_33 = arith.constant 2.000000e-01 : f32
    %45 = vector.broadcast %cst_33 : f32 to vector<128x32xf32>
    %46 = arith.mulf %45, %42 : vector<128x32xf32>
    %47 = arith.select %44, %42, %46 : vector<128x32xi1>, vector<128x32xf32>
    %cst_34 = arith.constant 0.000000e+00 : f32
    %48 = vector.broadcast %cst_34 : f32 to vector<4x2x5x5x32xf32>
    %c0_35 = arith.constant 0 : index
    %c0_36 = arith.constant 0 : index
    %c0_37 = arith.constant 0 : index
    %c0_38 = arith.constant 0 : index
    %c0_39 = arith.constant 0 : index
    %49 = vector.load %arg12[%c0_35, %c0_36, %c0_37, %c0_38, %c0_39] : memref<4x2x5x5x32xf32, #tpu.memory_space<vmem>>, vector<4x2x5x5x32xf32>
    tpu.vector_store %arg12[%c0_35, %c0_36, %c0_37, %c0_38, %c0_39], %48 {strides = array<i32>} : memref<4x2x5x5x32xf32, #tpu.memory_space<vmem>>, vector<4x2x5x5x32xf32>,
    %cst_40 = arith.constant 0.000000e+00 : f32
    %50 = vector.broadcast %cst_40 : f32 to vector<4x2x3x3x32xf32>
    %c0_41 = arith.constant 0 : index
    %c0_42 = arith.constant 0 : index
    %c0_43 = arith.constant 0 : index
    %c0_44 = arith.constant 0 : index
    %c0_45 = arith.constant 0 : index
    %51 = vector.load %arg13[%c0_41, %c0_42, %c0_43, %c0_44, %c0_45] : memref<4x2x3x3x32xf32, #tpu.memory_space<vmem>>, vector<4x2x3x3x32xf32>
    tpu.vector_store %arg13[%c0_41, %c0_42, %c0_43, %c0_44, %c0_45], %50 {strides = array<i32>} : memref<4x2x3x3x32xf32, #tpu.memory_space<vmem>>, vector<4x2x3x3x32xf32>,
    %52 = vector.shape_cast %47 : vector<128x32xf32> to vector<2x4x2x4x2x32xf32>
    %53 = vector.extract_strided_slice %52 {offsets = [0, 0, 0, 0, 0, 0], sizes = [2, 4, 1, 4, 1, 32], strides = [1, 1, 1, 1, 1, 1]} : vector<2x4x2x4x2x32xf32> to vector<2x4x1x4x1x32xf32>
    %54 = vector.shape_cast %53 : vector<2x4x1x4x1x32xf32> to vector<2x4x4x32xf32>
    %c3 = arith.constant 3 : index
    %c0_46 = arith.constant 0 : index
    %c0_47 = arith.constant 0 : index
    %c0_48 = arith.constant 0 : index
    %c0_49 = arith.constant 0 : index
    %55 = vector.load %arg12[%c3, %c0_46, %c0_47, %c0_48, %c0_49] : memref<4x2x5x5x32xf32, #tpu.memory_space<vmem>>, vector<1x2x4x4x32xf32>
    %56 = vector.shape_cast %55 : vector<1x2x4x4x32xf32> to vector<2x4x4x32xf32>
    %57 = vector.shape_cast %54 : vector<2x4x4x32xf32> to vector<1x2x4x4x32xf32>
    tpu.vector_store %arg12[%c3, %c0_46, %c0_47, %c0_48, %c0_49], %57 {strides = array<i32>} : memref<4x2x5x5x32xf32, #tpu.memory_space<vmem>>, vector<1x2x4x4x32xf32>,
    %58 = vector.extract_strided_slice %52 {offsets = [0, 0, 0, 0, 1, 0], sizes = [2, 4, 1, 4, 1, 32], strides = [1, 1, 1, 1, 1, 1]} : vector<2x4x2x4x2x32xf32> to vector<2x4x1x4x1x32xf32>
    %59 = vector.shape_cast %58 : vector<2x4x1x4x1x32xf32> to vector<2x4x4x32xf32>
    %c2_50 = arith.constant 2 : index
    %c0_51 = arith.constant 0 : index
    %c0_52 = arith.constant 0 : index
    %c1_53 = arith.constant 1 : index
    %c0_54 = arith.constant 0 : index
    %60 = vector.load %arg12[%c2_50, %c0_51, %c0_52, %c1_53, %c0_54] : memref<4x2x5x5x32xf32, #tpu.memory_space<vmem>>, vector<1x2x4x4x32xf32>
    %61 = vector.shape_cast %60 : vector<1x2x4x4x32xf32> to vector<2x4x4x32xf32>
    %62 = vector.shape_cast %59 : vector<2x4x4x32xf32> to vector<1x2x4x4x32xf32>
    tpu.vector_store %arg12[%c2_50, %c0_51, %c0_52, %c1_53, %c0_54], %62 {strides = array<i32>} : memref<4x2x5x5x32xf32, #tpu.memory_space<vmem>>, vector<1x2x4x4x32xf32>,
    %63 = vector.extract_strided_slice %52 {offsets = [0, 0, 1, 0, 0, 0], sizes = [2, 4, 1, 4, 1, 32], strides = [1, 1, 1, 1, 1, 1]} : vector<2x4x2x4x2x32xf32> to vector<2x4x1x4x1x32xf32>
    %64 = vector.shape_cast %63 : vector<2x4x1x4x1x32xf32> to vector<2x4x4x32xf32>
    %c1_55 = arith.constant 1 : index
    %c0_56 = arith.constant 0 : index
    %c1_57 = arith.constant 1 : index
    %c0_58 = arith.constant 0 : index
    %c0_59 = arith.constant 0 : index
    %65 = vector.load %arg12[%c1_55, %c0_56, %c1_57, %c0_58, %c0_59] : memref<4x2x5x5x32xf32, #tpu.memory_space<vmem>>, vector<1x2x4x4x32xf32>
    %66 = vector.shape_cast %65 : vector<1x2x4x4x32xf32> to vector<2x4x4x32xf32>
    %67 = vector.shape_cast %64 : vector<2x4x4x32xf32> to vector<1x2x4x4x32xf32>
    tpu.vector_store %arg12[%c1_55, %c0_56, %c1_57, %c0_58, %c0_59], %67 {strides = array<i32>} : memref<4x2x5x5x32xf32, #tpu.memory_space<vmem>>, vector<1x2x4x4x32xf32>,
    %68 = vector.extract_strided_slice %52 {offsets = [0, 0, 1, 0, 1, 0], sizes = [2, 4, 1, 4, 1, 32], strides = [1, 1, 1, 1, 1, 1]} : vector<2x4x2x4x2x32xf32> to vector<2x4x1x4x1x32xf32>
    %69 = vector.shape_cast %68 : vector<2x4x1x4x1x32xf32> to vector<2x4x4x32xf32>
    %c0_60 = arith.constant 0 : index
    %c0_61 = arith.constant 0 : index
    %c1_62 = arith.constant 1 : index
    %c1_63 = arith.constant 1 : index
    %c0_64 = arith.constant 0 : index
    %70 = vector.load %arg12[%c0_60, %c0_61, %c1_62, %c1_63, %c0_64] : memref<4x2x5x5x32xf32, #tpu.memory_space<vmem>>, vector<1x2x4x4x32xf32>
    %71 = vector.shape_cast %70 : vector<1x2x4x4x32xf32> to vector<2x4x4x32xf32>
    %72 = vector.shape_cast %69 : vector<2x4x4x32xf32> to vector<1x2x4x4x32xf32>
    tpu.vector_store %arg12[%c0_60, %c0_61, %c1_62, %c1_63, %c0_64], %72 {strides = array<i32>} : memref<4x2x5x5x32xf32, #tpu.memory_space<vmem>>, vector<1x2x4x4x32xf32>,
    %c1_65 = arith.constant 1 : index
    %c0_66 = arith.constant 0 : index
    %c0_67 = arith.constant 0 : index
    %73 = vector.load %arg5[%c1_65, %c0_66, %c0_67] : memref<3x1x32xf32, #tpu.memory_space<vmem>>, vector<1x1x32xf32>
    %74 = vector.shape_cast %73 : vector<1x1x32xf32> to vector<1x32xf32>
    %c0_68 = arith.constant 0 : index
    %c0_69 = arith.constant 0 : index
    %c0_70 = arith.constant 0 : index
    %c0_71 = arith.constant 0 : index
    %c0_72 = arith.constant 0 : index
    %75 = vector.load %arg12[%c0_68, %c0_69, %c0_70, %c0_71, %c0_72] : memref<4x2x5x5x32xf32, #tpu.memory_space<vmem>>, vector<1x2x4x4x32xf32>
    %76 = vector.shape_cast %75 : vector<1x2x4x4x32xf32> to vector<2x4x4x32xf32>
    %c0_73 = arith.constant 0 : index
    %c0_74 = arith.constant 0 : index
    %c0_75 = arith.constant 0 : index
    %c1_76 = arith.constant 1 : index
    %c0_77 = arith.constant 0 : index
    %77 = vector.load %arg12[%c0_73, %c0_74, %c0_75, %c1_76, %c0_77] : memref<4x2x5x5x32xf32, #tpu.memory_space<vmem>>, vector<1x2x4x4x32xf32>
    %78 = vector.shape_cast %77 : vector<1x2x4x4x32xf32> to vector<2x4x4x32xf32>
    %c0_78 = arith.constant 0 : index
    %c0_79 = arith.constant 0 : index
    %c1_80 = arith.constant 1 : index
    %c0_81 = arith.constant 0 : index
    %c0_82 = arith.constant 0 : index
    %79 = vector.load %arg12[%c0_78, %c0_79, %c1_80, %c0_81, %c0_82] : memref<4x2x5x5x32xf32, #tpu.memory_space<vmem>>, vector<1x2x4x4x32xf32>
    %80 = vector.shape_cast %79 : vector<1x2x4x4x32xf32> to vector<2x4x4x32xf32>
    %c0_83 = arith.constant 0 : index
    %c0_84 = arith.constant 0 : index
    %c1_85 = arith.constant 1 : index
    %c1_86 = arith.constant 1 : index
    %c0_87 = arith.constant 0 : index
    %81 = vector.load %arg12[%c0_83, %c0_84, %c1_85, %c1_86, %c0_87] : memref<4x2x5x5x32xf32, #tpu.memory_space<vmem>>, vector<1x2x4x4x32xf32>
    %82 = vector.shape_cast %81 : vector<1x2x4x4x32xf32> to vector<2x4x4x32xf32>
    %83 = tpu.concatenate %76, %78, %80, %82 in 3 : vector<2x4x4x32xf32>, vector<2x4x4x32xf32>, vector<2x4x4x32xf32>, vector<2x4x4x32xf32> -> vector<2x4x4x128xf32>
    %84 = vector.shape_cast %83 : vector<2x4x4x128xf32> to vector<32x128xf32>
    %c0_88 = arith.constant 0 : index
    %c0_89 = arith.constant 0 : index
    %c0_90 = arith.constant 0 : index
    %85 = vector.load %arg4[%c0_88, %c0_89, %c0_90] : memref<8x128x32xf32, #tpu.memory_space<vmem>>, vector<1x128x32xf32>
    %86 = vector.shape_cast %85 : vector<1x128x32xf32> to vector<128x32xf32>
    %cst_91 = arith.constant dense<0.000000e+00> : vector<32x32xf32>
    %87 = tpu.matmul %84, %86, %cst_91 {dimension_numbers = #tpu.dot_dimension_numbers<[1], [0], [0], [1], [0, 0, 1, 1], [], []>} : vector<32x128xf32>, vector<128x32xf32>, vector<32x32xf32> -> vector<32x32xf32>
    %c1_92 = arith.constant 1 : index
    %c0_93 = arith.constant 0 : index
    %c0_94 = arith.constant 0 : index
    %c0_95 = arith.constant 0 : index
    %c0_96 = arith.constant 0 : index
    %88 = vector.load %arg12[%c1_92, %c0_93, %c0_94, %c0_95, %c0_96] : memref<4x2x5x5x32xf32, #tpu.memory_space<vmem>>, vector<1x2x4x4x32xf32>
    %89 = vector.shape_cast %88 : vector<1x2x4x4x32xf32> to vector<2x4x4x32xf32>
    %c1_97 = arith.constant 1 : index
    %c0_98 = arith.constant 0 : index
    %c0_99 = arith.constant 0 : index
    %c1_100 = arith.constant 1 : index
    %c0_101 = arith.constant 0 : index
    %90 = vector.load %arg12[%c1_97, %c0_98, %c0_99, %c1_100, %c0_101] : memref<4x2x5x5x32xf32, #tpu.memory_space<vmem>>, vector<1x2x4x4x32xf32>
    %91 = vector.shape_cast %90 : vector<1x2x4x4x32xf32> to vector<2x4x4x32xf32>
    %c1_102 = arith.constant 1 : index
    %c0_103 = arith.constant 0 : index
    %c1_104 = arith.constant 1 : index
    %c0_105 = arith.constant 0 : index
    %c0_106 = arith.constant 0 : index
    %92 = vector.load %arg12[%c1_102, %c0_103, %c1_104, %c0_105, %c0_106] : memref<4x2x5x5x32xf32, #tpu.memory_space<vmem>>, vector<1x2x4x4x32xf32>
    %93 = vector.shape_cast %92 : vector<1x2x4x4x32xf32> to vector<2x4x4x32xf32>
    %c1_107 = arith.constant 1 : index
    %c0_108 = arith.constant 0 : index
    %c1_109 = arith.constant 1 : index
    %c1_110 = arith.constant 1 : index
    %c0_111 = arith.constant 0 : index
    %94 = vector.load %arg12[%c1_107, %c0_108, %c1_109, %c1_110, %c0_111] : memref<4x2x5x5x32xf32, #tpu.memory_space<vmem>>, vector<1x2x4x4x32xf32>
    %95 = vector.shape_cast %94 : vector<1x2x4x4x32xf32> to vector<2x4x4x32xf32>
    %96 = tpu.concatenate %89, %91, %93, %95 in 3 : vector<2x4x4x32xf32>, vector<2x4x4x32xf32>, vector<2x4x4x32xf32>, vector<2x4x4x32xf32> -> vector<2x4x4x128xf32>
    %97 = vector.shape_cast %96 : vector<2x4x4x128xf32> to vector<32x128xf32>
    %c1_112 = arith.constant 1 : index
    %c0_113 = arith.constant 0 : index
    %c0_114 = arith.constant 0 : index
    %98 = vector.load %arg4[%c1_112, %c0_113, %c0_114] : memref<8x128x32xf32, #tpu.memory_space<vmem>>, vector<1x128x32xf32>
    %99 = vector.shape_cast %98 : vector<1x128x32xf32> to vector<128x32xf32>
    %cst_115 = arith.constant dense<0.000000e+00> : vector<32x32xf32>
    %100 = tpu.matmul %97, %99, %cst_115 {dimension_numbers = #tpu.dot_dimension_numbers<[1], [0], [0], [1], [0, 0, 1, 1], [], []>} : vector<32x128xf32>, vector<128x32xf32>, vector<32x32xf32> -> vector<32x32xf32>
    %101 = arith.addf %87, %100 : vector<32x32xf32>
    %c2_116 = arith.constant 2 : index
    %c0_117 = arith.constant 0 : index
    %c0_118 = arith.constant 0 : index
    %c0_119 = arith.constant 0 : index
    %c0_120 = arith.constant 0 : index
    %102 = vector.load %arg12[%c2_116, %c0_117, %c0_118, %c0_119, %c0_120] : memref<4x2x5x5x32xf32, #tpu.memory_space<vmem>>, vector<1x2x4x4x32xf32>
    %103 = vector.shape_cast %102 : vector<1x2x4x4x32xf32> to vector<2x4x4x32xf32>
    %c2_121 = arith.constant 2 : index
    %c0_122 = arith.constant 0 : index
    %c0_123 = arith.constant 0 : index
    %c1_124 = arith.constant 1 : index
    %c0_125 = arith.constant 0 : index
    %104 = vector.load %arg12[%c2_121, %c0_122, %c0_123, %c1_124, %c0_125] : memref<4x2x5x5x32xf32, #tpu.memory_space<vmem>>, vector<1x2x4x4x32xf32>
    %105 = vector.shape_cast %104 : vector<1x2x4x4x32xf32> to vector<2x4x4x32xf32>
    %c2_126 = arith.constant 2 : index
    %c0_127 = arith.constant 0 : index
    %c1_128 = arith.constant 1 : index
    %c0_129 = arith.constant 0 : index
    %c0_130 = arith.constant 0 : index
    %106 = vector.load %arg12[%c2_126, %c0_127, %c1_128, %c0_129, %c0_130] : memref<4x2x5x5x32xf32, #tpu.memory_space<vmem>>, vector<1x2x4x4x32xf32>
    %107 = vector.shape_cast %106 : vector<1x2x4x4x32xf32> to vector<2x4x4x32xf32>
    %c2_131 = arith.constant 2 : index
    %c0_132 = arith.constant 0 : index
    %c1_133 = arith.constant 1 : index
    %c1_134 = arith.constant 1 : index
    %c0_135 = arith.constant 0 : index
    %108 = vector.load %arg12[%c2_131, %c0_132, %c1_133, %c1_134, %c0_135] : memref<4x2x5x5x32xf32, #tpu.memory_space<vmem>>, vector<1x2x4x4x32xf32>
    %109 = vector.shape_cast %108 : vector<1x2x4x4x32xf32> to vector<2x4x4x32xf32>
    %110 = tpu.concatenate %103, %105, %107, %109 in 3 : vector<2x4x4x32xf32>, vector<2x4x4x32xf32>, vector<2x4x4x32xf32>, vector<2x4x4x32xf32> -> vector<2x4x4x128xf32>
    %111 = vector.shape_cast %110 : vector<2x4x4x128xf32> to vector<32x128xf32>
    %c2_136 = arith.constant 2 : index
    %c0_137 = arith.constant 0 : index
    %c0_138 = arith.constant 0 : index
    %112 = vector.load %arg4[%c2_136, %c0_137, %c0_138] : memref<8x128x32xf32, #tpu.memory_space<vmem>>, vector<1x128x32xf32>
    %113 = vector.shape_cast %112 : vector<1x128x32xf32> to vector<128x32xf32>
    %cst_139 = arith.constant dense<0.000000e+00> : vector<32x32xf32>
    %114 = tpu.matmul %111, %113, %cst_139 {dimension_numbers = #tpu.dot_dimension_numbers<[1], [0], [0], [1], [0, 0, 1, 1], [], []>} : vector<32x128xf32>, vector<128x32xf32>, vector<32x32xf32> -> vector<32x32xf32>
    %115 = arith.addf %101, %114 : vector<32x32xf32>
    %c3_140 = arith.constant 3 : index
    %c0_141 = arith.constant 0 : index
    %c0_142 = arith.constant 0 : index
    %c0_143 = arith.constant 0 : index
    %c0_144 = arith.constant 0 : index
    %116 = vector.load %arg12[%c3_140, %c0_141, %c0_142, %c0_143, %c0_144] : memref<4x2x5x5x32xf32, #tpu.memory_space<vmem>>, vector<1x2x4x4x32xf32>
    %117 = vector.shape_cast %116 : vector<1x2x4x4x32xf32> to vector<2x4x4x32xf32>
    %c3_145 = arith.constant 3 : index
    %c0_146 = arith.constant 0 : index
    %c0_147 = arith.constant 0 : index
    %c1_148 = arith.constant 1 : index
    %c0_149 = arith.constant 0 : index
    %118 = vector.load %arg12[%c3_145, %c0_146, %c0_147, %c1_148, %c0_149] : memref<4x2x5x5x32xf32, #tpu.memory_space<vmem>>, vector<1x2x4x4x32xf32>
    %119 = vector.shape_cast %118 : vector<1x2x4x4x32xf32> to vector<2x4x4x32xf32>
    %c3_150 = arith.constant 3 : index
    %c0_151 = arith.constant 0 : index
    %c1_152 = arith.constant 1 : index
    %c0_153 = arith.constant 0 : index
    %c0_154 = arith.constant 0 : index
    %120 = vector.load %arg12[%c3_150, %c0_151, %c1_152, %c0_153, %c0_154] : memref<4x2x5x5x32xf32, #tpu.memory_space<vmem>>, vector<1x2x4x4x32xf32>
    %121 = vector.shape_cast %120 : vector<1x2x4x4x32xf32> to vector<2x4x4x32xf32>
    %c3_155 = arith.constant 3 : index
    %c0_156 = arith.constant 0 : index
    %c1_157 = arith.constant 1 : index
    %c1_158 = arith.constant 1 : index
    %c0_159 = arith.constant 0 : index
    %122 = vector.load %arg12[%c3_155, %c0_156, %c1_157, %c1_158, %c0_159] : memref<4x2x5x5x32xf32, #tpu.memory_space<vmem>>, vector<1x2x4x4x32xf32>
    %123 = vector.shape_cast %122 : vector<1x2x4x4x32xf32> to vector<2x4x4x32xf32>
    %124 = tpu.concatenate %117, %119, %121, %123 in 3 : vector<2x4x4x32xf32>, vector<2x4x4x32xf32>, vector<2x4x4x32xf32>, vector<2x4x4x32xf32> -> vector<2x4x4x128xf32>
    %125 = vector.shape_cast %124 : vector<2x4x4x128xf32> to vector<32x128xf32>
    %c3_160 = arith.constant 3 : index
    %c0_161 = arith.constant 0 : index
    %c0_162 = arith.constant 0 : index
    %126 = vector.load %arg4[%c3_160, %c0_161, %c0_162] : memref<8x128x32xf32, #tpu.memory_space<vmem>>, vector<1x128x32xf32>
    %127 = vector.shape_cast %126 : vector<1x128x32xf32> to vector<128x32xf32>
    %cst_163 = arith.constant dense<0.000000e+00> : vector<32x32xf32>
    %128 = tpu.matmul %125, %127, %cst_163 {dimension_numbers = #tpu.dot_dimension_numbers<[1], [0], [0], [1], [0, 0, 1, 1], [], []>} : vector<32x128xf32>, vector<128x32xf32>, vector<32x32xf32> -> vector<32x32xf32>
    %129 = arith.addf %115, %128 : vector<32x32xf32>
    %130 = vector.broadcast %74 : vector<1x32xf32> to vector<32x32xf32>
    %131 = arith.addf %129, %130 : vector<32x32xf32>
    %cst_164 = arith.constant 0.000000e+00 : f32
    %132 = vector.broadcast %cst_164 : f32 to vector<32x32xf32>
    %133 = arith.cmpf oge, %131, %132 : vector<32x32xf32>
    %cst_165 = arith.constant 2.000000e-01 : f32
    %134 = vector.broadcast %cst_165 : f32 to vector<32x32xf32>
    %135 = arith.mulf %134, %131 : vector<32x32xf32>
    %136 = arith.select %133, %131, %135 : vector<32x32xi1>, vector<32x32xf32>
    %137 = vector.shape_cast %136 : vector<32x32xf32> to vector<2x2x2x2x2x32xf32>
    %138 = vector.extract_strided_slice %137 {offsets = [0, 0, 0, 0, 0, 0], sizes = [2, 2, 1, 2, 1, 32], strides = [1, 1, 1, 1, 1, 1]} : vector<2x2x2x2x2x32xf32> to vector<2x2x1x2x1x32xf32>
    %139 = vector.shape_cast %138 : vector<2x2x1x2x1x32xf32> to vector<2x2x2x32xf32>
    %c3_166 = arith.constant 3 : index
    %c0_167 = arith.constant 0 : index
    %c0_168 = arith.constant 0 : index
    %c0_169 = arith.constant 0 : index
    %c0_170 = arith.constant 0 : index
    %140 = vector.load %arg13[%c3_166, %c0_167, %c0_168, %c0_169, %c0_170] : memref<4x2x3x3x32xf32, #tpu.memory_space<vmem>>, vector<1x2x2x2x32xf32>
    %141 = vector.shape_cast %140 : vector<1x2x2x2x32xf32> to vector<2x2x2x32xf32>
    %142 = vector.shape_cast %139 : vector<2x2x2x32xf32> to vector<1x2x2x2x32xf32>
    tpu.vector_store %arg13[%c3_166, %c0_167, %c0_168, %c0_169, %c0_170], %142 {strides = array<i32>} : memref<4x2x3x3x32xf32, #tpu.memory_space<vmem>>, vector<1x2x2x2x32xf32>,
    %143 = vector.extract_strided_slice %137 {offsets = [0, 0, 0, 0, 1, 0], sizes = [2, 2, 1, 2, 1, 32], strides = [1, 1, 1, 1, 1, 1]} : vector<2x2x2x2x2x32xf32> to vector<2x2x1x2x1x32xf32>
    %144 = vector.shape_cast %143 : vector<2x2x1x2x1x32xf32> to vector<2x2x2x32xf32>
    %c2_171 = arith.constant 2 : index
    %c0_172 = arith.constant 0 : index
    %c0_173 = arith.constant 0 : index
    %c1_174 = arith.constant 1 : index
    %c0_175 = arith.constant 0 : index
    %145 = vector.load %arg13[%c2_171, %c0_172, %c0_173, %c1_174, %c0_175] : memref<4x2x3x3x32xf32, #tpu.memory_space<vmem>>, vector<1x2x2x2x32xf32>
    %146 = vector.shape_cast %145 : vector<1x2x2x2x32xf32> to vector<2x2x2x32xf32>
    %147 = vector.shape_cast %144 : vector<2x2x2x32xf32> to vector<1x2x2x2x32xf32>
    tpu.vector_store %arg13[%c2_171, %c0_172, %c0_173, %c1_174, %c0_175], %147 {strides = array<i32>} : memref<4x2x3x3x32xf32, #tpu.memory_space<vmem>>, vector<1x2x2x2x32xf32>,
    %148 = vector.extract_strided_slice %137 {offsets = [0, 0, 1, 0, 0, 0], sizes = [2, 2, 1, 2, 1, 32], strides = [1, 1, 1, 1, 1, 1]} : vector<2x2x2x2x2x32xf32> to vector<2x2x1x2x1x32xf32>
    %149 = vector.shape_cast %148 : vector<2x2x1x2x1x32xf32> to vector<2x2x2x32xf32>
    %c1_176 = arith.constant 1 : index
    %c0_177 = arith.constant 0 : index
    %c1_178 = arith.constant 1 : index
    %c0_179 = arith.constant 0 : index
    %c0_180 = arith.constant 0 : index
    %150 = vector.load %arg13[%c1_176, %c0_177, %c1_178, %c0_179, %c0_180] : memref<4x2x3x3x32xf32, #tpu.memory_space<vmem>>, vector<1x2x2x2x32xf32>
    %151 = vector.shape_cast %150 : vector<1x2x2x2x32xf32> to vector<2x2x2x32xf32>
    %152 = vector.shape_cast %149 : vector<2x2x2x32xf32> to vector<1x2x2x2x32xf32>
    tpu.vector_store %arg13[%c1_176, %c0_177, %c1_178, %c0_179, %c0_180], %152 {strides = array<i32>} : memref<4x2x3x3x32xf32, #tpu.memory_space<vmem>>, vector<1x2x2x2x32xf32>,
    %153 = vector.extract_strided_slice %137 {offsets = [0, 0, 1, 0, 1, 0], sizes = [2, 2, 1, 2, 1, 32], strides = [1, 1, 1, 1, 1, 1]} : vector<2x2x2x2x2x32xf32> to vector<2x2x1x2x1x32xf32>
    %154 = vector.shape_cast %153 : vector<2x2x1x2x1x32xf32> to vector<2x2x2x32xf32>
    %c0_181 = arith.constant 0 : index
    %c0_182 = arith.constant 0 : index
    %c1_183 = arith.constant 1 : index
    %c1_184 = arith.constant 1 : index
    %c0_185 = arith.constant 0 : index
    %155 = vector.load %arg13[%c0_181, %c0_182, %c1_183, %c1_184, %c0_185] : memref<4x2x3x3x32xf32, #tpu.memory_space<vmem>>, vector<1x2x2x2x32xf32>
    %156 = vector.shape_cast %155 : vector<1x2x2x2x32xf32> to vector<2x2x2x32xf32>
    %157 = vector.shape_cast %154 : vector<2x2x2x32xf32> to vector<1x2x2x2x32xf32>
    tpu.vector_store %arg13[%c0_181, %c0_182, %c1_183, %c1_184, %c0_185], %157 {strides = array<i32>} : memref<4x2x3x3x32xf32, #tpu.memory_space<vmem>>, vector<1x2x2x2x32xf32>,
    %c2_186 = arith.constant 2 : index
    %c0_187 = arith.constant 0 : index
    %c0_188 = arith.constant 0 : index
    %158 = vector.load %arg5[%c2_186, %c0_187, %c0_188] : memref<3x1x32xf32, #tpu.memory_space<vmem>>, vector<1x1x32xf32>
    %159 = vector.shape_cast %158 : vector<1x1x32xf32> to vector<1x32xf32>
    %c0_189 = arith.constant 0 : index
    %c0_190 = arith.constant 0 : index
    %c0_191 = arith.constant 0 : index
    %c0_192 = arith.constant 0 : index
    %c0_193 = arith.constant 0 : index
    %160 = vector.load %arg13[%c0_189, %c0_190, %c0_191, %c0_192, %c0_193] : memref<4x2x3x3x32xf32, #tpu.memory_space<vmem>>, vector<1x2x2x2x32xf32>
    %161 = vector.shape_cast %160 : vector<1x2x2x2x32xf32> to vector<2x2x2x32xf32>
    %c0_194 = arith.constant 0 : index
    %c0_195 = arith.constant 0 : index
    %c0_196 = arith.constant 0 : index
    %c1_197 = arith.constant 1 : index
    %c0_198 = arith.constant 0 : index
    %162 = vector.load %arg13[%c0_194, %c0_195, %c0_196, %c1_197, %c0_198] : memref<4x2x3x3x32xf32, #tpu.memory_space<vmem>>, vector<1x2x2x2x32xf32>
    %163 = vector.shape_cast %162 : vector<1x2x2x2x32xf32> to vector<2x2x2x32xf32>
    %c0_199 = arith.constant 0 : index
    %c0_200 = arith.constant 0 : index
    %c1_201 = arith.constant 1 : index
    %c0_202 = arith.constant 0 : index
    %c0_203 = arith.constant 0 : index
    %164 = vector.load %arg13[%c0_199, %c0_200, %c1_201, %c0_202, %c0_203] : memref<4x2x3x3x32xf32, #tpu.memory_space<vmem>>, vector<1x2x2x2x32xf32>
    %165 = vector.shape_cast %164 : vector<1x2x2x2x32xf32> to vector<2x2x2x32xf32>
    %c0_204 = arith.constant 0 : index
    %c0_205 = arith.constant 0 : index
    %c1_206 = arith.constant 1 : index
    %c1_207 = arith.constant 1 : index
    %c0_208 = arith.constant 0 : index
    %166 = vector.load %arg13[%c0_204, %c0_205, %c1_206, %c1_207, %c0_208] : memref<4x2x3x3x32xf32, #tpu.memory_space<vmem>>, vector<1x2x2x2x32xf32>
    %167 = vector.shape_cast %166 : vector<1x2x2x2x32xf32> to vector<2x2x2x32xf32>
    %168 = tpu.concatenate %161, %163, %165, %167 in 3 : vector<2x2x2x32xf32>, vector<2x2x2x32xf32>, vector<2x2x2x32xf32>, vector<2x2x2x32xf32> -> vector<2x2x2x128xf32>
    %169 = vector.shape_cast %168 : vector<2x2x2x128xf32> to vector<8x128xf32>
    %c4 = arith.constant 4 : index
    %c0_209 = arith.constant 0 : index
    %c0_210 = arith.constant 0 : index
    %170 = vector.load %arg4[%c4, %c0_209, %c0_210] : memref<8x128x32xf32, #tpu.memory_space<vmem>>, vector<1x128x32xf32>
    %171 = vector.shape_cast %170 : vector<1x128x32xf32> to vector<128x32xf32>
    %cst_211 = arith.constant dense<0.000000e+00> : vector<8x32xf32>
    %172 = tpu.matmul %169, %171, %cst_211 {dimension_numbers = #tpu.dot_dimension_numbers<[1], [0], [0], [1], [0, 0, 1, 1], [], []>} : vector<8x128xf32>, vector<128x32xf32>, vector<8x32xf32> -> vector<8x32xf32>
    %c1_212 = arith.constant 1 : index
    %c0_213 = arith.constant 0 : index
    %c0_214 = arith.constant 0 : index
    %c0_215 = arith.constant 0 : index
    %c0_216 = arith.constant 0 : index
    %173 = vector.load %arg13[%c1_212, %c0_213, %c0_214, %c0_215, %c0_216] : memref<4x2x3x3x32xf32, #tpu.memory_space<vmem>>, vector<1x2x2x2x32xf32>
    %174 = vector.shape_cast %173 : vector<1x2x2x2x32xf32> to vector<2x2x2x32xf32>
    %c1_217 = arith.constant 1 : index
    %c0_218 = arith.constant 0 : index
    %c0_219 = arith.constant 0 : index
    %c1_220 = arith.constant 1 : index
    %c0_221 = arith.constant 0 : index
    %175 = vector.load %arg13[%c1_217, %c0_218, %c0_219, %c1_220, %c0_221] : memref<4x2x3x3x32xf32, #tpu.memory_space<vmem>>, vector<1x2x2x2x32xf32>
    %176 = vector.shape_cast %175 : vector<1x2x2x2x32xf32> to vector<2x2x2x32xf32>
    %c1_222 = arith.constant 1 : index
    %c0_223 = arith.constant 0 : index
    %c1_224 = arith.constant 1 : index
    %c0_225 = arith.constant 0 : index
    %c0_226 = arith.constant 0 : index
    %177 = vector.load %arg13[%c1_222, %c0_223, %c1_224, %c0_225, %c0_226] : memref<4x2x3x3x32xf32, #tpu.memory_space<vmem>>, vector<1x2x2x2x32xf32>
    %178 = vector.shape_cast %177 : vector<1x2x2x2x32xf32> to vector<2x2x2x32xf32>
    %c1_227 = arith.constant 1 : index
    %c0_228 = arith.constant 0 : index
    %c1_229 = arith.constant 1 : index
    %c1_230 = arith.constant 1 : index
    %c0_231 = arith.constant 0 : index
    %179 = vector.load %arg13[%c1_227, %c0_228, %c1_229, %c1_230, %c0_231] : memref<4x2x3x3x32xf32, #tpu.memory_space<vmem>>, vector<1x2x2x2x32xf32>
    %180 = vector.shape_cast %179 : vector<1x2x2x2x32xf32> to vector<2x2x2x32xf32>
    %181 = tpu.concatenate %174, %176, %178, %180 in 3 : vector<2x2x2x32xf32>, vector<2x2x2x32xf32>, vector<2x2x2x32xf32>, vector<2x2x2x32xf32> -> vector<2x2x2x128xf32>
    %182 = vector.shape_cast %181 : vector<2x2x2x128xf32> to vector<8x128xf32>
    %c5 = arith.constant 5 : index
    %c0_232 = arith.constant 0 : index
    %c0_233 = arith.constant 0 : index
    %183 = vector.load %arg4[%c5, %c0_232, %c0_233] : memref<8x128x32xf32, #tpu.memory_space<vmem>>, vector<1x128x32xf32>
    %184 = vector.shape_cast %183 : vector<1x128x32xf32> to vector<128x32xf32>
    %cst_234 = arith.constant dense<0.000000e+00> : vector<8x32xf32>
    %185 = tpu.matmul %182, %184, %cst_234 {dimension_numbers = #tpu.dot_dimension_numbers<[1], [0], [0], [1], [0, 0, 1, 1], [], []>} : vector<8x128xf32>, vector<128x32xf32>, vector<8x32xf32> -> vector<8x32xf32>
    %186 = arith.addf %172, %185 : vector<8x32xf32>
    %c2_235 = arith.constant 2 : index
    %c0_236 = arith.constant 0 : index
    %c0_237 = arith.constant 0 : index
    %c0_238 = arith.constant 0 : index
    %c0_239 = arith.constant 0 : index
    %187 = vector.load %arg13[%c2_235, %c0_236, %c0_237, %c0_238, %c0_239] : memref<4x2x3x3x32xf32, #tpu.memory_space<vmem>>, vector<1x2x2x2x32xf32>
    %188 = vector.shape_cast %187 : vector<1x2x2x2x32xf32> to vector<2x2x2x32xf32>
    %c2_240 = arith.constant 2 : index
    %c0_241 = arith.constant 0 : index
    %c0_242 = arith.constant 0 : index
    %c1_243 = arith.constant 1 : index
    %c0_244 = arith.constant 0 : index
    %189 = vector.load %arg13[%c2_240, %c0_241, %c0_242, %c1_243, %c0_244] : memref<4x2x3x3x32xf32, #tpu.memory_space<vmem>>, vector<1x2x2x2x32xf32>
    %190 = vector.shape_cast %189 : vector<1x2x2x2x32xf32> to vector<2x2x2x32xf32>
    %c2_245 = arith.constant 2 : index
    %c0_246 = arith.constant 0 : index
    %c1_247 = arith.constant 1 : index
    %c0_248 = arith.constant 0 : index
    %c0_249 = arith.constant 0 : index
    %191 = vector.load %arg13[%c2_245, %c0_246, %c1_247, %c0_248, %c0_249] : memref<4x2x3x3x32xf32, #tpu.memory_space<vmem>>, vector<1x2x2x2x32xf32>
    %192 = vector.shape_cast %191 : vector<1x2x2x2x32xf32> to vector<2x2x2x32xf32>
    %c2_250 = arith.constant 2 : index
    %c0_251 = arith.constant 0 : index
    %c1_252 = arith.constant 1 : index
    %c1_253 = arith.constant 1 : index
    %c0_254 = arith.constant 0 : index
    %193 = vector.load %arg13[%c2_250, %c0_251, %c1_252, %c1_253, %c0_254] : memref<4x2x3x3x32xf32, #tpu.memory_space<vmem>>, vector<1x2x2x2x32xf32>
    %194 = vector.shape_cast %193 : vector<1x2x2x2x32xf32> to vector<2x2x2x32xf32>
    %195 = tpu.concatenate %188, %190, %192, %194 in 3 : vector<2x2x2x32xf32>, vector<2x2x2x32xf32>, vector<2x2x2x32xf32>, vector<2x2x2x32xf32> -> vector<2x2x2x128xf32>
    %196 = vector.shape_cast %195 : vector<2x2x2x128xf32> to vector<8x128xf32>
    %c6 = arith.constant 6 : index
    %c0_255 = arith.constant 0 : index
    %c0_256 = arith.constant 0 : index
    %197 = vector.load %arg4[%c6, %c0_255, %c0_256] : memref<8x128x32xf32, #tpu.memory_space<vmem>>, vector<1x128x32xf32>
    %198 = vector.shape_cast %197 : vector<1x128x32xf32> to vector<128x32xf32>
    %cst_257 = arith.constant dense<0.000000e+00> : vector<8x32xf32>
    %199 = tpu.matmul %196, %198, %cst_257 {dimension_numbers = #tpu.dot_dimension_numbers<[1], [0], [0], [1], [0, 0, 1, 1], [], []>} : vector<8x128xf32>, vector<128x32xf32>, vector<8x32xf32> -> vector<8x32xf32>
    %200 = arith.addf %186, %199 : vector<8x32xf32>
    %c3_258 = arith.constant 3 : index
    %c0_259 = arith.constant 0 : index
    %c0_260 = arith.constant 0 : index
    %c0_261 = arith.constant 0 : index
    %c0_262 = arith.constant 0 : index
    %201 = vector.load %arg13[%c3_258, %c0_259, %c0_260, %c0_261, %c0_262] : memref<4x2x3x3x32xf32, #tpu.memory_space<vmem>>, vector<1x2x2x2x32xf32>
    %202 = vector.shape_cast %201 : vector<1x2x2x2x32xf32> to vector<2x2x2x32xf32>
    %c3_263 = arith.constant 3 : index
    %c0_264 = arith.constant 0 : index
    %c0_265 = arith.constant 0 : index
    %c1_266 = arith.constant 1 : index
    %c0_267 = arith.constant 0 : index
    %203 = vector.load %arg13[%c3_263, %c0_264, %c0_265, %c1_266, %c0_267] : memref<4x2x3x3x32xf32, #tpu.memory_space<vmem>>, vector<1x2x2x2x32xf32>
    %204 = vector.shape_cast %203 : vector<1x2x2x2x32xf32> to vector<2x2x2x32xf32>
    %c3_268 = arith.constant 3 : index
    %c0_269 = arith.constant 0 : index
    %c1_270 = arith.constant 1 : index
    %c0_271 = arith.constant 0 : index
    %c0_272 = arith.constant 0 : index
    %205 = vector.load %arg13[%c3_268, %c0_269, %c1_270, %c0_271, %c0_272] : memref<4x2x3x3x32xf32, #tpu.memory_space<vmem>>, vector<1x2x2x2x32xf32>
    %206 = vector.shape_cast %205 : vector<1x2x2x2x32xf32> to vector<2x2x2x32xf32>
    %c3_273 = arith.constant 3 : index
    %c0_274 = arith.constant 0 : index
    %c1_275 = arith.constant 1 : index
    %c1_276 = arith.constant 1 : index
    %c0_277 = arith.constant 0 : index
    %207 = vector.load %arg13[%c3_273, %c0_274, %c1_275, %c1_276, %c0_277] : memref<4x2x3x3x32xf32, #tpu.memory_space<vmem>>, vector<1x2x2x2x32xf32>
    %208 = vector.shape_cast %207 : vector<1x2x2x2x32xf32> to vector<2x2x2x32xf32>
    %209 = tpu.concatenate %202, %204, %206, %208 in 3 : vector<2x2x2x32xf32>, vector<2x2x2x32xf32>, vector<2x2x2x32xf32>, vector<2x2x2x32xf32> -> vector<2x2x2x128xf32>
    %210 = vector.shape_cast %209 : vector<2x2x2x128xf32> to vector<8x128xf32>
    %c7 = arith.constant 7 : index
    %c0_278 = arith.constant 0 : index
    %c0_279 = arith.constant 0 : index
    %211 = vector.load %arg4[%c7, %c0_278, %c0_279] : memref<8x128x32xf32, #tpu.memory_space<vmem>>, vector<1x128x32xf32>
    %212 = vector.shape_cast %211 : vector<1x128x32xf32> to vector<128x32xf32>
    %cst_280 = arith.constant dense<0.000000e+00> : vector<8x32xf32>
    %213 = tpu.matmul %210, %212, %cst_280 {dimension_numbers = #tpu.dot_dimension_numbers<[1], [0], [0], [1], [0, 0, 1, 1], [], []>} : vector<8x128xf32>, vector<128x32xf32>, vector<8x32xf32> -> vector<8x32xf32>
    %214 = arith.addf %200, %213 : vector<8x32xf32>
    %215 = vector.broadcast %159 : vector<1x32xf32> to vector<8x32xf32>
    %216 = arith.addf %214, %215 : vector<8x32xf32>
    %cst_281 = arith.constant 0.000000e+00 : f32
    %217 = vector.broadcast %cst_281 : f32 to vector<8x32xf32>
    %218 = arith.cmpf oge, %216, %217 : vector<8x32xf32>
    %cst_282 = arith.constant 2.000000e-01 : f32
    %219 = vector.broadcast %cst_282 : f32 to vector<8x32xf32>
    %220 = arith.mulf %219, %216 : vector<8x32xf32>
    %221 = arith.select %218, %216, %220 : vector<8x32xi1>, vector<8x32xf32>
    %222 = vector.shape_cast %221 : vector<8x32xf32> to vector<2x4x32xf32>
    %cst_283 = arith.constant dense<0.000000e+00> : vector<2x32xf32>
    %223 = vector.multi_reduction <add>, %222, %cst_283 [1] : vector<2x4x32xf32> to vector<2x32xf32>
    %cst_284 = arith.constant 4.000000e+00 : f32
    %224 = vector.broadcast %cst_284 : f32 to vector<2x32xf32>
    %225 = arith.divf %223, %224 : vector<2x32xf32>
    %226 = tpu.concatenate %225, %35 in 1 : vector<2x32xf32>, vector<2x64xf32> -> vector<2x96xf32>
    %c0_285 = arith.constant 0 : index
    %c0_286 = arith.constant 0 : index
    %227 = vector.load %arg9[%c0_285, %c0_286] : memref<96x16xf32, #tpu.memory_space<vmem>>, vector<96x16xf32>
    %cst_287 = arith.constant dense<0.000000e+00> : vector<2x16xf32>
    %228 = tpu.matmul %226, %227, %cst_287 {dimension_numbers = #tpu.dot_dimension_numbers<[1], [0], [0], [1], [0, 0, 1, 1], [], []>} : vector<2x96xf32>, vector<96x16xf32>, vector<2x16xf32> -> vector<2x16xf32>
    %c0_288 = arith.constant 0 : index
    %c0_289 = arith.constant 0 : index
    %229 = vector.load %arg10[%c0_288, %c0_289] : memref<1x16xf32, #tpu.memory_space<vmem>>, vector<1x16xf32>
    %230 = vector.broadcast %229 : vector<1x16xf32> to vector<2x16xf32>
    %231 = arith.addf %228, %230 : vector<2x16xf32>
    %c0_290 = arith.constant 0 : index
    %c0_291 = arith.constant 0 : index
    %232 = vector.load %arg11[%c0_290, %c0_291] : memref<2x16xf32, #tpu.memory_space<vmem>>, vector<2x16xf32>
    tpu.vector_store %arg11[%c0_290, %c0_291], %231 {strides = array<i32>} : memref<2x16xf32, #tpu.memory_space<vmem>>, vector<2x16xf32>,
    return
  }
  func.func @transform_0(%arg0: i32) -> (i32, i32) {
    %c0_i32 = arith.constant 0 : i32
    %c0_i32_0 = arith.constant 0 : i32
    %c0_i32_1 = arith.constant 0 : i32
    return %c0_i32, %c0_i32_0 : i32, i32
  }
  func.func @transform_1(%arg0: i32) -> (i32, i32) {
    %c0_i32 = arith.constant 0 : i32
    %c0_i32_0 = arith.constant 0 : i32
    %c0_i32_1 = arith.constant 0 : i32
    return %c0_i32, %c0_i32_0 : i32, i32
  }
  func.func @transform_2(%arg0: i32) -> (i32, i32) {
    %c0_i32 = arith.constant 0 : i32
    %c0_i32_0 = arith.constant 0 : i32
    %c0_i32_1 = arith.constant 0 : i32
    return %c0_i32, %c0_i32_0 : i32, i32
  }
  func.func @transform_3(%arg0: i32) -> (i32, i32, i32) {
    %c0_i32 = arith.constant 0 : i32
    %c0_i32_0 = arith.constant 0 : i32
    %c0_i32_1 = arith.constant 0 : i32
    %c0_i32_2 = arith.constant 0 : i32
    return %c0_i32, %c0_i32_0, %c0_i32_1 : i32, i32, i32
  }
  func.func @transform_4(%arg0: i32) -> (i32, i32, i32) {
    %c0_i32 = arith.constant 0 : i32
    %c0_i32_0 = arith.constant 0 : i32
    %c0_i32_1 = arith.constant 0 : i32
    %c0_i32_2 = arith.constant 0 : i32
    return %c0_i32, %c0_i32_0, %c0_i32_1 : i32, i32, i32
  }
  func.func @transform_5(%arg0: i32) -> (i32, i32) {
    %c0_i32 = arith.constant 0 : i32
    %c0_i32_0 = arith.constant 0 : i32
    %c0_i32_1 = arith.constant 0 : i32
    return %c0_i32, %c0_i32_0 : i32, i32
  }
  func.func @transform_6(%arg0: i32) -> (i32, i32, i32) {
    %c0_i32 = arith.constant 0 : i32
    %c0_i32_0 = arith.constant 0 : i32
    %c0_i32_1 = arith.constant 0 : i32
    %c0_i32_2 = arith.constant 0 : i32
    return %c0_i32, %c0_i32_0, %c0_i32_1 : i32, i32, i32
  }
  func.func @transform_7(%arg0: i32) -> (i32, i32, i32) {
    %c0_i32 = arith.constant 0 : i32
    %c0_i32_0 = arith.constant 0 : i32
    %c0_i32_1 = arith.constant 0 : i32
    %c0_i32_2 = arith.constant 0 : i32
    return %c0_i32, %c0_i32_0, %c0_i32_1 : i32, i32, i32
  }
  func.func @transform_8(%arg0: i32) -> (i32, i32) {
    %c0_i32 = arith.constant 0 : i32
    %c0_i32_0 = arith.constant 0 : i32
    %c0_i32_1 = arith.constant 0 : i32
    return %c0_i32, %c0_i32_0 : i32, i32
  }
  func.func @transform_9(%arg0: i32) -> (i32, i32) {
    %c0_i32 = arith.constant 0 : i32
    %c0_i32_0 = arith.constant 0 : i32
    %c0_i32_1 = arith.constant 0 : i32
    return %c0_i32, %c0_i32_0 : i32, i32
  }
  func.func @transform_10(%arg0: i32) -> (i32, i32) {
    %c0_i32 = arith.constant 0 : i32
    %c0_i32_0 = arith.constant 0 : i32
    %c0_i32_1 = arith.constant 0 : i32
    return %c0_i32, %c0_i32_0 : i32, i32
  }
}

</mosaic_0001>

<llo_original>
// kernel: encoder_forward.1
$region0: #{encoder_forward.1}
  #allocation0 [shape = 'u32[]', space=smem, size = 0x4, offset = 0x4, fixed_abs, tag = 'smem constant byte address 0x4 - core index']
  #allocation1 [shape = 'u32[144,128]{1,0:T(1,128)}', space=vmem, size = 0x12000, scoped, tag = 'internal scratch']
  #allocation2 [shape = 'f32[4,2,5,5,32]{4,3,2,1,0:T(8,128)}', space=vmem, size = 0x28000, scoped, tag = 'scratch operand']
  #allocation3 [shape = 'f32[4,2,3,3,32]{4,3,2,1,0:T(4,128)}', space=vmem, size = 0xc000, scoped, tag = 'scratch operand']
  %s0 = inlined_call_operand.vmem [shape: f32[128,64], index: 0, kind: input, shape index: {}]
  %s1 = inlined_call_operand.vmem [shape: f32[2,64], index: 1, kind: input, shape index: {}]
  %s2 = inlined_call_operand.vmem [shape: f32[64,32], index: 2, kind: input, shape index: {}]
  %s3 = inlined_call_operand.vmem [shape: f32[8,128,32], index: 3, kind: input, shape index: {}]
  %s4 = inlined_call_operand.vmem [shape: f32[3,1,32], index: 4, kind: input, shape index: {}]
  %s5 = inlined_call_operand.vmem [shape: f32[64,64], index: 5, kind: input, shape index: {}]
  %s6 = inlined_call_operand.vmem [shape: f32[2,64,64], index: 6, kind: input, shape index: {}]
  %s7 = inlined_call_operand.vmem [shape: f32[3,1,64], index: 7, kind: input, shape index: {}]
  %s8 = inlined_call_operand.vmem [shape: f32[96,16], index: 8, kind: input, shape index: {}]
  %s9 = inlined_call_operand.vmem [shape: f32[1,16], index: 9, kind: input, shape index: {}]
  %s10 = inlined_call_operand.hbm [shape: f32[2,16], index: 10, kind: output, shape index: {}]
  %s11 = sld [smem:[#allocation0]]
  $region50: #{encoder_forward.1} parent=0
    _
  %s13 = ssub.s32 1, %s11
  %s14 = scalar_select 0, %s13, %s11
  $region1: #{encoder_forward.1} parent=0
    #allocation4 [shape = 'u8[1024]{0}', space=vmem, size = 0x400, scoped, tag = 'output window, operand 0, single buffered']
    #allocation5 [shape = 's32[1]{0}', space=sflag, size = 0x4, scoped, tag = 'scoped memory for encoder_forward.1']
    %15 = vsyncpa [#allocation5], 0
    // Predicated region
    $region2: #{encoder_forward.1} parent=1 // pred_check
      _
    $region3: #{encoder_forward.1} parent=1 // pred_check_branch
      %17 = sbr.rel (0) target = $region5
    $region4: #{encoder_forward.1} parent=1 // pred_region
      _
    $region5: #{encoder_forward.1} parent=1 // pred_fallthru
      _
    // Predicated region
    $region6: #{encoder_forward.1} parent=1 // pred_check
      _
    $region7: #{encoder_forward.1} parent=1 // pred_check_branch
      %19 = sbr.rel (0) target = $region9
    $region8: #{encoder_forward.1} parent=1 // pred_region
      _
    $region9: #{encoder_forward.1} parent=1 // pred_fallthru
      _
    // Predicated region
    $region10: #{encoder_forward.1} parent=1 // pred_check
      _
    $region11: #{encoder_forward.1} parent=1 // pred_check_branch
      %21 = sbr.rel (0) target = $region13
    $region12: #{encoder_forward.1} parent=1 // pred_region
      _
    $region13: #{encoder_forward.1} parent=1 // pred_fallthru
      _
    // Predicated region
    $region14: #{encoder_forward.1} parent=1 // pred_check
      _
    $region15: #{encoder_forward.1} parent=1 // pred_check_branch
      %23 = sbr.rel (0) target = $region17
    $region16: #{encoder_forward.1} parent=1 // pred_region
      _
    $region17: #{encoder_forward.1} parent=1 // pred_fallthru
      _
    // Predicated region
    $region18: #{encoder_forward.1} parent=1 // pred_check
      _
    $region19: #{encoder_forward.1} parent=1 // pred_check_branch
      %25 = sbr.rel (0) target = $region21
    $region20: #{encoder_forward.1} parent=1 // pred_region
      _
    $region21: #{encoder_forward.1} parent=1 // pred_fallthru
      _
    // Predicated region
    $region22: #{encoder_forward.1} parent=1 // pred_check
      _
    $region23: #{encoder_forward.1} parent=1 // pred_check_branch
      %27 = sbr.rel (0) target = $region25
    $region24: #{encoder_forward.1} parent=1 // pred_region
      _
    $region25: #{encoder_forward.1} parent=1 // pred_fallthru
      _
    // Predicated region
    $region26: #{encoder_forward.1} parent=1 // pred_check
      _
    $region27: #{encoder_forward.1} parent=1 // pred_check_branch
      %29 = sbr.rel (0) target = $region29
    $region28: #{encoder_forward.1} parent=1 // pred_region
      _
    $region29: #{encoder_forward.1} parent=1 // pred_fallthru
      _
    // Predicated region
    $region30: #{encoder_forward.1} parent=1 // pred_check
      _
    $region31: #{encoder_forward.1} parent=1 // pred_check_branch
      %31 = sbr.rel (0) target = $region33
    $region32: #{encoder_forward.1} parent=1 // pred_region
      _
    $region33: #{encoder_forward.1} parent=1 // pred_fallthru
      _
    // Predicated region
    $region34: #{encoder_forward.1} parent=1 // pred_check
      _
    $region35: #{encoder_forward.1} parent=1 // pred_check_branch
      %33 = sbr.rel (0) target = $region37
    $region36: #{encoder_forward.1} parent=1 // pred_region
      _
    $region37: #{encoder_forward.1} parent=1 // pred_fallthru
      _
    // Predicated region
    $region38: #{encoder_forward.1} parent=1 // pred_check
      _
    $region39: #{encoder_forward.1} parent=1 // pred_check_branch
      %35 = sbr.rel (0) target = $region41
    $region40: #{encoder_forward.1} parent=1 // pred_region
      _
    $region41: #{encoder_forward.1} parent=1 // pred_fallthru
      _
    %v36 = vld [vmem:[%s1] sm:$0x3]
    %v37 = vld [vmem:[%s5] sm:$0xff]
    %v38 = vld [vmem:[%s5 + $0x8] sm:$0xff]
    %v39 = vld [vmem:[%s5 + $0x10] sm:$0xff]
    %v40 = vld [vmem:[%s5 + $0x18] sm:$0xff]
    %v41 = vld [vmem:[%s5 + $0x20] sm:$0xff]
    %v42 = vld [vmem:[%s5 + $0x28] sm:$0xff]
    %v43 = vld [vmem:[%s5 + $0x30] sm:$0xff]
    %v44 = vld [vmem:[%s5 + $0x38] sm:$0xff]
    %v45 = vld [vmem:[%s7] sm:$0x1]
    %v47 = vlaneseq
    %v48 = vshrl.u32 %v47, 7
    %v49 = vsub.s32 0, %v48
    %v50 = vrot.slane %v45, %v49
    %vm52 = vcmask 523264
    %v54 = vsel %vm52, %v36, 0
    %56 = vmatprep.subr.mxu0 0.0
    %57 = vmatpush1.msra.mxu0 0.0
    %58 = vmatprep.subr.mxu0 0.0
    %59 = vmatpush1.msra.mxu0 0.0
    %60 = vmatprep.subr.mxu0 0.0
    %61 = vmatpush1.msra.mxu0 0.0
    %62 = vmatprep.subr.mxu0 0.0
    %63 = vmatpush1.msra.mxu0 0.0
    %64 = vmatprep.subr.mxu0 0.0
    %65 = vmatpush1.msra.mxu0 0.0
    %66 = vmatprep.subr.mxu0 0.0
    %67 = vmatpush1.msra.mxu0 0.0
    %68 = vmatprep.subr.mxu0 0.0
    %69 = vmatpush1.msra.mxu0 0.0
    %70 = vmatprep.subr.mxu0 0.0
    %71 = vmatpush1.msra.mxu0 0.0
    %72 = vmatprep.subr.mxu0 0.0
    %73 = vmatpush1.msra.mxu0 %v44
    %74 = vmatprep.subr.mxu0 0.0
    %75 = vmatpush1.msra.mxu0 %v43
    %76 = vmatprep.subr.mxu0 0.0
    %77 = vmatpush1.msra.mxu0 %v42
    %78 = vmatprep.subr.mxu0 0.0
    %79 = vmatpush1.msra.mxu0 %v41
    %80 = vmatprep.subr.mxu0 0.0
    %81 = vmatpush1.msra.mxu0 %v40
    %82 = vmatprep.subr.mxu0 0.0
    %83 = vmatpush1.msra.mxu0 %v39
    %84 = vmatprep.subr.mxu0 0.0
    %85 = vmatpush1.msra.mxu0 %v38
    %86 = vmatprep.subr.mxu0 0.0
    %87 = vmatpush1.msra.mxu0 %v37
    %88 = vmatprep.subr.mxu0 0.0
    %89 = vmatpush2.msra.mxu0 0.0
    %90 = vmatprep.subr.mxu0 0.0
    %91 = vmatpush2.msra.mxu0 0.0
    %92 = vmatprep.subr.mxu0 0.0
    %93 = vmatpush2.msra.mxu0 0.0
    %94 = vmatprep.subr.mxu0 0.0
    %95 = vmatpush2.msra.mxu0 0.0
    %96 = vmatprep.subr.mxu0 0.0
    %97 = vmatpush2.msra.mxu0 0.0
    %98 = vmatprep.subr.mxu0 0.0
    %99 = vmatpush2.msra.mxu0 0.0
    %100 = vmatprep.subr.mxu0 0.0
    %101 = vmatpush2.msra.mxu0 0.0
    %102 = vmatprep.subr.mxu0 0.0
    %103 = vmatpush2.msra.mxu0 0.0
    %104 = vmatprep.subr.mxu0 0.0
    %105 = vmatpush2.msra.mxu0 0.0
    %106 = vmatprep.subr.mxu0 0.0
    %107 = vmatpush2.msra.mxu0 0.0
    %108 = vmatprep.subr.mxu0 0.0
    %109 = vmatpush2.msra.mxu0 0.0
    %110 = vmatprep.subr.mxu0 0.0
    %111 = vmatpush2.msra.mxu0 0.0
    %112 = vmatprep.subr.mxu0 0.0
    %113 = vmatpush2.msra.mxu0 0.0
    %114 = vmatprep.subr.mxu0 0.0
    %115 = vmatpush2.msra.mxu0 0.0
    %116 = vmatprep.subr.mxu0 0.0
    %117 = vmatpush2.msra.mxu0 0.0
    %118 = vmatprep.subr.mxu0 0.0
    %119 = vmatpush2.msra.mxu0 0.0
    %120 = vmatprep.mubr.f32.mxu0 0.0
    %121 = vmatmul.mubr.f32.gmra.mxu0 %v54
    %v122 = vpop.f32.mrf.mxu0
    %v123 = vadd.f32 %v50, %v122
    %v124 = vpop.f32.mrf.mxu0
    %125 = vdwg.mxu0
    %vm126 = vcmp.ge.f32.partialorder %v123, 0.0
    %v127 = vmul.f32 %v123, 0.2
    %v128 = vsel %vm126, %v123, %v127
    %v129 = vld [vmem:[%s6] sm:$0xff]
    %v130 = vld [vmem:[%s6 + $0x8] sm:$0xff]
    %v131 = vld [vmem:[%s6 + $0x10] sm:$0xff]
    %v132 = vld [vmem:[%s6 + $0x18] sm:$0xff]
    %v133 = vld [vmem:[%s6 + $0x20] sm:$0xff]
    %v134 = vld [vmem:[%s6 + $0x28] sm:$0xff]
    %v135 = vld [vmem:[%s6 + $0x30] sm:$0xff]
    %v136 = vld [vmem:[%s6 + $0x38] sm:$0xff]
    %s137 = scalar_lea.vmem %s7, 1
    %v138 = vld [vmem:[%s137] sm:$0x1]
    %v140 = vlaneseq
    %v141 = vshrl.u32 %v140, 7
    %v142 = vsub.s32 0, %v141
    %v143 = vrot.slane %v138, %v142
    %v146 = vsel %vm52, %v128, 0
    %148 = vmatprep.subr.mxu0 0.0
    %149 = vmatpush1.msra.mxu0 0.0
    %150 = vmatprep.subr.mxu0 0.0
    %151 = vmatpush1.msra.mxu0 0.0
    %152 = vmatprep.subr.mxu0 0.0
    %153 = vmatpush1.msra.mxu0 0.0
    %154 = vmatprep.subr.mxu0 0.0
    %155 = vmatpush1.msra.mxu0 0.0
    %156 = vmatprep.subr.mxu0 0.0
    %157 = vmatpush1.msra.mxu0 0.0
    %158 = vmatprep.subr.mxu0 0.0
    %159 = vmatpush1.msra.mxu0 0.0
    %160 = vmatprep.subr.mxu0 0.0
    %161 = vmatpush1.msra.mxu0 0.0
    %162 = vmatprep.subr.mxu0 0.0
    %163 = vmatpush1.msra.mxu0 0.0
    %164 = vmatprep.subr.mxu0 0.0
    %165 = vmatpush1.msra.mxu0 %v136
    %166 = vmatprep.subr.mxu0 0.0
    %167 = vmatpush1.msra.mxu0 %v135
    %168 = vmatprep.subr.mxu0 0.0
    %169 = vmatpush1.msra.mxu0 %v134
    %170 = vmatprep.subr.mxu0 0.0
    %171 = vmatpush1.msra.mxu0 %v133
    %172 = vmatprep.subr.mxu0 0.0
    %173 = vmatpush1.msra.mxu0 %v132
    %174 = vmatprep.subr.mxu0 0.0
    %175 = vmatpush1.msra.mxu0 %v131
    %176 = vmatprep.subr.mxu0 0.0
    %177 = vmatpush1.msra.mxu0 %v130
    %178 = vmatprep.subr.mxu0 0.0
    %179 = vmatpush1.msra.mxu0 %v129
    %180 = vmatprep.subr.mxu0 0.0
    %181 = vmatpush2.msra.mxu0 0.0
    %182 = vmatprep.subr.mxu0 0.0
    %183 = vmatpush2.msra.mxu0 0.0
    %184 = vmatprep.subr.mxu0 0.0
    %185 = vmatpush2.msra.mxu0 0.0
    %186 = vmatprep.subr.mxu0 0.0
    %187 = vmatpush2.msra.mxu0 0.0
    %188 = vmatprep.subr.mxu0 0.0
    %189 = vmatpush2.msra.mxu0 0.0
    %190 = vmatprep.subr.mxu0 0.0
    %191 = vmatpush2.msra.mxu0 0.0
    %192 = vmatprep.subr.mxu0 0.0
    %193 = vmatpush2.msra.mxu0 0.0
    %194 = vmatprep.subr.mxu0 0.0
    %195 = vmatpush2.msra.mxu0 0.0
    %196 = vmatprep.subr.mxu0 0.0
    %197 = vmatpush2.msra.mxu0 0.0
    %198 = vmatprep.subr.mxu0 0.0
    %199 = vmatpush2.msra.mxu0 0.0
    %200 = vmatprep.subr.mxu0 0.0
    %201 = vmatpush2.msra.mxu0 0.0
    %202 = vmatprep.subr.mxu0 0.0
    %203 = vmatpush2.msra.mxu0 0.0
    %204 = vmatprep.subr.mxu0 0.0
    %205 = vmatpush2.msra.mxu0 0.0
    %206 = vmatprep.subr.mxu0 0.0
    %207 = vmatpush2.msra.mxu0 0.0
    %208 = vmatprep.subr.mxu0 0.0
    %209 = vmatpush2.msra.mxu0 0.0
    %210 = vmatprep.subr.mxu0 0.0
    %211 = vmatpush2.msra.mxu0 0.0
    %212 = vmatprep.mubr.f32.mxu0 0.0
    %213 = vmatmul.mubr.f32.gmra.mxu0 %v146
    %v214 = vpop.f32.mrf.mxu0
    %v215 = vadd.f32 %v143, %v214
    %v216 = vpop.f32.mrf.mxu0
    %217 = vdwg.mxu0
    %vm218 = vcmp.ge.f32.partialorder %v215, 0.0
    %v219 = vmul.f32 %v215, 0.2
    %v220 = vsel %vm218, %v215, %v219
    %s221 = scalar_lea.vmem %s6, 64
    %v222 = vld [vmem:[%s221] sm:$0xff]
    %v223 = vld [vmem:[%s221 + $0x8] sm:$0xff]
    %v224 = vld [vmem:[%s221 + $0x10] sm:$0xff]
    %v225 = vld [vmem:[%s221 + $0x18] sm:$0xff]
    %v226 = vld [vmem:[%s221 + $0x20] sm:$0xff]
    %v227 = vld [vmem:[%s221 + $0x28] sm:$0xff]
    %v228 = vld [vmem:[%s221 + $0x30] sm:$0xff]
    %v229 = vld [vmem:[%s221 + $0x38] sm:$0xff]
    %s230 = scalar_lea.vmem %s7, 2
    %v231 = vld [vmem:[%s230] sm:$0x1]
    %v233 = vlaneseq
    %v234 = vshrl.u32 %v233, 7
    %v235 = vsub.s32 0, %v234
    %v236 = vrot.slane %v231, %v235
    %v239 = vsel %vm52, %v220, 0
    %241 = vmatprep.subr.mxu0 0.0
    %242 = vmatpush1.msra.mxu0 0.0
    %243 = vmatprep.subr.mxu0 0.0
    %244 = vmatpush1.msra.mxu0 0.0
    %245 = vmatprep.subr.mxu0 0.0
    %246 = vmatpush1.msra.mxu0 0.0
    %247 = vmatprep.subr.mxu0 0.0
    %248 = vmatpush1.msra.mxu0 0.0
    %249 = vmatprep.subr.mxu0 0.0
    %250 = vmatpush1.msra.mxu0 0.0
    %251 = vmatprep.subr.mxu0 0.0
    %252 = vmatpush1.msra.mxu0 0.0
    %253 = vmatprep.subr.mxu0 0.0
    %254 = vmatpush1.msra.mxu0 0.0
    %255 = vmatprep.subr.mxu0 0.0
    %256 = vmatpush1.msra.mxu0 0.0
    %257 = vmatprep.subr.mxu0 0.0
    %258 = vmatpush1.msra.mxu0 %v229
    %259 = vmatprep.subr.mxu0 0.0
    %260 = vmatpush1.msra.mxu0 %v228
    %261 = vmatprep.subr.mxu0 0.0
    %262 = vmatpush1.msra.mxu0 %v227
    %263 = vmatprep.subr.mxu0 0.0
    %264 = vmatpush1.msra.mxu0 %v226
    %265 = vmatprep.subr.mxu0 0.0
    %266 = vmatpush1.msra.mxu0 %v225
    %267 = vmatprep.subr.mxu0 0.0
    %268 = vmatpush1.msra.mxu0 %v224
    %269 = vmatprep.subr.mxu0 0.0
    %270 = vmatpush1.msra.mxu0 %v223
    %271 = vmatprep.subr.mxu0 0.0
    %272 = vmatpush1.msra.mxu0 %v222
    %273 = vmatprep.subr.mxu0 0.0
    %274 = vmatpush2.msra.mxu0 0.0
    %275 = vmatprep.subr.mxu0 0.0
    %276 = vmatpush2.msra.mxu0 0.0
    %277 = vmatprep.subr.mxu0 0.0
    %278 = vmatpush2.msra.mxu0 0.0
    %279 = vmatprep.subr.mxu0 0.0
    %280 = vmatpush2.msra.mxu0 0.0
    %281 = vmatprep.subr.mxu0 0.0
    %282 = vmatpush2.msra.mxu0 0.0
    %283 = vmatprep.subr.mxu0 0.0
    %284 = vmatpush2.msra.mxu0 0.0
    %285 = vmatprep.subr.mxu0 0.0
    %286 = vmatpush2.msra.mxu0 0.0
    %287 = vmatprep.subr.mxu0 0.0
    %288 = vmatpush2.msra.mxu0 0.0
    %289 = vmatprep.subr.mxu0 0.0
    %290 = vmatpush2.msra.mxu0 0.0
    %291 = vmatprep.subr.mxu0 0.0
    %292 = vmatpush2.msra.mxu0 0.0
    %293 = vmatprep.subr.mxu0 0.0
    %294 = vmatpush2.msra.mxu0 0.0
    %295 = vmatprep.subr.mxu0 0.0
    %296 = vmatpush2.msra.mxu0 0.0
    %297 = vmatprep.subr.mxu0 0.0
    %298 = vmatpush2.msra.mxu0 0.0
    %299 = vmatprep.subr.mxu0 0.0
    %300 = vmatpush2.msra.mxu0 0.0
    %301 = vmatprep.subr.mxu0 0.0
    %302 = vmatpush2.msra.mxu0 0.0
    %303 = vmatprep.subr.mxu0 0.0
    %304 = vmatpush2.msra.mxu0 0.0
    %305 = vmatprep.mubr.f32.mxu0 0.0
    %306 = vmatmul.mubr.f32.gmra.mxu0 %v239
    %v307 = vpop.f32.mrf.mxu0
    %v308 = vadd.f32 %v236, %v307
    %v309 = vpop.f32.mrf.mxu0
    %310 = vdwg.mxu0
    %vm311 = vcmp.ge.f32.partialorder %v308, 0.0
    %v312 = vmul.f32 %v308, 0.2
    %v313 = vsel %vm311, %v308, %v312
    %v314 = vld [vmem:[%s0] sm:$0xff]
    %v315 = vld [vmem:[%s0 + $0x8] sm:$0xff]
    %v316 = vld [vmem:[%s0 + $0x10] sm:$0xff]
    %v317 = vld [vmem:[%s0 + $0x18] sm:$0xff]
    %v318 = vld [vmem:[%s0 + $0x20] sm:$0xff]
    %v319 = vld [vmem:[%s0 + $0x28] sm:$0xff]
    %v320 = vld [vmem:[%s0 + $0x30] sm:$0xff]
    %v321 = vld [vmem:[%s0 + $0x38] sm:$0xff]
    %v322 = vld [vmem:[%s0 + $0x40] sm:$0xff]
    %v323 = vld [vmem:[%s0 + $0x48] sm:$0xff]
    %v324 = vld [vmem:[%s0 + $0x50] sm:$0xff]
    %v325 = vld [vmem:[%s0 + $0x58] sm:$0xff]
    %v326 = vld [vmem:[%s0 + $0x60] sm:$0xff]
    %v327 = vld [vmem:[%s0 + $0x68] sm:$0xff]
    %v328 = vld [vmem:[%s0 + $0x70] sm:$0xff]
    %v329 = vld [vmem:[%s0 + $0x78] sm:$0xff]
    %v330 = vld [vmem:[%s2] sm:$0xff]
    %v331 = vld [vmem:[%s2 + $0x8] sm:$0xff]
    %v332 = vld [vmem:[%s2 + $0x10] sm:$0xff]
    %v333 = vld [vmem:[%s2 + $0x18] sm:$0xff]
    %v334 = vld [vmem:[%s2 + $0x20] sm:$0xff]
    %v335 = vld [vmem:[%s2 + $0x28] sm:$0xff]
    %v336 = vld [vmem:[%s2 + $0x30] sm:$0xff]
    %v337 = vld [vmem:[%s2 + $0x38] sm:$0xff]
    %v338 = vld [vmem:[%s4] sm:$0x1]
    %v340 = vlaneseq
    %v341 = vshrl.u32 %v340, 7
    %v342 = vsub.s32 0, %v341
    %v343 = vrot.slane %v338, %v342
    %v346 = vsel %vm52, %v314, 0
    %v349 = vsel %vm52, %v315, 0
    %v352 = vsel %vm52, %v316, 0
    %v355 = vsel %vm52, %v317, 0
    %v358 = vsel %vm52, %v318, 0
    %v361 = vsel %vm52, %v319, 0
    %v364 = vsel %vm52, %v320, 0
    %v367 = vsel %vm52, %v321, 0
    %v370 = vsel %vm52, %v322, 0
    %v373 = vsel %vm52, %v323, 0
    %v376 = vsel %vm52, %v324, 0
    %v379 = vsel %vm52, %v325, 0
    %v382 = vsel %vm52, %v326, 0
    %v385 = vsel %vm52, %v327, 0
    %v388 = vsel %vm52, %v328, 0
    %v391 = vsel %vm52, %v329, 0
    %393 = vmatprep.subr.mxu0 0.0
    %394 = vmatpush1.msra.mxu0 0.0
    %395 = vmatprep.subr.mxu0 0.0
    %396 = vmatpush1.msra.mxu0 0.0
    %397 = vmatprep.subr.mxu0 0.0
    %398 = vmatpush1.msra.mxu0 0.0
    %399 = vmatprep.subr.mxu0 0.0
    %400 = vmatpush1.msra.mxu0 0.0
    %401 = vmatprep.subr.mxu0 0.0
    %402 = vmatpush1.msra.mxu0 0.0
    %403 = vmatprep.subr.mxu0 0.0
    %404 = vmatpush1.msra.mxu0 0.0
    %405 = vmatprep.subr.mxu0 0.0
    %406 = vmatpush1.msra.mxu0 0.0
    %407 = vmatprep.subr.mxu0 0.0
    %408 = vmatpush1.msra.mxu0 0.0
    %409 = vmatprep.subr.mxu0 0.0
    %410 = vmatpush1.msra.mxu0 %v337
    %411 = vmatprep.subr.mxu0 0.0
    %412 = vmatpush1.msra.mxu0 %v336
    %413 = vmatprep.subr.mxu0 0.0
    %414 = vmatpush1.msra.mxu0 %v335
    %415 = vmatprep.subr.mxu0 0.0
    %416 = vmatpush1.msra.mxu0 %v334
    %417 = vmatprep.subr.mxu0 0.0
    %418 = vmatpush1.msra.mxu0 %v333
    %419 = vmatprep.subr.mxu0 0.0
    %420 = vmatpush1.msra.mxu0 %v332
    %421 = vmatprep.subr.mxu0 0.0
    %422 = vmatpush1.msra.mxu0 %v331
    %423 = vmatprep.subr.mxu0 0.0
    %424 = vmatpush1.msra.mxu0 %v330
    %425 = vmatprep.subr.mxu0 0.0
    %426 = vmatpush2.msra.mxu0 0.0
    %427 = vmatprep.subr.mxu0 0.0
    %428 = vmatpush2.msra.mxu0 0.0
    %429 = vmatprep.subr.mxu0 0.0
    %430 = vmatpush2.msra.mxu0 0.0
    %431 = vmatprep.subr.mxu0 0.0
    %432 = vmatpush2.msra.mxu0 0.0
    %433 = vmatprep.subr.mxu0 0.0
    %434 = vmatpush2.msra.mxu0 0.0
    %435 = vmatprep.subr.mxu0 0.0
    %436 = vmatpush2.msra.mxu0 0.0
    %437 = vmatprep.subr.mxu0 0.0
    %438 = vmatpush2.msra.mxu0 0.0
    %439 = vmatprep.subr.mxu0 0.0
    %440 = vmatpush2.msra.mxu0 0.0
    %441 = vmatprep.subr.mxu0 0.0
    %442 = vmatpush2.msra.mxu0 0.0
    %443 = vmatprep.subr.mxu0 0.0
    %444 = vmatpush2.msra.mxu0 0.0
    %445 = vmatprep.subr.mxu0 0.0
    %446 = vmatpush2.msra.mxu0 0.0
    %447 = vmatprep.subr.mxu0 0.0
    %448 = vmatpush2.msra.mxu0 0.0
    %449 = vmatprep.subr.mxu0 0.0
    %450 = vmatpush2.msra.mxu0 0.0
    %451 = vmatprep.subr.mxu0 0.0
    %452 = vmatpush2.msra.mxu0 0.0
    %453 = vmatprep.subr.mxu0 0.0
    %454 = vmatpush2.msra.mxu0 0.0
    %455 = vmatprep.subr.mxu0 0.0
    %456 = vmatpush2.msra.mxu0 0.0
    %457 = vmatprep.mubr.f32.mxu0 0.0
    %458 = vmatmul.mubr.f32.gmra.mxu0 %v346
    %v459 = vpop.f32.mrf.mxu0
    %v460 = vadd.f32 %v343, %v459
    %v461 = vpop.f32.mrf.mxu0
    %462 = vmatprep.mubr.f32.mxu0 0.0
    %463 = vmatmul.mubr.f32.gmra.mxu0 %v349
    %v464 = vpop.f32.mrf.mxu0
    %v465 = vadd.f32 %v343, %v464
    %v466 = vpop.f32.mrf.mxu0
    %467 = vmatprep.mubr.f32.mxu0 0.0
    %468 = vmatmul.mubr.f32.gmra.mxu0 %v352
    %v469 = vpop.f32.mrf.mxu0
    %v470 = vadd.f32 %v343, %v469
    %v471 = vpop.f32.mrf.mxu0
    %472 = vmatprep.mubr.f32.mxu0 0.0
    %473 = vmatmul.mubr.f32.gmra.mxu0 %v355
    %v474 = vpop.f32.mrf.mxu0
    %v475 = vadd.f32 %v343, %v474
    %v476 = vpop.f32.mrf.mxu0
    %477 = vmatprep.mubr.f32.mxu0 0.0
    %478 = vmatmul.mubr.f32.gmra.mxu0 %v358
    %v479 = vpop.f32.mrf.mxu0
    %v480 = vadd.f32 %v343, %v479
    %v481 = vpop.f32.mrf.mxu0
    %482 = vmatprep.mubr.f32.mxu0 0.0
    %483 = vmatmul.mubr.f32.gmra.mxu0 %v361
    %v484 = vpop.f32.mrf.mxu0
    %v485 = vadd.f32 %v343, %v484
    %v486 = vpop.f32.mrf.mxu0
    %487 = vmatprep.mubr.f32.mxu0 0.0
    %488 = vmatmul.mubr.f32.gmra.mxu0 %v364
    %v489 = vpop.f32.mrf.mxu0
    %v490 = vadd.f32 %v343, %v489
    %v491 = vpop.f32.mrf.mxu0
    %492 = vmatprep.mubr.f32.mxu0 0.0
    %493 = vmatmul.mubr.f32.gmra.mxu0 %v367
    %v494 = vpop.f32.mrf.mxu0
    %v495 = vadd.f32 %v343, %v494
    %v496 = vpop.f32.mrf.mxu0
    %497 = vmatprep.mubr.f32.mxu0 0.0
    %498 = vmatmul.mubr.f32.gmra.mxu0 %v370
    %v499 = vpop.f32.mrf.mxu0
    %v500 = vadd.f32 %v343, %v499
    %v501 = vpop.f32.mrf.mxu0
    %502 = vmatprep.mubr.f32.mxu0 0.0
    %503 = vmatmul.mubr.f32.gmra.mxu0 %v373
    %v504 = vpop.f32.mrf.mxu0
    %v505 = vadd.f32 %v343, %v504
    %v506 = vpop.f32.mrf.mxu0
    %507 = vmatprep.mubr.f32.mxu0 0.0
    %508 = vmatmul.mubr.f32.gmra.mxu0 %v376
    %v509 = vpop.f32.mrf.mxu0
    %v510 = vadd.f32 %v343, %v509
    %v511 = vpop.f32.mrf.mxu0
    %512 = vmatprep.mubr.f32.mxu0 0.0
    %513 = vmatmul.mubr.f32.gmra.mxu0 %v379
    %v514 = vpop.f32.mrf.mxu0
    %v515 = vadd.f32 %v343, %v514
    %v516 = vpop.f32.mrf.mxu0
    %517 = vmatprep.mubr.f32.mxu0 0.0
    %518 = vmatmul.mubr.f32.gmra.mxu0 %v382
    %v519 = vpop.f32.mrf.mxu0
    %v520 = vadd.f32 %v343, %v519
    %v521 = vpop.f32.mrf.mxu0
    %522 = vmatprep.mubr.f32.mxu0 0.0
    %523 = vmatmul.mubr.f32.gmra.mxu0 %v385
    %v524 = vpop.f32.mrf.mxu0
    %v525 = vadd.f32 %v343, %v524
    %v526 = vpop.f32.mrf.mxu0
    %527 = vmatprep.mubr.f32.mxu0 0.0
    %528 = vmatmul.mubr.f32.gmra.mxu0 %v388
    %v529 = vpop.f32.mrf.mxu0
    %v530 = vadd.f32 %v343, %v529
    %v531 = vpop.f32.mrf.mxu0
    %532 = vmatprep.mubr.f32.mxu0 0.0
    %533 = vmatmul.mubr.f32.gmra.mxu0 %v391
    %v534 = vpop.f32.mrf.mxu0
    %v535 = vadd.f32 %v343, %v534
    %v536 = vpop.f32.mrf.mxu0
    %537 = vdwg.mxu0
    %vm538 = vcmp.ge.f32.partialorder %v460, 0.0
    %vm539 = vcmp.ge.f32.partialorder %v465, 0.0
    %vm540 = vcmp.ge.f32.partialorder %v470, 0.0
    %vm541 = vcmp.ge.f32.partialorder %v475, 0.0
    %vm542 = vcmp.ge.f32.partialorder %v480, 0.0
    %vm543 = vcmp.ge.f32.partialorder %v485, 0.0
    %vm544 = vcmp.ge.f32.partialorder %v490, 0.0
    %vm545 = vcmp.ge.f32.partialorder %v495, 0.0
    %vm546 = vcmp.ge.f32.partialorder %v500, 0.0
    %vm547 = vcmp.ge.f32.partialorder %v505, 0.0
    %vm548 = vcmp.ge.f32.partialorder %v510, 0.0
    %vm549 = vcmp.ge.f32.partialorder %v515, 0.0
    %vm550 = vcmp.ge.f32.partialorder %v520, 0.0
    %vm551 = vcmp.ge.f32.partialorder %v525, 0.0
    %vm552 = vcmp.ge.f32.partialorder %v530, 0.0
    %vm553 = vcmp.ge.f32.partialorder %v535, 0.0
    %v554 = vmul.f32 %v460, 0.2
    %v555 = vmul.f32 %v465, 0.2
    %v556 = vmul.f32 %v470, 0.2
    %v557 = vmul.f32 %v475, 0.2
    %v558 = vmul.f32 %v480, 0.2
    %v559 = vmul.f32 %v485, 0.2
    %v560 = vmul.f32 %v490, 0.2
    %v561 = vmul.f32 %v495, 0.2
    %v562 = vmul.f32 %v500, 0.2
    %v563 = vmul.f32 %v505, 0.2
    %v564 = vmul.f32 %v510, 0.2
    %v565 = vmul.f32 %v515, 0.2
    %v566 = vmul.f32 %v520, 0.2
    %v567 = vmul.f32 %v525, 0.2
    %v568 = vmul.f32 %v530, 0.2
    %v569 = vmul.f32 %v535, 0.2
    %v570 = vsel %vm538, %v460, %v554
    %v571 = vsel %vm539, %v465, %v555
    %v572 = vsel %vm540, %v470, %v556
    %v573 = vsel %vm541, %v475, %v557
    %v574 = vsel %vm542, %v480, %v558
    %v575 = vsel %vm543, %v485, %v559
    %v576 = vsel %vm544, %v490, %v560
    %v577 = vsel %vm545, %v495, %v561
    %v578 = vsel %vm546, %v500, %v562
    %v579 = vsel %vm547, %v505, %v563
    %v580 = vsel %vm548, %v510, %v564
    %v581 = vsel %vm549, %v515, %v565
    %v582 = vsel %vm550, %v520, %v566
    %v583 = vsel %vm551, %v525, %v567
    %v584 = vsel %vm552, %v530, %v568
    %v585 = vsel %vm553, %v535, %v569
    %vm586 = vcmask 258048
    %587 = vst.msk [vmem:[#allocation2] sm:$0x1f] %vm586, 0.0
    %588 = vst.msk [vmem:[#allocation2 + $0x8] sm:$0x1f] %vm586, 0.0
    %589 = vst.msk [vmem:[#allocation2 + $0x10] sm:$0x1f] %vm586, 0.0
    %590 = vst.msk [vmem:[#allocation2 + $0x18] sm:$0x1f] %vm586, 0.0
    %591 = vst.msk [vmem:[#allocation2 + $0x20] sm:$0x1f] %vm586, 0.0
    %592 = vst.msk [vmem:[#allocation2 + $0x28] sm:$0x1f] %vm586, 0.0
    %593 = vst.msk [vmem:[#allocation2 + $0x30] sm:$0x1f] %vm586, 0.0
    %594 = vst.msk [vmem:[#allocation2 + $0x38] sm:$0x1f] %vm586, 0.0
    %595 = vst.msk [vmem:[#allocation2 + $0x40] sm:$0x1f] %vm586, 0.0
    %596 = vst.msk [vmem:[#allocation2 + $0x48] sm:$0x1f] %vm586, 0.0
    %597 = vst.msk [vmem:[#allocation2 + $0x50] sm:$0x1f] %vm586, 0.0
    %598 = vst.msk [vmem:[#allocation2 + $0x58] sm:$0x1f] %vm586, 0.0
    %599 = vst.msk [vmem:[#allocation2 + $0x60] sm:$0x1f] %vm586, 0.0
    %600 = vst.msk [vmem:[#allocation2 + $0x68] sm:$0x1f] %vm586, 0.0
    %601 = vst.msk [vmem:[#allocation2 + $0x70] sm:$0x1f] %vm586, 0.0
    %602 = vst.msk [vmem:[#allocation2 + $0x78] sm:$0x1f] %vm586, 0.0
    %603 = vst.msk [vmem:[#allocation2 + $0x80] sm:$0x1f] %vm586, 0.0
    %604 = vst.msk [vmem:[#allocation2 + $0x88] sm:$0x1f] %vm586, 0.0
    %605 = vst.msk [vmem:[#allocation2 + $0x90] sm:$0x1f] %vm586, 0.0
    %606 = vst.msk [vmem:[#allocation2 + $0x98] sm:$0x1f] %vm586, 0.0
    %607 = vst.msk [vmem:[#allocation2 + $0xa0] sm:$0x1f] %vm586, 0.0
    %608 = vst.msk [vmem:[#allocation2 + $0xa8] sm:$0x1f] %vm586, 0.0
    %609 = vst.msk [vmem:[#allocation2 + $0xb0] sm:$0x1f] %vm586, 0.0
    %610 = vst.msk [vmem:[#allocation2 + $0xb8] sm:$0x1f] %vm586, 0.0
    %611 = vst.msk [vmem:[#allocation2 + $0xc0] sm:$0x1f] %vm586, 0.0
    %612 = vst.msk [vmem:[#allocation2 + $0xc8] sm:$0x1f] %vm586, 0.0
    %613 = vst.msk [vmem:[#allocation2 + $0xd0] sm:$0x1f] %vm586, 0.0
    %614 = vst.msk [vmem:[#allocation2 + $0xd8] sm:$0x1f] %vm586, 0.0
    %615 = vst.msk [vmem:[#allocation2 + $0xe0] sm:$0x1f] %vm586, 0.0
    %616 = vst.msk [vmem:[#allocation2 + $0xe8] sm:$0x1f] %vm586, 0.0
    %617 = vst.msk [vmem:[#allocation2 + $0xf0] sm:$0x1f] %vm586, 0.0
    %618 = vst.msk [vmem:[#allocation2 + $0xf8] sm:$0x1f] %vm586, 0.0
    %619 = vst.msk [vmem:[#allocation2 + $0x100] sm:$0x1f] %vm586, 0.0
    %620 = vst.msk [vmem:[#allocation2 + $0x108] sm:$0x1f] %vm586, 0.0
    %621 = vst.msk [vmem:[#allocation2 + $0x110] sm:$0x1f] %vm586, 0.0
    %622 = vst.msk [vmem:[#allocation2 + $0x118] sm:$0x1f] %vm586, 0.0
    %623 = vst.msk [vmem:[#allocation2 + $0x120] sm:$0x1f] %vm586, 0.0
    %624 = vst.msk [vmem:[#allocation2 + $0x128] sm:$0x1f] %vm586, 0.0
    %625 = vst.msk [vmem:[#allocation2 + $0x130] sm:$0x1f] %vm586, 0.0
    %626 = vst.msk [vmem:[#allocation2 + $0x138] sm:$0x1f] %vm586, 0.0
    %vm627 = vcmask 256000
    %628 = vst.msk [vmem:[#allocation3] sm:$0x7] %vm627, 0.0
    %629 = vst.msk [vmem:[#allocation3 + $0x4] sm:$0x7] %vm627, 0.0
    %630 = vst.msk [vmem:[#allocation3 + $0x8] sm:$0x7] %vm627, 0.0
    %631 = vst.msk [vmem:[#allocation3 + $0xc] sm:$0x7] %vm627, 0.0
    %632 = vst.msk [vmem:[#allocation3 + $0x10] sm:$0x7] %vm627, 0.0
    %633 = vst.msk [vmem:[#allocation3 + $0x14] sm:$0x7] %vm627, 0.0
    %634 = vst.msk [vmem:[#allocation3 + $0x18] sm:$0x7] %vm627, 0.0
    %635 = vst.msk [vmem:[#allocation3 + $0x1c] sm:$0x7] %vm627, 0.0
    %636 = vst.msk [vmem:[#allocation3 + $0x20] sm:$0x7] %vm627, 0.0
    %637 = vst.msk [vmem:[#allocation3 + $0x24] sm:$0x7] %vm627, 0.0
    %638 = vst.msk [vmem:[#allocation3 + $0x28] sm:$0x7] %vm627, 0.0
    %639 = vst.msk [vmem:[#allocation3 + $0x2c] sm:$0x7] %vm627, 0.0
    %640 = vst.msk [vmem:[#allocation3 + $0x30] sm:$0x7] %vm627, 0.0
    %641 = vst.msk [vmem:[#allocation3 + $0x34] sm:$0x7] %vm627, 0.0
    %642 = vst.msk [vmem:[#allocation3 + $0x38] sm:$0x7] %vm627, 0.0
    %643 = vst.msk [vmem:[#allocation3 + $0x3c] sm:$0x7] %vm627, 0.0
    %644 = vst.msk [vmem:[#allocation3 + $0x40] sm:$0x7] %vm627, 0.0
    %645 = vst.msk [vmem:[#allocation3 + $0x44] sm:$0x7] %vm627, 0.0
    %646 = vst.msk [vmem:[#allocation3 + $0x48] sm:$0x7] %vm627, 0.0
    %647 = vst.msk [vmem:[#allocation3 + $0x4c] sm:$0x7] %vm627, 0.0
    %648 = vst.msk [vmem:[#allocation3 + $0x50] sm:$0x7] %vm627, 0.0
    %649 = vst.msk [vmem:[#allocation3 + $0x54] sm:$0x7] %vm627, 0.0
    %650 = vst.msk [vmem:[#allocation3 + $0x58] sm:$0x7] %vm627, 0.0
    %651 = vst.msk [vmem:[#allocation3 + $0x5c] sm:$0x7] %vm627, 0.0
    %v668 = vcombine.high %v570, %v570
    %v670 = vunpack.c.l.s4 1983009808
    %v671 = vunpack.c.0.s8 %v670
    %v672 = vlaneseq
    %v673 = vshrl.u32 %v672, 7
    %v674 = vsub.s32 %v671, %v673
    %v675 = vrot.slane %v570, %v674
    %v677 = vunpack.c.l.s4 1983009808
    %v678 = vunpack.c.0.s8 %v677
    %v679 = vlaneseq
    %v680 = vshrl.u32 %v679, 7
    %v681 = vsub.s32 %v678, %v680
    %v682 = vrot.slane %v668, %v681
    %v683 = vcombine.high %v675, %v675
    %v684 = vcombine.high %v682, %v682
    %v685 = vcombine.high %v571, %v571
    %v687 = vunpack.c.l.s4 1983009808
    %v688 = vunpack.c.0.s8 %v687
    %v689 = vlaneseq
    %v690 = vshrl.u32 %v689, 7
    %v691 = vsub.s32 %v688, %v690
    %v692 = vrot.slane %v571, %v691
    %v694 = vunpack.c.l.s4 1983009808
    %v695 = vunpack.c.0.s8 %v694
    %v696 = vlaneseq
    %v697 = vshrl.u32 %v696, 7
    %v698 = vsub.s32 %v695, %v697
    %v699 = vrot.slane %v685, %v698
    %v700 = vcombine.high %v692, %v692
    %v701 = vcombine.high %v699, %v699
    %v702 = vcombine.high %v572, %v572
    %v704 = vunpack.c.l.s4 1983009808
    %v705 = vunpack.c.0.s8 %v704
    %v706 = vlaneseq
    %v707 = vshrl.u32 %v706, 7
    %v708 = vsub.s32 %v705, %v707
    %v709 = vrot.slane %v572, %v708
    %v711 = vunpack.c.l.s4 1983009808
    %v712 = vunpack.c.0.s8 %v711
    %v713 = vlaneseq
    %v714 = vshrl.u32 %v713, 7
    %v715 = vsub.s32 %v712, %v714
    %v716 = vrot.slane %v702, %v715
    %v717 = vcombine.high %v709, %v709
    %v718 = vcombine.high %v716, %v716
    %v719 = vcombine.high %v573, %v573
    %v721 = vunpack.c.l.s4 1983009808
    %v722 = vunpack.c.0.s8 %v721
    %v723 = vlaneseq
    %v724 = vshrl.u32 %v723, 7
    %v725 = vsub.s32 %v722, %v724
    %v726 = vrot.slane %v573, %v725
    %v728 = vunpack.c.l.s4 1983009808
    %v729 = vunpack.c.0.s8 %v728
    %v730 = vlaneseq
    %v731 = vshrl.u32 %v730, 7
    %v732 = vsub.s32 %v729, %v731
    %v733 = vrot.slane %v719, %v732
    %v734 = vcombine.high %v726, %v726
    %v735 = vcombine.high %v733, %v733
    %v736 = vcombine.high %v574, %v574
    %v738 = vunpack.c.l.s4 1983009808
    %v739 = vunpack.c.0.s8 %v738
    %v740 = vlaneseq
    %v741 = vshrl.u32 %v740, 7
    %v742 = vsub.s32 %v739, %v741
    %v743 = vrot.slane %v574, %v742
    %v745 = vunpack.c.l.s4 1983009808
    %v746 = vunpack.c.0.s8 %v745
    %v747 = vlaneseq
    %v748 = vshrl.u32 %v747, 7
    %v749 = vsub.s32 %v746, %v748
    %v750 = vrot.slane %v736, %v749
    %v751 = vcombine.high %v743, %v743
    %v752 = vcombine.high %v750, %v750
    %v753 = vcombine.high %v575, %v575
    %v755 = vunpack.c.l.s4 1983009808
    %v756 = vunpack.c.0.s8 %v755
    %v757 = vlaneseq
    %v758 = vshrl.u32 %v757, 7
    %v759 = vsub.s32 %v756, %v758
    %v760 = vrot.slane %v575, %v759
    %v762 = vunpack.c.l.s4 1983009808
    %v763 = vunpack.c.0.s8 %v762
    %v764 = vlaneseq
    %v765 = vshrl.u32 %v764, 7
    %v766 = vsub.s32 %v763, %v765
    %v767 = vrot.slane %v753, %v766
    %v768 = vcombine.high %v760, %v760
    %v769 = vcombine.high %v767, %v767
    %v770 = vcombine.high %v576, %v576
    %v772 = vunpack.c.l.s4 1983009808
    %v773 = vunpack.c.0.s8 %v772
    %v774 = vlaneseq
    %v775 = vshrl.u32 %v774, 7
    %v776 = vsub.s32 %v773, %v775
    %v777 = vrot.slane %v576, %v776
    %v779 = vunpack.c.l.s4 1983009808
    %v780 = vunpack.c.0.s8 %v779
    %v781 = vlaneseq
    %v782 = vshrl.u32 %v781, 7
    %v783 = vsub.s32 %v780, %v782
    %v784 = vrot.slane %v770, %v783
    %v785 = vcombine.high %v777, %v777
    %v786 = vcombine.high %v784, %v784
    %v787 = vcombine.high %v577, %v577
    %v789 = vunpack.c.l.s4 1983009808
    %v790 = vunpack.c.0.s8 %v789
    %v791 = vlaneseq
    %v792 = vshrl.u32 %v791, 7
    %v793 = vsub.s32 %v790, %v792
    %v794 = vrot.slane %v577, %v793
    %v796 = vunpack.c.l.s4 1983009808
    %v797 = vunpack.c.0.s8 %v796
    %v798 = vlaneseq
    %v799 = vshrl.u32 %v798, 7
    %v800 = vsub.s32 %v797, %v799
    %v801 = vrot.slane %v787, %v800
    %v802 = vcombine.high %v794, %v794
    %v803 = vcombine.high %v801, %v801
    %v804 = vcombine.high %v578, %v578
    %v806 = vunpack.c.l.s4 1983009808
    %v807 = vunpack.c.0.s8 %v806
    %v808 = vlaneseq
    %v809 = vshrl.u32 %v808, 7
    %v810 = vsub.s32 %v807, %v809
    %v811 = vrot.slane %v578, %v810
    %v813 = vunpack.c.l.s4 1983009808
    %v814 = vunpack.c.0.s8 %v813
    %v815 = vlaneseq
    %v816 = vshrl.u32 %v815, 7
    %v817 = vsub.s32 %v814, %v816
    %v818 = vrot.slane %v804, %v817
    %v819 = vcombine.high %v811, %v811
    %v820 = vcombine.high %v818, %v818
    %v821 = vcombine.high %v579, %v579
    %v823 = vunpack.c.l.s4 1983009808
    %v824 = vunpack.c.0.s8 %v823
    %v825 = vlaneseq
    %v826 = vshrl.u32 %v825, 7
    %v827 = vsub.s32 %v824, %v826
    %v828 = vrot.slane %v579, %v827
    %v830 = vunpack.c.l.s4 1983009808
    %v831 = vunpack.c.0.s8 %v830
    %v832 = vlaneseq
    %v833 = vshrl.u32 %v832, 7
    %v834 = vsub.s32 %v831, %v833
    %v835 = vrot.slane %v821, %v834
    %v836 = vcombine.high %v828, %v828
    %v837 = vcombine.high %v835, %v835
    %v838 = vcombine.high %v580, %v580
    %v840 = vunpack.c.l.s4 1983009808
    %v841 = vunpack.c.0.s8 %v840
    %v842 = vlaneseq
    %v843 = vshrl.u32 %v842, 7
    %v844 = vsub.s32 %v841, %v843
    %v845 = vrot.slane %v580, %v844
    %v847 = vunpack.c.l.s4 1983009808
    %v848 = vunpack.c.0.s8 %v847
    %v849 = vlaneseq
    %v850 = vshrl.u32 %v849, 7
    %v851 = vsub.s32 %v848, %v850
    %v852 = vrot.slane %v838, %v851
    %v853 = vcombine.high %v845, %v845
    %v854 = vcombine.high %v852, %v852
    %v855 = vcombine.high %v581, %v581
    %v857 = vunpack.c.l.s4 1983009808
    %v858 = vunpack.c.0.s8 %v857
    %v859 = vlaneseq
    %v860 = vshrl.u32 %v859, 7
    %v861 = vsub.s32 %v858, %v860
    %v862 = vrot.slane %v581, %v861
    %v864 = vunpack.c.l.s4 1983009808
    %v865 = vunpack.c.0.s8 %v864
    %v866 = vlaneseq
    %v867 = vshrl.u32 %v866, 7
    %v868 = vsub.s32 %v865, %v867
    %v869 = vrot.slane %v855, %v868
    %v870 = vcombine.high %v862, %v862
    %v871 = vcombine.high %v869, %v869
    %v872 = vcombine.high %v582, %v582
    %v874 = vunpack.c.l.s4 1983009808
    %v875 = vunpack.c.0.s8 %v874
    %v876 = vlaneseq
    %v877 = vshrl.u32 %v876, 7
    %v878 = vsub.s32 %v875, %v877
    %v879 = vrot.slane %v582, %v878
    %v881 = vunpack.c.l.s4 1983009808
    %v882 = vunpack.c.0.s8 %v881
    %v883 = vlaneseq
    %v884 = vshrl.u32 %v883, 7
    %v885 = vsub.s32 %v882, %v884
    %v886 = vrot.slane %v872, %v885
    %v887 = vcombine.high %v879, %v879
    %v888 = vcombine.high %v886, %v886
    %v889 = vcombine.high %v583, %v583
    %v891 = vunpack.c.l.s4 1983009808
    %v892 = vunpack.c.0.s8 %v891
    %v893 = vlaneseq
    %v894 = vshrl.u32 %v893, 7
    %v895 = vsub.s32 %v892, %v894
    %v896 = vrot.slane %v583, %v895
    %v898 = vunpack.c.l.s4 1983009808
    %v899 = vunpack.c.0.s8 %v898
    %v900 = vlaneseq
    %v901 = vshrl.u32 %v900, 7
    %v902 = vsub.s32 %v899, %v901
    %v903 = vrot.slane %v889, %v902
    %v904 = vcombine.high %v896, %v896
    %v905 = vcombine.high %v903, %v903
    %v906 = vcombine.high %v584, %v584
    %v908 = vunpack.c.l.s4 1983009808
    %v909 = vunpack.c.0.s8 %v908
    %v910 = vlaneseq
    %v911 = vshrl.u32 %v910, 7
    %v912 = vsub.s32 %v909, %v911
    %v913 = vrot.slane %v584, %v912
    %v915 = vunpack.c.l.s4 1983009808
    %v916 = vunpack.c.0.s8 %v915
    %v917 = vlaneseq
    %v918 = vshrl.u32 %v917, 7
    %v919 = vsub.s32 %v916, %v918
    %v920 = vrot.slane %v906, %v919
    %v921 = vcombine.high %v913, %v913
    %v922 = vcombine.high %v920, %v920
    %v923 = vcombine.high %v585, %v585
    %v925 = vunpack.c.l.s4 1983009808
    %v926 = vunpack.c.0.s8 %v925
    %v927 = vlaneseq
    %v928 = vshrl.u32 %v927, 7
    %v929 = vsub.s32 %v926, %v928
    %v930 = vrot.slane %v585, %v929
    %v932 = vunpack.c.l.s4 1983009808
    %v933 = vunpack.c.0.s8 %v932
    %v934 = vlaneseq
    %v935 = vshrl.u32 %v934, 7
    %v936 = vsub.s32 %v933, %v935
    %v937 = vrot.slane %v923, %v936
    %v938 = vcombine.high %v930, %v930
    %v939 = vcombine.high %v937, %v937
    %v940 = vlaneseq
    %v941 = vshrl.u32 %v940, 7
    %v942 = vsub.s32 0, %v941
    %v943 = vrot.slane %v675, %v942
    %v944 = vlaneseq
    %v945 = vshrl.u32 %v944, 7
    %v946 = vsub.s32 0, %v945
    %v947 = vrot.slane %v683, %v946
    %v948 = vlaneseq
    %v949 = vshrl.u32 %v948, 7
    %v950 = vsub.s32 0, %v949
    %v951 = vrot.slane %v682, %v950
    %v952 = vlaneseq
    %v953 = vshrl.u32 %v952, 7
    %v954 = vsub.s32 0, %v953
    %v955 = vrot.slane %v684, %v954
    %v956 = vlaneseq
    %v957 = vshrl.u32 %v956, 7
    %v958 = vsub.s32 0, %v957
    %v959 = vrot.slane %v709, %v958
    %v960 = vlaneseq
    %v961 = vshrl.u32 %v960, 7
    %v962 = vsub.s32 0, %v961
    %v963 = vrot.slane %v717, %v962
    %v964 = vlaneseq
    %v965 = vshrl.u32 %v964, 7
    %v966 = vsub.s32 0, %v965
    %v967 = vrot.slane %v716, %v966
    %v968 = vlaneseq
    %v969 = vshrl.u32 %v968, 7
    %v970 = vsub.s32 0, %v969
    %v971 = vrot.slane %v718, %v970
    %v972 = vlaneseq
    %v973 = vshrl.u32 %v972, 7
    %v974 = vsub.s32 0, %v973
    %v975 = vrot.slane %v743, %v974
    %v976 = vlaneseq
    %v977 = vshrl.u32 %v976, 7
    %v978 = vsub.s32 0, %v977
    %v979 = vrot.slane %v751, %v978
    %v980 = vlaneseq
    %v981 = vshrl.u32 %v980, 7
    %v982 = vsub.s32 0, %v981
    %v983 = vrot.slane %v750, %v982
    %v984 = vlaneseq
    %v985 = vshrl.u32 %v984, 7
    %v986 = vsub.s32 0, %v985
    %v987 = vrot.slane %v752, %v986
    %v988 = vlaneseq
    %v989 = vshrl.u32 %v988, 7
    %v990 = vsub.s32 0, %v989
    %v991 = vrot.slane %v777, %v990
    %v992 = vlaneseq
    %v993 = vshrl.u32 %v992, 7
    %v994 = vsub.s32 0, %v993
    %v995 = vrot.slane %v785, %v994
    %v996 = vlaneseq
    %v997 = vshrl.u32 %v996, 7
    %v998 = vsub.s32 0, %v997
    %v999 = vrot.slane %v784, %v998
    %v1000 = vlaneseq
    %v1001 = vshrl.u32 %v1000, 7
    %v1002 = vsub.s32 0, %v1001
    %v1003 = vrot.slane %v786, %v1002
    %v1004 = vlaneseq
    %v1005 = vshrl.u32 %v1004, 7
    %v1006 = vsub.s32 0, %v1005
    %v1007 = vrot.slane %v811, %v1006
    %v1008 = vlaneseq
    %v1009 = vshrl.u32 %v1008, 7
    %v1010 = vsub.s32 0, %v1009
    %v1011 = vrot.slane %v819, %v1010
    %v1012 = vlaneseq
    %v1013 = vshrl.u32 %v1012, 7
    %v1014 = vsub.s32 0, %v1013
    %v1015 = vrot.slane %v818, %v1014
    %v1016 = vlaneseq
    %v1017 = vshrl.u32 %v1016, 7
    %v1018 = vsub.s32 0, %v1017
    %v1019 = vrot.slane %v820, %v1018
    %v1020 = vlaneseq
    %v1021 = vshrl.u32 %v1020, 7
    %v1022 = vsub.s32 0, %v1021
    %v1023 = vrot.slane %v845, %v1022
    %v1024 = vlaneseq
    %v1025 = vshrl.u32 %v1024, 7
    %v1026 = vsub.s32 0, %v1025
    %v1027 = vrot.slane %v853, %v1026
    %v1028 = vlaneseq
    %v1029 = vshrl.u32 %v1028, 7
    %v1030 = vsub.s32 0, %v1029
    %v1031 = vrot.slane %v852, %v1030
    %v1032 = vlaneseq
    %v1033 = vshrl.u32 %v1032, 7
    %v1034 = vsub.s32 0, %v1033
    %v1035 = vrot.slane %v854, %v1034
    %v1036 = vlaneseq
    %v1037 = vshrl.u32 %v1036, 7
    %v1038 = vsub.s32 0, %v1037
    %v1039 = vrot.slane %v879, %v1038
    %v1040 = vlaneseq
    %v1041 = vshrl.u32 %v1040, 7
    %v1042 = vsub.s32 0, %v1041
    %v1043 = vrot.slane %v887, %v1042
    %v1044 = vlaneseq
    %v1045 = vshrl.u32 %v1044, 7
    %v1046 = vsub.s32 0, %v1045
    %v1047 = vrot.slane %v886, %v1046
    %v1048 = vlaneseq
    %v1049 = vshrl.u32 %v1048, 7
    %v1050 = vsub.s32 0, %v1049
    %v1051 = vrot.slane %v888, %v1050
    %v1052 = vlaneseq
    %v1053 = vshrl.u32 %v1052, 7
    %v1054 = vsub.s32 0, %v1053
    %v1055 = vrot.slane %v913, %v1054
    %v1056 = vlaneseq
    %v1057 = vshrl.u32 %v1056, 7
    %v1058 = vsub.s32 0, %v1057
    %v1059 = vrot.slane %v921, %v1058
    %v1060 = vlaneseq
    %v1061 = vshrl.u32 %v1060, 7
    %v1062 = vsub.s32 0, %v1061
    %v1063 = vrot.slane %v920, %v1062
    %v1064 = vlaneseq
    %v1065 = vshrl.u32 %v1064, 7
    %v1066 = vsub.s32 0, %v1065
    %v1067 = vrot.slane %v922, %v1066
    %vm1068 = vcmask 1041409
    %v1069 = vsel %vm1068, %v947, %v943
    %vm1070 = vcmask 1042434
    %v1071 = vsel %vm1070, %v951, %v1069
    %vm1072 = vcmask 1043459
    %v1073 = vsel %vm1072, %v955, %v1071
    %v1074 = vsel %vm1068, %v963, %v959
    %v1075 = vsel %vm1070, %v967, %v1074
    %v1076 = vsel %vm1072, %v971, %v1075
    %v1077 = vsel %vm1068, %v979, %v975
    %v1078 = vsel %vm1070, %v983, %v1077
    %v1079 = vsel %vm1072, %v987, %v1078
    %v1080 = vsel %vm1068, %v995, %v991
    %v1081 = vsel %vm1070, %v999, %v1080
    %v1082 = vsel %vm1072, %v1003, %v1081
    %v1083 = vsel %vm1068, %v1011, %v1007
    %v1084 = vsel %vm1070, %v1015, %v1083
    %v1085 = vsel %vm1072, %v1019, %v1084
    %v1086 = vsel %vm1068, %v1027, %v1023
    %v1087 = vsel %vm1070, %v1031, %v1086
    %v1088 = vsel %vm1072, %v1035, %v1087
    %v1089 = vsel %vm1068, %v1043, %v1039
    %v1090 = vsel %vm1070, %v1047, %v1089
    %v1091 = vsel %vm1072, %v1051, %v1090
    %v1092 = vsel %vm1068, %v1059, %v1055
    %v1093 = vsel %vm1070, %v1063, %v1092
    %v1094 = vsel %vm1072, %v1067, %v1093
    %s1103 = scalar_lea.vmem [#allocation2], 240
    %vm1104 = vcmask 257024
    %1105 = vst.msk [vmem:[%s1103] sm:$0xf] %vm1104, %v1073
    %1106 = vst.msk [vmem:[%s1103 + $0x8] sm:$0xf] %vm1104, %v1076
    %1107 = vst.msk [vmem:[%s1103 + $0x10] sm:$0xf] %vm1104, %v1079
    %1108 = vst.msk [vmem:[%s1103 + $0x18] sm:$0xf] %vm1104, %v1082
    %1109 = vst.msk [vmem:[%s1103 + $0x28] sm:$0xf] %vm1104, %v1085
    %1110 = vst.msk [vmem:[%s1103 + $0x30] sm:$0xf] %vm1104, %v1088
    %1111 = vst.msk [vmem:[%s1103 + $0x38] sm:$0xf] %vm1104, %v1091
    %1112 = vst.msk [vmem:[%s1103 + $0x40] sm:$0xf] %vm1104, %v1094
    %v1113 = vlaneseq
    %v1114 = vshrl.u32 %v1113, 7
    %v1115 = vsub.s32 1, %v1114
    %v1116 = vrot.slane %v675, %v1115
    %v1117 = vlaneseq
    %v1118 = vshrl.u32 %v1117, 7
    %v1119 = vsub.s32 1, %v1118
    %v1120 = vrot.slane %v683, %v1119
    %v1121 = vlaneseq
    %v1122 = vshrl.u32 %v1121, 7
    %v1123 = vsub.s32 1, %v1122
    %v1124 = vrot.slane %v682, %v1123
    %v1125 = vlaneseq
    %v1126 = vshrl.u32 %v1125, 7
    %v1127 = vsub.s32 1, %v1126
    %v1128 = vrot.slane %v684, %v1127
    %v1129 = vlaneseq
    %v1130 = vshrl.u32 %v1129, 7
    %v1131 = vsub.s32 1, %v1130
    %v1132 = vrot.slane %v709, %v1131
    %v1133 = vlaneseq
    %v1134 = vshrl.u32 %v1133, 7
    %v1135 = vsub.s32 1, %v1134
    %v1136 = vrot.slane %v717, %v1135
    %v1137 = vlaneseq
    %v1138 = vshrl.u32 %v1137, 7
    %v1139 = vsub.s32 1, %v1138
    %v1140 = vrot.slane %v716, %v1139
    %v1141 = vlaneseq
    %v1142 = vshrl.u32 %v1141, 7
    %v1143 = vsub.s32 1, %v1142
    %v1144 = vrot.slane %v718, %v1143
    %v1145 = vlaneseq
    %v1146 = vshrl.u32 %v1145, 7
    %v1147 = vsub.s32 1, %v1146
    %v1148 = vrot.slane %v743, %v1147
    %v1149 = vlaneseq
    %v1150 = vshrl.u32 %v1149, 7
    %v1151 = vsub.s32 1, %v1150
    %v1152 = vrot.slane %v751, %v1151
    %v1153 = vlaneseq
    %v1154 = vshrl.u32 %v1153, 7
    %v1155 = vsub.s32 1, %v1154
    %v1156 = vrot.slane %v750, %v1155
    %v1157 = vlaneseq
    %v1158 = vshrl.u32 %v1157, 7
    %v1159 = vsub.s32 1, %v1158
    %v1160 = vrot.slane %v752, %v1159
    %v1161 = vlaneseq
    %v1162 = vshrl.u32 %v1161, 7
    %v1163 = vsub.s32 1, %v1162
    %v1164 = vrot.slane %v777, %v1163
    %v1165 = vlaneseq
    %v1166 = vshrl.u32 %v1165, 7
    %v1167 = vsub.s32 1, %v1166
    %v1168 = vrot.slane %v785, %v1167
    %v1169 = vlaneseq
    %v1170 = vshrl.u32 %v1169, 7
    %v1171 = vsub.s32 1, %v1170
    %v1172 = vrot.slane %v784, %v1171
    %v1173 = vlaneseq
    %v1174 = vshrl.u32 %v1173, 7
    %v1175 = vsub.s32 1, %v1174
    %v1176 = vrot.slane %v786, %v1175
    %v1177 = vlaneseq
    %v1178 = vshrl.u32 %v1177, 7
    %v1179 = vsub.s32 1, %v1178
    %v1180 = vrot.slane %v811, %v1179
    %v1181 = vlaneseq
    %v1182 = vshrl.u32 %v1181, 7
    %v1183 = vsub.s32 1, %v1182
    %v1184 = vrot.slane %v819, %v1183
    %v1185 = vlaneseq
    %v1186 = vshrl.u32 %v1185, 7
    %v1187 = vsub.s32 1, %v1186
    %v1188 = vrot.slane %v818, %v1187
    %v1189 = vlaneseq
    %v1190 = vshrl.u32 %v1189, 7
    %v1191 = vsub.s32 1, %v1190
    %v1192 = vrot.slane %v820, %v1191
    %v1193 = vlaneseq
    %v1194 = vshrl.u32 %v1193, 7
    %v1195 = vsub.s32 1, %v1194
    %v1196 = vrot.slane %v845, %v1195
    %v1197 = vlaneseq
    %v1198 = vshrl.u32 %v1197, 7
    %v1199 = vsub.s32 1, %v1198
    %v1200 = vrot.slane %v853, %v1199
    %v1201 = vlaneseq
    %v1202 = vshrl.u32 %v1201, 7
    %v1203 = vsub.s32 1, %v1202
    %v1204 = vrot.slane %v852, %v1203
    %v1205 = vlaneseq
    %v1206 = vshrl.u32 %v1205, 7
    %v1207 = vsub.s32 1, %v1206
    %v1208 = vrot.slane %v854, %v1207
    %v1209 = vlaneseq
    %v1210 = vshrl.u32 %v1209, 7
    %v1211 = vsub.s32 1, %v1210
    %v1212 = vrot.slane %v879, %v1211
    %v1213 = vlaneseq
    %v1214 = vshrl.u32 %v1213, 7
    %v1215 = vsub.s32 1, %v1214
    %v1216 = vrot.slane %v887, %v1215
    %v1217 = vlaneseq
    %v1218 = vshrl.u32 %v1217, 7
    %v1219 = vsub.s32 1, %v1218
    %v1220 = vrot.slane %v886, %v1219
    %v1221 = vlaneseq
    %v1222 = vshrl.u32 %v1221, 7
    %v1223 = vsub.s32 1, %v1222
    %v1224 = vrot.slane %v888, %v1223
    %v1225 = vlaneseq
    %v1226 = vshrl.u32 %v1225, 7
    %v1227 = vsub.s32 1, %v1226
    %v1228 = vrot.slane %v913, %v1227
    %v1229 = vlaneseq
    %v1230 = vshrl.u32 %v1229, 7
    %v1231 = vsub.s32 1, %v1230
    %v1232 = vrot.slane %v921, %v1231
    %v1233 = vlaneseq
    %v1234 = vshrl.u32 %v1233, 7
    %v1235 = vsub.s32 1, %v1234
    %v1236 = vrot.slane %v920, %v1235
    %v1237 = vlaneseq
    %v1238 = vshrl.u32 %v1237, 7
    %v1239 = vsub.s32 1, %v1238
    %v1240 = vrot.slane %v922, %v1239
    %v1241 = vsel %vm1070, %v1120, %v1116
    %v1242 = vsel %vm1072, %v1124, %v1241
    %vm1243 = vcmask 1044484
    %v1244 = vsel %vm1243, %v1128, %v1242
    %v1245 = vsel %vm1070, %v1136, %v1132
    %v1246 = vsel %vm1072, %v1140, %v1245
    %v1247 = vsel %vm1243, %v1144, %v1246
    %v1248 = vsel %vm1070, %v1152, %v1148
    %v1249 = vsel %vm1072, %v1156, %v1248
    %v1250 = vsel %vm1243, %v1160, %v1249
    %v1251 = vsel %vm1070, %v1168, %v1164
    %v1252 = vsel %vm1072, %v1172, %v1251
    %v1253 = vsel %vm1243, %v1176, %v1252
    %v1254 = vsel %vm1070, %v1184, %v1180
    %v1255 = vsel %vm1072, %v1188, %v1254
    %v1256 = vsel %vm1243, %v1192, %v1255
    %v1257 = vsel %vm1070, %v1200, %v1196
    %v1258 = vsel %vm1072, %v1204, %v1257
    %v1259 = vsel %vm1243, %v1208, %v1258
    %v1260 = vsel %vm1070, %v1216, %v1212
    %v1261 = vsel %vm1072, %v1220, %v1260
    %v1262 = vsel %vm1243, %v1224, %v1261
    %v1263 = vsel %vm1070, %v1232, %v1228
    %v1264 = vsel %vm1072, %v1236, %v1263
    %v1265 = vsel %vm1243, %v1240, %v1264
    %s1274 = scalar_lea.vmem [#allocation2], 160
    %vm1275 = vcmask 258049
    %1276 = vst.msk [vmem:[%s1274] sm:$0x1e] %vm1275, %v1244
    %1277 = vst.msk [vmem:[%s1274 + $0x8] sm:$0x1e] %vm1275, %v1247
    %1278 = vst.msk [vmem:[%s1274 + $0x10] sm:$0x1e] %vm1275, %v1250
    %1279 = vst.msk [vmem:[%s1274 + $0x18] sm:$0x1e] %vm1275, %v1253
    %1280 = vst.msk [vmem:[%s1274 + $0x28] sm:$0x1e] %vm1275, %v1256
    %1281 = vst.msk [vmem:[%s1274 + $0x30] sm:$0x1e] %vm1275, %v1259
    %1282 = vst.msk [vmem:[%s1274 + $0x38] sm:$0x1e] %vm1275, %v1262
    %1283 = vst.msk [vmem:[%s1274 + $0x40] sm:$0x1e] %vm1275, %v1265
    %v1284 = vlaneseq
    %v1285 = vshrl.u32 %v1284, 7
    %v1286 = vsub.s32 0, %v1285
    %v1287 = vrot.slane %v692, %v1286
    %v1288 = vlaneseq
    %v1289 = vshrl.u32 %v1288, 7
    %v1290 = vsub.s32 0, %v1289
    %v1291 = vrot.slane %v700, %v1290
    %v1292 = vlaneseq
    %v1293 = vshrl.u32 %v1292, 7
    %v1294 = vsub.s32 0, %v1293
    %v1295 = vrot.slane %v699, %v1294
    %v1296 = vlaneseq
    %v1297 = vshrl.u32 %v1296, 7
    %v1298 = vsub.s32 0, %v1297
    %v1299 = vrot.slane %v701, %v1298
    %v1300 = vlaneseq
    %v1301 = vshrl.u32 %v1300, 7
    %v1302 = vsub.s32 0, %v1301
    %v1303 = vrot.slane %v726, %v1302
    %v1304 = vlaneseq
    %v1305 = vshrl.u32 %v1304, 7
    %v1306 = vsub.s32 0, %v1305
    %v1307 = vrot.slane %v734, %v1306
    %v1308 = vlaneseq
    %v1309 = vshrl.u32 %v1308, 7
    %v1310 = vsub.s32 0, %v1309
    %v1311 = vrot.slane %v733, %v1310
    %v1312 = vlaneseq
    %v1313 = vshrl.u32 %v1312, 7
    %v1314 = vsub.s32 0, %v1313
    %v1315 = vrot.slane %v735, %v1314
    %v1316 = vlaneseq
    %v1317 = vshrl.u32 %v1316, 7
    %v1318 = vsub.s32 0, %v1317
    %v1319 = vrot.slane %v760, %v1318
    %v1320 = vlaneseq
    %v1321 = vshrl.u32 %v1320, 7
    %v1322 = vsub.s32 0, %v1321
    %v1323 = vrot.slane %v768, %v1322
    %v1324 = vlaneseq
    %v1325 = vshrl.u32 %v1324, 7
    %v1326 = vsub.s32 0, %v1325
    %v1327 = vrot.slane %v767, %v1326
    %v1328 = vlaneseq
    %v1329 = vshrl.u32 %v1328, 7
    %v1330 = vsub.s32 0, %v1329
    %v1331 = vrot.slane %v769, %v1330
    %v1332 = vlaneseq
    %v1333 = vshrl.u32 %v1332, 7
    %v1334 = vsub.s32 0, %v1333
    %v1335 = vrot.slane %v794, %v1334
    %v1336 = vlaneseq
    %v1337 = vshrl.u32 %v1336, 7
    %v1338 = vsub.s32 0, %v1337
    %v1339 = vrot.slane %v802, %v1338
    %v1340 = vlaneseq
    %v1341 = vshrl.u32 %v1340, 7
    %v1342 = vsub.s32 0, %v1341
    %v1343 = vrot.slane %v801, %v1342
    %v1344 = vlaneseq
    %v1345 = vshrl.u32 %v1344, 7
    %v1346 = vsub.s32 0, %v1345
    %v1347 = vrot.slane %v803, %v1346
    %v1348 = vlaneseq
    %v1349 = vshrl.u32 %v1348, 7
    %v1350 = vsub.s32 0, %v1349
    %v1351 = vrot.slane %v828, %v1350
    %v1352 = vlaneseq
    %v1353 = vshrl.u32 %v1352, 7
    %v1354 = vsub.s32 0, %v1353
    %v1355 = vrot.slane %v836, %v1354
    %v1356 = vlaneseq
    %v1357 = vshrl.u32 %v1356, 7
    %v1358 = vsub.s32 0, %v1357
    %v1359 = vrot.slane %v835, %v1358
    %v1360 = vlaneseq
    %v1361 = vshrl.u32 %v1360, 7
    %v1362 = vsub.s32 0, %v1361
    %v1363 = vrot.slane %v837, %v1362
    %v1364 = vlaneseq
    %v1365 = vshrl.u32 %v1364, 7
    %v1366 = vsub.s32 0, %v1365
    %v1367 = vrot.slane %v862, %v1366
    %v1368 = vlaneseq
    %v1369 = vshrl.u32 %v1368, 7
    %v1370 = vsub.s32 0, %v1369
    %v1371 = vrot.slane %v870, %v1370
    %v1372 = vlaneseq
    %v1373 = vshrl.u32 %v1372, 7
    %v1374 = vsub.s32 0, %v1373
    %v1375 = vrot.slane %v869, %v1374
    %v1376 = vlaneseq
    %v1377 = vshrl.u32 %v1376, 7
    %v1378 = vsub.s32 0, %v1377
    %v1379 = vrot.slane %v871, %v1378
    %v1380 = vlaneseq
    %v1381 = vshrl.u32 %v1380, 7
    %v1382 = vsub.s32 0, %v1381
    %v1383 = vrot.slane %v896, %v1382
    %v1384 = vlaneseq
    %v1385 = vshrl.u32 %v1384, 7
    %v1386 = vsub.s32 0, %v1385
    %v1387 = vrot.slane %v904, %v1386
    %v1388 = vlaneseq
    %v1389 = vshrl.u32 %v1388, 7
    %v1390 = vsub.s32 0, %v1389
    %v1391 = vrot.slane %v903, %v1390
    %v1392 = vlaneseq
    %v1393 = vshrl.u32 %v1392, 7
    %v1394 = vsub.s32 0, %v1393
    %v1395 = vrot.slane %v905, %v1394
    %v1396 = vlaneseq
    %v1397 = vshrl.u32 %v1396, 7
    %v1398 = vsub.s32 0, %v1397
    %v1399 = vrot.slane %v930, %v1398
    %v1400 = vlaneseq
    %v1401 = vshrl.u32 %v1400, 7
    %v1402 = vsub.s32 0, %v1401
    %v1403 = vrot.slane %v938, %v1402
    %v1404 = vlaneseq
    %v1405 = vshrl.u32 %v1404, 7
    %v1406 = vsub.s32 0, %v1405
    %v1407 = vrot.slane %v937, %v1406
    %v1408 = vlaneseq
    %v1409 = vshrl.u32 %v1408, 7
    %v1410 = vsub.s32 0, %v1409
    %v1411 = vrot.slane %v939, %v1410
    %v1412 = vsel %vm1068, %v1291, %v1287
    %v1413 = vsel %vm1070, %v1295, %v1412
    %v1414 = vsel %vm1072, %v1299, %v1413
    %v1415 = vsel %vm1068, %v1307, %v1303
    %v1416 = vsel %vm1070, %v1311, %v1415
    %v1417 = vsel %vm1072, %v1315, %v1416
    %v1418 = vsel %vm1068, %v1323, %v1319
    %v1419 = vsel %vm1070, %v1327, %v1418
    %v1420 = vsel %vm1072, %v1331, %v1419
    %v1421 = vsel %vm1068, %v1339, %v1335
    %v1422 = vsel %vm1070, %v1343, %v1421
    %v1423 = vsel %vm1072, %v1347, %v1422
    %v1424 = vsel %vm1068, %v1355, %v1351
    %v1425 = vsel %vm1070, %v1359, %v1424
    %v1426 = vsel %vm1072, %v1363, %v1425
    %v1427 = vsel %vm1068, %v1371, %v1367
    %v1428 = vsel %vm1070, %v1375, %v1427
    %v1429 = vsel %vm1072, %v1379, %v1428
    %v1430 = vsel %vm1068, %v1387, %v1383
    %v1431 = vsel %vm1070, %v1391, %v1430
    %v1432 = vsel %vm1072, %v1395, %v1431
    %v1433 = vsel %vm1068, %v1403, %v1399
    %v1434 = vsel %vm1070, %v1407, %v1433
    %v1435 = vsel %vm1072, %v1411, %v1434
    %s1444 = scalar_lea.vmem [#allocation2], 88
    %1445 = vst.msk [vmem:[%s1444] sm:$0xf] %vm1104, %v1414
    %1446 = vst.msk [vmem:[%s1444 + $0x8] sm:$0xf] %vm1104, %v1417
    %1447 = vst.msk [vmem:[%s1444 + $0x10] sm:$0xf] %vm1104, %v1420
    %1448 = vst.msk [vmem:[%s1444 + $0x18] sm:$0xf] %vm1104, %v1423
    %1449 = vst.msk [vmem:[%s1444 + $0x28] sm:$0xf] %vm1104, %v1426
    %1450 = vst.msk [vmem:[%s1444 + $0x30] sm:$0xf] %vm1104, %v1429
    %1451 = vst.msk [vmem:[%s1444 + $0x38] sm:$0xf] %vm1104, %v1432
    %1452 = vst.msk [vmem:[%s1444 + $0x40] sm:$0xf] %vm1104, %v1435
    %v1453 = vlaneseq
    %v1454 = vshrl.u32 %v1453, 7
    %v1455 = vsub.s32 1, %v1454
    %v1456 = vrot.slane %v692, %v1455
    %v1457 = vlaneseq
    %v1458 = vshrl.u32 %v1457, 7
    %v1459 = vsub.s32 1, %v1458
    %v1460 = vrot.slane %v700, %v1459
    %v1461 = vlaneseq
    %v1462 = vshrl.u32 %v1461, 7
    %v1463 = vsub.s32 1, %v1462
    %v1464 = vrot.slane %v699, %v1463
    %v1465 = vlaneseq
    %v1466 = vshrl.u32 %v1465, 7
    %v1467 = vsub.s32 1, %v1466
    %v1468 = vrot.slane %v701, %v1467
    %v1469 = vlaneseq
    %v1470 = vshrl.u32 %v1469, 7
    %v1471 = vsub.s32 1, %v1470
    %v1472 = vrot.slane %v726, %v1471
    %v1473 = vlaneseq
    %v1474 = vshrl.u32 %v1473, 7
    %v1475 = vsub.s32 1, %v1474
    %v1476 = vrot.slane %v734, %v1475
    %v1477 = vlaneseq
    %v1478 = vshrl.u32 %v1477, 7
    %v1479 = vsub.s32 1, %v1478
    %v1480 = vrot.slane %v733, %v1479
    %v1481 = vlaneseq
    %v1482 = vshrl.u32 %v1481, 7
    %v1483 = vsub.s32 1, %v1482
    %v1484 = vrot.slane %v735, %v1483
    %v1485 = vlaneseq
    %v1486 = vshrl.u32 %v1485, 7
    %v1487 = vsub.s32 1, %v1486
    %v1488 = vrot.slane %v760, %v1487
    %v1489 = vlaneseq
    %v1490 = vshrl.u32 %v1489, 7
    %v1491 = vsub.s32 1, %v1490
    %v1492 = vrot.slane %v768, %v1491
    %v1493 = vlaneseq
    %v1494 = vshrl.u32 %v1493, 7
    %v1495 = vsub.s32 1, %v1494
    %v1496 = vrot.slane %v767, %v1495
    %v1497 = vlaneseq
    %v1498 = vshrl.u32 %v1497, 7
    %v1499 = vsub.s32 1, %v1498
    %v1500 = vrot.slane %v769, %v1499
    %v1501 = vlaneseq
    %v1502 = vshrl.u32 %v1501, 7
    %v1503 = vsub.s32 1, %v1502
    %v1504 = vrot.slane %v794, %v1503
    %v1505 = vlaneseq
    %v1506 = vshrl.u32 %v1505, 7
    %v1507 = vsub.s32 1, %v1506
    %v1508 = vrot.slane %v802, %v1507
    %v1509 = vlaneseq
    %v1510 = vshrl.u32 %v1509, 7
    %v1511 = vsub.s32 1, %v1510
    %v1512 = vrot.slane %v801, %v1511
    %v1513 = vlaneseq
    %v1514 = vshrl.u32 %v1513, 7
    %v1515 = vsub.s32 1, %v1514
    %v1516 = vrot.slane %v803, %v1515
    %v1517 = vlaneseq
    %v1518 = vshrl.u32 %v1517, 7
    %v1519 = vsub.s32 1, %v1518
    %v1520 = vrot.slane %v828, %v1519
    %v1521 = vlaneseq
    %v1522 = vshrl.u32 %v1521, 7
    %v1523 = vsub.s32 1, %v1522
    %v1524 = vrot.slane %v836, %v1523
    %v1525 = vlaneseq
    %v1526 = vshrl.u32 %v1525, 7
    %v1527 = vsub.s32 1, %v1526
    %v1528 = vrot.slane %v835, %v1527
    %v1529 = vlaneseq
    %v1530 = vshrl.u32 %v1529, 7
    %v1531 = vsub.s32 1, %v1530
    %v1532 = vrot.slane %v837, %v1531
    %v1533 = vlaneseq
    %v1534 = vshrl.u32 %v1533, 7
    %v1535 = vsub.s32 1, %v1534
    %v1536 = vrot.slane %v862, %v1535
    %v1537 = vlaneseq
    %v1538 = vshrl.u32 %v1537, 7
    %v1539 = vsub.s32 1, %v1538
    %v1540 = vrot.slane %v870, %v1539
    %v1541 = vlaneseq
    %v1542 = vshrl.u32 %v1541, 7
    %v1543 = vsub.s32 1, %v1542
    %v1544 = vrot.slane %v869, %v1543
    %v1545 = vlaneseq
    %v1546 = vshrl.u32 %v1545, 7
    %v1547 = vsub.s32 1, %v1546
    %v1548 = vrot.slane %v871, %v1547
    %v1549 = vlaneseq
    %v1550 = vshrl.u32 %v1549, 7
    %v1551 = vsub.s32 1, %v1550
    %v1552 = vrot.slane %v896, %v1551
    %v1553 = vlaneseq
    %v1554 = vshrl.u32 %v1553, 7
    %v1555 = vsub.s32 1, %v1554
    %v1556 = vrot.slane %v904, %v1555
    %v1557 = vlaneseq
    %v1558 = vshrl.u32 %v1557, 7
    %v1559 = vsub.s32 1, %v1558
    %v1560 = vrot.slane %v903, %v1559
    %v1561 = vlaneseq
    %v1562 = vshrl.u32 %v1561, 7
    %v1563 = vsub.s32 1, %v1562
    %v1564 = vrot.slane %v905, %v1563
    %v1565 = vlaneseq
    %v1566 = vshrl.u32 %v1565, 7
    %v1567 = vsub.s32 1, %v1566
    %v1568 = vrot.slane %v930, %v1567
    %v1569 = vlaneseq
    %v1570 = vshrl.u32 %v1569, 7
    %v1571 = vsub.s32 1, %v1570
    %v1572 = vrot.slane %v938, %v1571
    %v1573 = vlaneseq
    %v1574 = vshrl.u32 %v1573, 7
    %v1575 = vsub.s32 1, %v1574
    %v1576 = vrot.slane %v937, %v1575
    %v1577 = vlaneseq
    %v1578 = vshrl.u32 %v1577, 7
    %v1579 = vsub.s32 1, %v1578
    %v1580 = vrot.slane %v939, %v1579
    %v1581 = vsel %vm1070, %v1460, %v1456
    %v1582 = vsel %vm1072, %v1464, %v1581
    %v1583 = vsel %vm1243, %v1468, %v1582
    %v1584 = vsel %vm1070, %v1476, %v1472
    %v1585 = vsel %vm1072, %v1480, %v1584
    %v1586 = vsel %vm1243, %v1484, %v1585
    %v1587 = vsel %vm1070, %v1492, %v1488
    %v1588 = vsel %vm1072, %v1496, %v1587
    %v1589 = vsel %vm1243, %v1500, %v1588
    %v1590 = vsel %vm1070, %v1508, %v1504
    %v1591 = vsel %vm1072, %v1512, %v1590
    %v1592 = vsel %vm1243, %v1516, %v1591
    %v1593 = vsel %vm1070, %v1524, %v1520
    %v1594 = vsel %vm1072, %v1528, %v1593
    %v1595 = vsel %vm1243, %v1532, %v1594
    %v1596 = vsel %vm1070, %v1540, %v1536
    %v1597 = vsel %vm1072, %v1544, %v1596
    %v1598 = vsel %vm1243, %v1548, %v1597
    %v1599 = vsel %vm1070, %v1556, %v1552
    %v1600 = vsel %vm1072, %v1560, %v1599
    %v1601 = vsel %vm1243, %v1564, %v1600
    %v1602 = vsel %vm1070, %v1572, %v1568
    %v1603 = vsel %vm1072, %v1576, %v1602
    %v1604 = vsel %vm1243, %v1580, %v1603
    %s1613 = scalar_lea.vmem [#allocation2], 8
    %1614 = vst.msk [vmem:[%s1613] sm:$0x1e] %vm1275, %v1583
    %1615 = vst.msk [vmem:[%s1613 + $0x8] sm:$0x1e] %vm1275, %v1586
    %1616 = vst.msk [vmem:[%s1613 + $0x10] sm:$0x1e] %vm1275, %v1589
    %1617 = vst.msk [vmem:[%s1613 + $0x18] sm:$0x1e] %vm1275, %v1592
    %1618 = vst.msk [vmem:[%s1613 + $0x28] sm:$0x1e] %vm1275, %v1595
    %1619 = vst.msk [vmem:[%s1613 + $0x30] sm:$0x1e] %vm1275, %v1598
    %1620 = vst.msk [vmem:[%s1613 + $0x38] sm:$0x1e] %vm1275, %v1601
    %1621 = vst.msk [vmem:[%s1613 + $0x40] sm:$0x1e] %vm1275, %v1604
    %s1622 = scalar_lea.vmem %s4, 1
    %v1623 = vld [vmem:[%s1622] sm:$0x1]
    %v1624 = vld [vmem:[#allocation2] sm:$0xf]
    %v1625 = vld [vmem:[#allocation2 + $0x8] sm:$0xf]
    %v1626 = vld [vmem:[#allocation2 + $0x10] sm:$0xf]
    %v1627 = vld [vmem:[#allocation2 + $0x18] sm:$0xf]
    %v1628 = vld [vmem:[#allocation2 + $0x28] sm:$0xf]
    %v1629 = vld [vmem:[#allocation2 + $0x30] sm:$0xf]
    %v1630 = vld [vmem:[#allocation2 + $0x38] sm:$0xf]
    %v1631 = vld [vmem:[#allocation2 + $0x40] sm:$0xf]
    %v1632 = vld [vmem:[#allocation2 + $0x1] sm:$0xf]
    %v1633 = vld [vmem:[#allocation2 + $0x9] sm:$0xf]
    %v1634 = vld [vmem:[#allocation2 + $0x11] sm:$0xf]
    %v1635 = vld [vmem:[#allocation2 + $0x19] sm:$0xf]
    %v1636 = vld [vmem:[#allocation2 + $0x29] sm:$0xf]
    %v1637 = vld [vmem:[#allocation2 + $0x31] sm:$0xf]
    %v1638 = vld [vmem:[#allocation2 + $0x39] sm:$0xf]
    %v1639 = vld [vmem:[#allocation2 + $0x41] sm:$0xf]
    %v1640 = vld [vmem:[%s1613] sm:$0xf]
    %v1641 = vld [vmem:[%s1613 + $0x8] sm:$0xf]
    %v1642 = vld [vmem:[%s1613 + $0x10] sm:$0xf]
    %v1643 = vld [vmem:[%s1613 + $0x18] sm:$0xf]
    %v1644 = vld [vmem:[%s1613 + $0x28] sm:$0xf]
    %v1645 = vld [vmem:[%s1613 + $0x30] sm:$0xf]
    %v1646 = vld [vmem:[%s1613 + $0x38] sm:$0xf]
    %v1647 = vld [vmem:[%s1613 + $0x40] sm:$0xf]
    %v1648 = vld [vmem:[%s1613 + $0x1] sm:$0xf]
    %v1649 = vld [vmem:[%s1613 + $0x9] sm:$0xf]
    %v1650 = vld [vmem:[%s1613 + $0x11] sm:$0xf]
    %v1651 = vld [vmem:[%s1613 + $0x19] sm:$0xf]
    %v1652 = vld [vmem:[%s1613 + $0x29] sm:$0xf]
    %v1653 = vld [vmem:[%s1613 + $0x31] sm:$0xf]
    %v1654 = vld [vmem:[%s1613 + $0x39] sm:$0xf]
    %v1655 = vld [vmem:[%s1613 + $0x41] sm:$0xf]
    %1664 = vrot.lane.b32.xlu0 %v1632, 32
    %v1665 = vpop.permute.xlu0 %1664
    %1666 = vrot.lane.b32.xlu0 %v1633, 32
    %v1667 = vpop.permute.xlu0 %1666
    %1668 = vrot.lane.b32.xlu0 %v1634, 32
    %v1669 = vpop.permute.xlu0 %1668
    %1670 = vrot.lane.b32.xlu0 %v1635, 32
    %v1671 = vpop.permute.xlu0 %1670
    %1672 = vrot.lane.b32.xlu0 %v1636, 32
    %v1673 = vpop.permute.xlu0 %1672
    %1674 = vrot.lane.b32.xlu0 %v1637, 32
    %v1675 = vpop.permute.xlu0 %1674
    %1676 = vrot.lane.b32.xlu0 %v1638, 32
    %v1677 = vpop.permute.xlu0 %1676
    %1678 = vrot.lane.b32.xlu0 %v1639, 32
    %v1679 = vpop.permute.xlu0 %1678
    %1696 = vrot.lane.b32.xlu0 %v1640, 64
    %v1697 = vpop.permute.xlu0 %1696
    %1698 = vrot.lane.b32.xlu0 %v1641, 64
    %v1699 = vpop.permute.xlu0 %1698
    %1700 = vrot.lane.b32.xlu0 %v1642, 64
    %v1701 = vpop.permute.xlu0 %1700
    %1702 = vrot.lane.b32.xlu0 %v1643, 64
    %v1703 = vpop.permute.xlu0 %1702
    %1704 = vrot.lane.b32.xlu0 %v1644, 64
    %v1705 = vpop.permute.xlu0 %1704
    %1706 = vrot.lane.b32.xlu0 %v1645, 64
    %v1707 = vpop.permute.xlu0 %1706
    %1708 = vrot.lane.b32.xlu0 %v1646, 64
    %v1709 = vpop.permute.xlu0 %1708
    %1710 = vrot.lane.b32.xlu0 %v1647, 64
    %v1711 = vpop.permute.xlu0 %1710
    %1728 = vrot.lane.b32.xlu0 %v1648, 96
    %v1729 = vpop.permute.xlu0 %1728
    %1730 = vrot.lane.b32.xlu0 %v1649, 96
    %v1731 = vpop.permute.xlu0 %1730
    %1732 = vrot.lane.b32.xlu0 %v1650, 96
    %v1733 = vpop.permute.xlu0 %1732
    %1734 = vrot.lane.b32.xlu0 %v1651, 96
    %v1735 = vpop.permute.xlu0 %1734
    %1736 = vrot.lane.b32.xlu0 %v1652, 96
    %v1737 = vpop.permute.xlu0 %1736
    %1738 = vrot.lane.b32.xlu0 %v1653, 96
    %v1739 = vpop.permute.xlu0 %1738
    %1740 = vrot.lane.b32.xlu0 %v1654, 96
    %v1741 = vpop.permute.xlu0 %1740
    %1742 = vrot.lane.b32.xlu0 %v1655, 96
    %v1743 = vpop.permute.xlu0 %1742
    %vm1752 = vcmask 261120
    %v1753 = vsel %vm1752, %v1624, %v1665
    %v1754 = vsel %vm1752, %v1625, %v1667
    %v1755 = vsel %vm1752, %v1626, %v1669
    %v1756 = vsel %vm1752, %v1627, %v1671
    %v1757 = vsel %vm1752, %v1628, %v1673
    %v1758 = vsel %vm1752, %v1629, %v1675
    %v1759 = vsel %vm1752, %v1630, %v1677
    %v1760 = vsel %vm1752, %v1631, %v1679
    %v1761 = vsel %vm52, %v1753, %v1697
    %v1762 = vsel %vm52, %v1754, %v1699
    %v1763 = vsel %vm52, %v1755, %v1701
    %v1764 = vsel %vm52, %v1756, %v1703
    %v1765 = vsel %vm52, %v1757, %v1705
    %v1766 = vsel %vm52, %v1758, %v1707
    %v1767 = vsel %vm52, %v1759, %v1709
    %v1768 = vsel %vm52, %v1760, %v1711
    %vm1769 = vcmask 785408
    %v1770 = vsel %vm1769, %v1761, %v1729
    %v1771 = vsel %vm1769, %v1762, %v1731
    %v1772 = vsel %vm1769, %v1763, %v1733
    %v1773 = vsel %vm1769, %v1764, %v1735
    %v1774 = vsel %vm1769, %v1765, %v1737
    %v1775 = vsel %vm1769, %v1766, %v1739
    %v1776 = vsel %vm1769, %v1767, %v1741
    %v1777 = vsel %vm1769, %v1768, %v1743
    %v1778 = vld [vmem:[%s3] sm:$0xff]
    %v1779 = vld [vmem:[%s3 + $0x8] sm:$0xff]
    %v1780 = vld [vmem:[%s3 + $0x10] sm:$0xff]
    %v1781 = vld [vmem:[%s3 + $0x18] sm:$0xff]
    %v1782 = vld [vmem:[%s3 + $0x20] sm:$0xff]
    %v1783 = vld [vmem:[%s3 + $0x28] sm:$0xff]
    %v1784 = vld [vmem:[%s3 + $0x30] sm:$0xff]
    %v1785 = vld [vmem:[%s3 + $0x38] sm:$0xff]
    %v1786 = vld [vmem:[%s3 + $0x40] sm:$0xff]
    %v1787 = vld [vmem:[%s3 + $0x48] sm:$0xff]
    %v1788 = vld [vmem:[%s3 + $0x50] sm:$0xff]
    %v1789 = vld [vmem:[%s3 + $0x58] sm:$0xff]
    %v1790 = vld [vmem:[%s3 + $0x60] sm:$0xff]
    %v1791 = vld [vmem:[%s3 + $0x68] sm:$0xff]
    %v1792 = vld [vmem:[%s3 + $0x70] sm:$0xff]
    %v1793 = vld [vmem:[%s3 + $0x78] sm:$0xff]
    %s1794 = scalar_lea.vmem [#allocation2], 80
    %v1795 = vld [vmem:[%s1794] sm:$0xf]
    %v1796 = vld [vmem:[%s1794 + $0x8] sm:$0xf]
    %v1797 = vld [vmem:[%s1794 + $0x10] sm:$0xf]
    %v1798 = vld [vmem:[%s1794 + $0x18] sm:$0xf]
    %v1799 = vld [vmem:[%s1794 + $0x28] sm:$0xf]
    %v1800 = vld [vmem:[%s1794 + $0x30] sm:$0xf]
    %v1801 = vld [vmem:[%s1794 + $0x38] sm:$0xf]
    %v1802 = vld [vmem:[%s1794 + $0x40] sm:$0xf]
    %v1803 = vld [vmem:[%s1794 + $0x1] sm:$0xf]
    %v1804 = vld [vmem:[%s1794 + $0x9] sm:$0xf]
    %v1805 = vld [vmem:[%s1794 + $0x11] sm:$0xf]
    %v1806 = vld [vmem:[%s1794 + $0x19] sm:$0xf]
    %v1807 = vld [vmem:[%s1794 + $0x29] sm:$0xf]
    %v1808 = vld [vmem:[%s1794 + $0x31] sm:$0xf]
    %v1809 = vld [vmem:[%s1794 + $0x39] sm:$0xf]
    %v1810 = vld [vmem:[%s1794 + $0x41] sm:$0xf]
    %v1811 = vld [vmem:[%s1444] sm:$0xf]
    %v1812 = vld [vmem:[%s1444 + $0x8] sm:$0xf]
    %v1813 = vld [vmem:[%s1444 + $0x10] sm:$0xf]
    %v1814 = vld [vmem:[%s1444 + $0x18] sm:$0xf]
    %v1815 = vld [vmem:[%s1444 + $0x28] sm:$0xf]
    %v1816 = vld [vmem:[%s1444 + $0x30] sm:$0xf]
    %v1817 = vld [vmem:[%s1444 + $0x38] sm:$0xf]
    %v1818 = vld [vmem:[%s1444 + $0x40] sm:$0xf]
    %v1819 = vld [vmem:[%s1444 + $0x1] sm:$0xf]
    %v1820 = vld [vmem:[%s1444 + $0x9] sm:$0xf]
    %v1821 = vld [vmem:[%s1444 + $0x11] sm:$0xf]
    %v1822 = vld [vmem:[%s1444 + $0x19] sm:$0xf]
    %v1823 = vld [vmem:[%s1444 + $0x29] sm:$0xf]
    %v1824 = vld [vmem:[%s1444 + $0x31] sm:$0xf]
    %v1825 = vld [vmem:[%s1444 + $0x39] sm:$0xf]
    %v1826 = vld [vmem:[%s1444 + $0x41] sm:$0xf]
    %1835 = vrot.lane.b32.xlu0 %v1803, 32
    %v1836 = vpop.permute.xlu0 %1835
    %1837 = vrot.lane.b32.xlu0 %v1804, 32
    %v1838 = vpop.permute.xlu0 %1837
    %1839 = vrot.lane.b32.xlu0 %v1805, 32
    %v1840 = vpop.permute.xlu0 %1839
    %1841 = vrot.lane.b32.xlu0 %v1806, 32
    %v1842 = vpop.permute.xlu0 %1841
    %1843 = vrot.lane.b32.xlu0 %v1807, 32
    %v1844 = vpop.permute.xlu0 %1843
    %1845 = vrot.lane.b32.xlu0 %v1808, 32
    %v1846 = vpop.permute.xlu0 %1845
    %1847 = vrot.lane.b32.xlu0 %v1809, 32
    %v1848 = vpop.permute.xlu0 %1847
    %1849 = vrot.lane.b32.xlu0 %v1810, 32
    %v1850 = vpop.permute.xlu0 %1849
    %1867 = vrot.lane.b32.xlu0 %v1811, 64
    %v1868 = vpop.permute.xlu0 %1867
    %1869 = vrot.lane.b32.xlu0 %v1812, 64
    %v1870 = vpop.permute.xlu0 %1869
    %1871 = vrot.lane.b32.xlu0 %v1813, 64
    %v1872 = vpop.permute.xlu0 %1871
    %1873 = vrot.lane.b32.xlu0 %v1814, 64
    %v1874 = vpop.permute.xlu0 %1873
    %1875 = vrot.lane.b32.xlu0 %v1815, 64
    %v1876 = vpop.permute.xlu0 %1875
    %1877 = vrot.lane.b32.xlu0 %v1816, 64
    %v1878 = vpop.permute.xlu0 %1877
    %1879 = vrot.lane.b32.xlu0 %v1817, 64
    %v1880 = vpop.permute.xlu0 %1879
    %1881 = vrot.lane.b32.xlu0 %v1818, 64
    %v1882 = vpop.permute.xlu0 %1881
    %1899 = vrot.lane.b32.xlu0 %v1819, 96
    %v1900 = vpop.permute.xlu0 %1899
    %1901 = vrot.lane.b32.xlu0 %v1820, 96
    %v1902 = vpop.permute.xlu0 %1901
    %1903 = vrot.lane.b32.xlu0 %v1821, 96
    %v1904 = vpop.permute.xlu0 %1903
    %1905 = vrot.lane.b32.xlu0 %v1822, 96
    %v1906 = vpop.permute.xlu0 %1905
    %1907 = vrot.lane.b32.xlu0 %v1823, 96
    %v1908 = vpop.permute.xlu0 %1907
    %1909 = vrot.lane.b32.xlu0 %v1824, 96
    %v1910 = vpop.permute.xlu0 %1909
    %1911 = vrot.lane.b32.xlu0 %v1825, 96
    %v1912 = vpop.permute.xlu0 %1911
    %1913 = vrot.lane.b32.xlu0 %v1826, 96
    %v1914 = vpop.permute.xlu0 %1913
    %v1923 = vsel %vm1752, %v1795, %v1836
    %v1924 = vsel %vm1752, %v1796, %v1838
    %v1925 = vsel %vm1752, %v1797, %v1840
    %v1926 = vsel %vm1752, %v1798, %v1842
    %v1927 = vsel %vm1752, %v1799, %v1844
    %v1928 = vsel %vm1752, %v1800, %v1846
    %v1929 = vsel %vm1752, %v1801, %v1848
    %v1930 = vsel %vm1752, %v1802, %v1850
    %v1931 = vsel %vm52, %v1923, %v1868
    %v1932 = vsel %vm52, %v1924, %v1870
    %v1933 = vsel %vm52, %v1925, %v1872
    %v1934 = vsel %vm52, %v1926, %v1874
    %v1935 = vsel %vm52, %v1927, %v1876
    %v1936 = vsel %vm52, %v1928, %v1878
    %v1937 = vsel %vm52, %v1929, %v1880
    %v1938 = vsel %vm52, %v1930, %v1882
    %v1939 = vsel %vm1769, %v1931, %v1900
    %v1940 = vsel %vm1769, %v1932, %v1902
    %v1941 = vsel %vm1769, %v1933, %v1904
    %v1942 = vsel %vm1769, %v1934, %v1906
    %v1943 = vsel %vm1769, %v1935, %v1908
    %v1944 = vsel %vm1769, %v1936, %v1910
    %v1945 = vsel %vm1769, %v1937, %v1912
    %v1946 = vsel %vm1769, %v1938, %v1914
    %s1947 = scalar_lea.vmem %s3, 128
    %v1948 = vld [vmem:[%s1947] sm:$0xff]
    %v1949 = vld [vmem:[%s1947 + $0x8] sm:$0xff]
    %v1950 = vld [vmem:[%s1947 + $0x10] sm:$0xff]
    %v1951 = vld [vmem:[%s1947 + $0x18] sm:$0xff]
    %v1952 = vld [vmem:[%s1947 + $0x20] sm:$0xff]
    %v1953 = vld [vmem:[%s1947 + $0x28] sm:$0xff]
    %v1954 = vld [vmem:[%s1947 + $0x30] sm:$0xff]
    %v1955 = vld [vmem:[%s1947 + $0x38] sm:$0xff]
    %v1956 = vld [vmem:[%s1947 + $0x40] sm:$0xff]
    %v1957 = vld [vmem:[%s1947 + $0x48] sm:$0xff]
    %v1958 = vld [vmem:[%s1947 + $0x50] sm:$0xff]
    %v1959 = vld [vmem:[%s1947 + $0x58] sm:$0xff]
    %v1960 = vld [vmem:[%s1947 + $0x60] sm:$0xff]
    %v1961 = vld [vmem:[%s1947 + $0x68] sm:$0xff]
    %v1962 = vld [vmem:[%s1947 + $0x70] sm:$0xff]
    %v1963 = vld [vmem:[%s1947 + $0x78] sm:$0xff]
    %v1972 = vcombine.low %v1939, %v1940
    %v1973 = vcombine.low %v1941, %v1942
    %v1974 = vcombine.low %v1943, %v1944
    %v1975 = vcombine.low %v1945, %v1946
    %1980 = vmatprep.subr.mxu0 0.0
    %1981 = vmatpush1.msra.mxu0 %v1963
    %1982 = vmatprep.subr.mxu0 0.0
    %1983 = vmatpush1.msra.mxu0 %v1962
    %1984 = vmatprep.subr.mxu0 0.0
    %1985 = vmatpush1.msra.mxu0 %v1961
    %1986 = vmatprep.subr.mxu0 0.0
    %1987 = vmatpush1.msra.mxu0 %v1960
    %1988 = vmatprep.subr.mxu0 0.0
    %1989 = vmatpush1.msra.mxu0 %v1959
    %1990 = vmatprep.subr.mxu0 0.0
    %1991 = vmatpush1.msra.mxu0 %v1958
    %1992 = vmatprep.subr.mxu0 0.0
    %1993 = vmatpush1.msra.mxu0 %v1957
    %1994 = vmatprep.subr.mxu0 0.0
    %1995 = vmatpush1.msra.mxu0 %v1956
    %1996 = vmatprep.subr.mxu0 0.0
    %1997 = vmatpush1.msra.mxu0 %v1955
    %1998 = vmatprep.subr.mxu0 0.0
    %1999 = vmatpush1.msra.mxu0 %v1954
    %2000 = vmatprep.subr.mxu0 0.0
    %2001 = vmatpush1.msra.mxu0 %v1953
    %2002 = vmatprep.subr.mxu0 0.0
    %2003 = vmatpush1.msra.mxu0 %v1952
    %2004 = vmatprep.subr.mxu0 0.0
    %2005 = vmatpush1.msra.mxu0 %v1951
    %2006 = vmatprep.subr.mxu0 0.0
    %2007 = vmatpush1.msra.mxu0 %v1950
    %2008 = vmatprep.subr.mxu0 0.0
    %2009 = vmatpush1.msra.mxu0 %v1949
    %2010 = vmatprep.subr.mxu0 0.0
    %2011 = vmatpush1.msra.mxu0 %v1948
    %2012 = vmatprep.subr.mxu0 0.0
    %2013 = vmatpush2.msra.mxu0 0.0
    %2014 = vmatprep.subr.mxu0 0.0
    %2015 = vmatpush2.msra.mxu0 0.0
    %2016 = vmatprep.subr.mxu0 0.0
    %2017 = vmatpush2.msra.mxu0 0.0
    %2018 = vmatprep.subr.mxu0 0.0
    %2019 = vmatpush2.msra.mxu0 0.0
    %2020 = vmatprep.subr.mxu0 0.0
    %2021 = vmatpush2.msra.mxu0 0.0
    %2022 = vmatprep.subr.mxu0 0.0
    %2023 = vmatpush2.msra.mxu0 0.0
    %2024 = vmatprep.subr.mxu0 0.0
    %2025 = vmatpush2.msra.mxu0 0.0
    %2026 = vmatprep.subr.mxu0 0.0
    %2027 = vmatpush2.msra.mxu0 0.0
    %2028 = vmatprep.subr.mxu0 0.0
    %2029 = vmatpush2.msra.mxu0 0.0
    %2030 = vmatprep.subr.mxu0 0.0
    %2031 = vmatpush2.msra.mxu0 0.0
    %2032 = vmatprep.subr.mxu0 0.0
    %2033 = vmatpush2.msra.mxu0 0.0
    %2034 = vmatprep.subr.mxu0 0.0
    %2035 = vmatpush2.msra.mxu0 0.0
    %2036 = vmatprep.subr.mxu0 0.0
    %2037 = vmatpush2.msra.mxu0 0.0
    %2038 = vmatprep.subr.mxu0 0.0
    %2039 = vmatpush2.msra.mxu0 0.0
    %2040 = vmatprep.subr.mxu0 0.0
    %2041 = vmatpush2.msra.mxu0 0.0
    %2042 = vmatprep.subr.mxu0 0.0
    %2043 = vmatpush2.msra.mxu0 0.0
    %2044 = vmatprep.mubr.f32.mxu0 0.0
    %2045 = vmatmul.mubr.f32.gmra.mxu0 %v1972
    %v2046 = vpop.f32.mrf.mxu0
    %v2047 = vadd.f32 0.0, %v2046
    %v2048 = vpop.f32.mrf.mxu0
    %2049 = vmatprep.mubr.f32.mxu0 0.0
    %2050 = vmatmul.mubr.f32.gmra.mxu0 %v1973
    %v2051 = vpop.f32.mrf.mxu0
    %v2052 = vadd.f32 0.0, %v2051
    %v2053 = vpop.f32.mrf.mxu0
    %2054 = vmatprep.mubr.f32.mxu0 0.0
    %2055 = vmatmul.mubr.f32.gmra.mxu0 %v1974
    %v2056 = vpop.f32.mrf.mxu0
    %v2057 = vadd.f32 0.0, %v2056
    %v2058 = vpop.f32.mrf.mxu0
    %2059 = vmatprep.mubr.f32.mxu0 0.0
    %2060 = vmatmul.mubr.f32.gmra.mxu0 %v1975
    %v2061 = vpop.f32.mrf.mxu0
    %v2062 = vadd.f32 0.0, %v2061
    %v2063 = vpop.f32.mrf.mxu0
    %2064 = vdwg.mxu0
    %v2073 = vcombine.low %v1770, %v1771
    %v2074 = vcombine.low %v1772, %v1773
    %v2075 = vcombine.low %v1774, %v1775
    %v2076 = vcombine.low %v1776, %v1777
    %2081 = vmatprep.subr.mxu0 0.0
    %2082 = vmatpush1.msra.mxu0 %v1793
    %2083 = vmatprep.subr.mxu0 0.0
    %2084 = vmatpush1.msra.mxu0 %v1792
    %2085 = vmatprep.subr.mxu0 0.0
    %2086 = vmatpush1.msra.mxu0 %v1791
    %2087 = vmatprep.subr.mxu0 0.0
    %2088 = vmatpush1.msra.mxu0 %v1790
    %2089 = vmatprep.subr.mxu0 0.0
    %2090 = vmatpush1.msra.mxu0 %v1789
    %2091 = vmatprep.subr.mxu0 0.0
    %2092 = vmatpush1.msra.mxu0 %v1788
    %2093 = vmatprep.subr.mxu0 0.0
    %2094 = vmatpush1.msra.mxu0 %v1787
    %2095 = vmatprep.subr.mxu0 0.0
    %2096 = vmatpush1.msra.mxu0 %v1786
    %2097 = vmatprep.subr.mxu0 0.0
    %2098 = vmatpush1.msra.mxu0 %v1785
    %2099 = vmatprep.subr.mxu0 0.0
    %2100 = vmatpush1.msra.mxu0 %v1784
    %2101 = vmatprep.subr.mxu0 0.0
    %2102 = vmatpush1.msra.mxu0 %v1783
    %2103 = vmatprep.subr.mxu0 0.0
    %2104 = vmatpush1.msra.mxu0 %v1782
    %2105 = vmatprep.subr.mxu0 0.0
    %2106 = vmatpush1.msra.mxu0 %v1781
    %2107 = vmatprep.subr.mxu0 0.0
    %2108 = vmatpush1.msra.mxu0 %v1780
    %2109 = vmatprep.subr.mxu0 0.0
    %2110 = vmatpush1.msra.mxu0 %v1779
    %2111 = vmatprep.subr.mxu0 0.0
    %2112 = vmatpush1.msra.mxu0 %v1778
    %2113 = vmatprep.subr.mxu0 0.0
    %2114 = vmatpush2.msra.mxu0 0.0
    %2115 = vmatprep.subr.mxu0 0.0
    %2116 = vmatpush2.msra.mxu0 0.0
    %2117 = vmatprep.subr.mxu0 0.0
    %2118 = vmatpush2.msra.mxu0 0.0
    %2119 = vmatprep.subr.mxu0 0.0
    %2120 = vmatpush2.msra.mxu0 0.0
    %2121 = vmatprep.subr.mxu0 0.0
    %2122 = vmatpush2.msra.mxu0 0.0
    %2123 = vmatprep.subr.mxu0 0.0
    %2124 = vmatpush2.msra.mxu0 0.0
    %2125 = vmatprep.subr.mxu0 0.0
    %2126 = vmatpush2.msra.mxu0 0.0
    %2127 = vmatprep.subr.mxu0 0.0
    %2128 = vmatpush2.msra.mxu0 0.0
    %2129 = vmatprep.subr.mxu0 0.0
    %2130 = vmatpush2.msra.mxu0 0.0
    %2131 = vmatprep.subr.mxu0 0.0
    %2132 = vmatpush2.msra.mxu0 0.0
    %2133 = vmatprep.subr.mxu0 0.0
    %2134 = vmatpush2.msra.mxu0 0.0
    %2135 = vmatprep.subr.mxu0 0.0
    %2136 = vmatpush2.msra.mxu0 0.0
    %2137 = vmatprep.subr.mxu0 0.0
    %2138 = vmatpush2.msra.mxu0 0.0
    %2139 = vmatprep.subr.mxu0 0.0
    %2140 = vmatpush2.msra.mxu0 0.0
    %2141 = vmatprep.subr.mxu0 0.0
    %2142 = vmatpush2.msra.mxu0 0.0
    %2143 = vmatprep.subr.mxu0 0.0
    %2144 = vmatpush2.msra.mxu0 0.0
    %2145 = vmatprep.mubr.f32.mxu0 0.0
    %2146 = vmatmul.mubr.f32.gmra.mxu0 %v2073
    %v2147 = vpop.f32.mrf.mxu0
    %v2148 = vadd.f32 %v2047, %v2147
    %v2149 = vpop.f32.mrf.mxu0
    %2150 = vmatprep.mubr.f32.mxu0 0.0
    %2151 = vmatmul.mubr.f32.gmra.mxu0 %v2074
    %v2152 = vpop.f32.mrf.mxu0
    %v2153 = vadd.f32 %v2052, %v2152
    %v2154 = vpop.f32.mrf.mxu0
    %2155 = vmatprep.mubr.f32.mxu0 0.0
    %2156 = vmatmul.mubr.f32.gmra.mxu0 %v2075
    %v2157 = vpop.f32.mrf.mxu0
    %v2158 = vadd.f32 %v2057, %v2157
    %v2159 = vpop.f32.mrf.mxu0
    %2160 = vmatprep.mubr.f32.mxu0 0.0
    %2161 = vmatmul.mubr.f32.gmra.mxu0 %v2076
    %v2162 = vpop.f32.mrf.mxu0
    %v2163 = vadd.f32 %v2062, %v2162
    %v2164 = vpop.f32.mrf.mxu0
    %2165 = vdwg.mxu0
    %v2166 = vld [vmem:[%s1274] sm:$0xf]
    %v2167 = vld [vmem:[%s1274 + $0x8] sm:$0xf]
    %v2168 = vld [vmem:[%s1274 + $0x10] sm:$0xf]
    %v2169 = vld [vmem:[%s1274 + $0x18] sm:$0xf]
    %v2170 = vld [vmem:[%s1274 + $0x28] sm:$0xf]
    %v2171 = vld [vmem:[%s1274 + $0x30] sm:$0xf]
    %v2172 = vld [vmem:[%s1274 + $0x38] sm:$0xf]
    %v2173 = vld [vmem:[%s1274 + $0x40] sm:$0xf]
    %v2174 = vld [vmem:[%s1274 + $0x1] sm:$0xf]
    %v2175 = vld [vmem:[%s1274 + $0x9] sm:$0xf]
    %v2176 = vld [vmem:[%s1274 + $0x11] sm:$0xf]
    %v2177 = vld [vmem:[%s1274 + $0x19] sm:$0xf]
    %v2178 = vld [vmem:[%s1274 + $0x29] sm:$0xf]
    %v2179 = vld [vmem:[%s1274 + $0x31] sm:$0xf]
    %v2180 = vld [vmem:[%s1274 + $0x39] sm:$0xf]
    %v2181 = vld [vmem:[%s1274 + $0x41] sm:$0xf]
    %s2182 = scalar_lea.vmem [#allocation2], 168
    %v2183 = vld [vmem:[%s2182] sm:$0xf]
    %v2184 = vld [vmem:[%s2182 + $0x8] sm:$0xf]
    %v2185 = vld [vmem:[%s2182 + $0x10] sm:$0xf]
    %v2186 = vld [vmem:[%s2182 + $0x18] sm:$0xf]
    %v2187 = vld [vmem:[%s2182 + $0x28] sm:$0xf]
    %v2188 = vld [vmem:[%s2182 + $0x30] sm:$0xf]
    %v2189 = vld [vmem:[%s2182 + $0x38] sm:$0xf]
    %v2190 = vld [vmem:[%s2182 + $0x40] sm:$0xf]
    %v2191 = vld [vmem:[%s2182 + $0x1] sm:$0xf]
    %v2192 = vld [vmem:[%s2182 + $0x9] sm:$0xf]
    %v2193 = vld [vmem:[%s2182 + $0x11] sm:$0xf]
    %v2194 = vld [vmem:[%s2182 + $0x19] sm:$0xf]
    %v2195 = vld [vmem:[%s2182 + $0x29] sm:$0xf]
    %v2196 = vld [vmem:[%s2182 + $0x31] sm:$0xf]
    %v2197 = vld [vmem:[%s2182 + $0x39] sm:$0xf]
    %v2198 = vld [vmem:[%s2182 + $0x41] sm:$0xf]
    %2207 = vrot.lane.b32.xlu0 %v2174, 32
    %v2208 = vpop.permute.xlu0 %2207
    %2209 = vrot.lane.b32.xlu0 %v2175, 32
    %v2210 = vpop.permute.xlu0 %2209
    %2211 = vrot.lane.b32.xlu0 %v2176, 32
    %v2212 = vpop.permute.xlu0 %2211
    %2213 = vrot.lane.b32.xlu0 %v2177, 32
    %v2214 = vpop.permute.xlu0 %2213
    %2215 = vrot.lane.b32.xlu0 %v2178, 32
    %v2216 = vpop.permute.xlu0 %2215
    %2217 = vrot.lane.b32.xlu0 %v2179, 32
    %v2218 = vpop.permute.xlu0 %2217
    %2219 = vrot.lane.b32.xlu0 %v2180, 32
    %v2220 = vpop.permute.xlu0 %2219
    %2221 = vrot.lane.b32.xlu0 %v2181, 32
    %v2222 = vpop.permute.xlu0 %2221
    %2239 = vrot.lane.b32.xlu0 %v2183, 64
    %v2240 = vpop.permute.xlu0 %2239
    %2241 = vrot.lane.b32.xlu0 %v2184, 64
    %v2242 = vpop.permute.xlu0 %2241
    %2243 = vrot.lane.b32.xlu0 %v2185, 64
    %v2244 = vpop.permute.xlu0 %2243
    %2245 = vrot.lane.b32.xlu0 %v2186, 64
    %v2246 = vpop.permute.xlu0 %2245
    %2247 = vrot.lane.b32.xlu0 %v2187, 64
    %v2248 = vpop.permute.xlu0 %2247
    %2249 = vrot.lane.b32.xlu0 %v2188, 64
    %v2250 = vpop.permute.xlu0 %2249
    %2251 = vrot.lane.b32.xlu0 %v2189, 64
    %v2252 = vpop.permute.xlu0 %2251
    %2253 = vrot.lane.b32.xlu0 %v2190, 64
    %v2254 = vpop.permute.xlu0 %2253
    %2271 = vrot.lane.b32.xlu0 %v2191, 96
    %v2272 = vpop.permute.xlu0 %2271
    %2273 = vrot.lane.b32.xlu0 %v2192, 96
    %v2274 = vpop.permute.xlu0 %2273
    %2275 = vrot.lane.b32.xlu0 %v2193, 96
    %v2276 = vpop.permute.xlu0 %2275
    %2277 = vrot.lane.b32.xlu0 %v2194, 96
    %v2278 = vpop.permute.xlu0 %2277
    %2279 = vrot.lane.b32.xlu0 %v2195, 96
    %v2280 = vpop.permute.xlu0 %2279
    %2281 = vrot.lane.b32.xlu0 %v2196, 96
    %v2282 = vpop.permute.xlu0 %2281
    %2283 = vrot.lane.b32.xlu0 %v2197, 96
    %v2284 = vpop.permute.xlu0 %2283
    %2285 = vrot.lane.b32.xlu0 %v2198, 96
    %v2286 = vpop.permute.xlu0 %2285
    %v2295 = vsel %vm1752, %v2166, %v2208
    %v2296 = vsel %vm1752, %v2167, %v2210
    %v2297 = vsel %vm1752, %v2168, %v2212
    %v2298 = vsel %vm1752, %v2169, %v2214
    %v2299 = vsel %vm1752, %v2170, %v2216
    %v2300 = vsel %vm1752, %v2171, %v2218
    %v2301 = vsel %vm1752, %v2172, %v2220
    %v2302 = vsel %vm1752, %v2173, %v2222
    %v2303 = vsel %vm52, %v2295, %v2240
    %v2304 = vsel %vm52, %v2296, %v2242
    %v2305 = vsel %vm52, %v2297, %v2244
    %v2306 = vsel %vm52, %v2298, %v2246
    %v2307 = vsel %vm52, %v2299, %v2248
    %v2308 = vsel %vm52, %v2300, %v2250
    %v2309 = vsel %vm52, %v2301, %v2252
    %v2310 = vsel %vm52, %v2302, %v2254
    %v2311 = vsel %vm1769, %v2303, %v2272
    %v2312 = vsel %vm1769, %v2304, %v2274
    %v2313 = vsel %vm1769, %v2305, %v2276
    %v2314 = vsel %vm1769, %v2306, %v2278
    %v2315 = vsel %vm1769, %v2307, %v2280
    %v2316 = vsel %vm1769, %v2308, %v2282
    %v2317 = vsel %vm1769, %v2309, %v2284
    %v2318 = vsel %vm1769, %v2310, %v2286
    %s2319 = scalar_lea.vmem %s3, 256
    %v2320 = vld [vmem:[%s2319] sm:$0xff]
    %v2321 = vld [vmem:[%s2319 + $0x8] sm:$0xff]
    %v2322 = vld [vmem:[%s2319 + $0x10] sm:$0xff]
    %v2323 = vld [vmem:[%s2319 + $0x18] sm:$0xff]
    %v2324 = vld [vmem:[%s2319 + $0x20] sm:$0xff]
    %v2325 = vld [vmem:[%s2319 + $0x28] sm:$0xff]
    %v2326 = vld [vmem:[%s2319 + $0x30] sm:$0xff]
    %v2327 = vld [vmem:[%s2319 + $0x38] sm:$0xff]
    %v2328 = vld [vmem:[%s2319 + $0x40] sm:$0xff]
    %v2329 = vld [vmem:[%s2319 + $0x48] sm:$0xff]
    %v2330 = vld [vmem:[%s2319 + $0x50] sm:$0xff]
    %v2331 = vld [vmem:[%s2319 + $0x58] sm:$0xff]
    %v2332 = vld [vmem:[%s2319 + $0x60] sm:$0xff]
    %v2333 = vld [vmem:[%s2319 + $0x68] sm:$0xff]
    %v2334 = vld [vmem:[%s2319 + $0x70] sm:$0xff]
    %v2335 = vld [vmem:[%s2319 + $0x78] sm:$0xff]
    %v2344 = vcombine.low %v2311, %v2312
    %v2345 = vcombine.low %v2313, %v2314
    %v2346 = vcombine.low %v2315, %v2316
    %v2347 = vcombine.low %v2317, %v2318
    %2352 = vmatprep.subr.mxu0 0.0
    %2353 = vmatpush1.msra.mxu0 %v2335
    %2354 = vmatprep.subr.mxu0 0.0
    %2355 = vmatpush1.msra.mxu0 %v2334
    %2356 = vmatprep.subr.mxu0 0.0
    %2357 = vmatpush1.msra.mxu0 %v2333
    %2358 = vmatprep.subr.mxu0 0.0
    %2359 = vmatpush1.msra.mxu0 %v2332
    %2360 = vmatprep.subr.mxu0 0.0
    %2361 = vmatpush1.msra.mxu0 %v2331
    %2362 = vmatprep.subr.mxu0 0.0
    %2363 = vmatpush1.msra.mxu0 %v2330
    %2364 = vmatprep.subr.mxu0 0.0
    %2365 = vmatpush1.msra.mxu0 %v2329
    %2366 = vmatprep.subr.mxu0 0.0
    %2367 = vmatpush1.msra.mxu0 %v2328
    %2368 = vmatprep.subr.mxu0 0.0
    %2369 = vmatpush1.msra.mxu0 %v2327
    %2370 = vmatprep.subr.mxu0 0.0
    %2371 = vmatpush1.msra.mxu0 %v2326
    %2372 = vmatprep.subr.mxu0 0.0
    %2373 = vmatpush1.msra.mxu0 %v2325
    %2374 = vmatprep.subr.mxu0 0.0
    %2375 = vmatpush1.msra.mxu0 %v2324
    %2376 = vmatprep.subr.mxu0 0.0
    %2377 = vmatpush1.msra.mxu0 %v2323
    %2378 = vmatprep.subr.mxu0 0.0
    %2379 = vmatpush1.msra.mxu0 %v2322
    %2380 = vmatprep.subr.mxu0 0.0
    %2381 = vmatpush1.msra.mxu0 %v2321
    %2382 = vmatprep.subr.mxu0 0.0
    %2383 = vmatpush1.msra.mxu0 %v2320
    %2384 = vmatprep.subr.mxu0 0.0
    %2385 = vmatpush2.msra.mxu0 0.0
    %2386 = vmatprep.subr.mxu0 0.0
    %2387 = vmatpush2.msra.mxu0 0.0
    %2388 = vmatprep.subr.mxu0 0.0
    %2389 = vmatpush2.msra.mxu0 0.0
    %2390 = vmatprep.subr.mxu0 0.0
    %2391 = vmatpush2.msra.mxu0 0.0
    %2392 = vmatprep.subr.mxu0 0.0
    %2393 = vmatpush2.msra.mxu0 0.0
    %2394 = vmatprep.subr.mxu0 0.0
    %2395 = vmatpush2.msra.mxu0 0.0
    %2396 = vmatprep.subr.mxu0 0.0
    %2397 = vmatpush2.msra.mxu0 0.0
    %2398 = vmatprep.subr.mxu0 0.0
    %2399 = vmatpush2.msra.mxu0 0.0
    %2400 = vmatprep.subr.mxu0 0.0
    %2401 = vmatpush2.msra.mxu0 0.0
    %2402 = vmatprep.subr.mxu0 0.0
    %2403 = vmatpush2.msra.mxu0 0.0
    %2404 = vmatprep.subr.mxu0 0.0
    %2405 = vmatpush2.msra.mxu0 0.0
    %2406 = vmatprep.subr.mxu0 0.0
    %2407 = vmatpush2.msra.mxu0 0.0
    %2408 = vmatprep.subr.mxu0 0.0
    %2409 = vmatpush2.msra.mxu0 0.0
    %2410 = vmatprep.subr.mxu0 0.0
    %2411 = vmatpush2.msra.mxu0 0.0
    %2412 = vmatprep.subr.mxu0 0.0
    %2413 = vmatpush2.msra.mxu0 0.0
    %2414 = vmatprep.subr.mxu0 0.0
    %2415 = vmatpush2.msra.mxu0 0.0
    %2416 = vmatprep.mubr.f32.mxu0 0.0
    %2417 = vmatmul.mubr.f32.gmra.mxu0 %v2344
    %v2418 = vpop.f32.mrf.mxu0
    %v2419 = vadd.f32 0.0, %v2418
    %v2420 = vpop.f32.mrf.mxu0
    %2421 = vmatprep.mubr.f32.mxu0 0.0
    %2422 = vmatmul.mubr.f32.gmra.mxu0 %v2345
    %v2423 = vpop.f32.mrf.mxu0
    %v2424 = vadd.f32 0.0, %v2423
    %v2425 = vpop.f32.mrf.mxu0
    %2426 = vmatprep.mubr.f32.mxu0 0.0
    %2427 = vmatmul.mubr.f32.gmra.mxu0 %v2346
    %v2428 = vpop.f32.mrf.mxu0
    %v2429 = vadd.f32 0.0, %v2428
    %v2430 = vpop.f32.mrf.mxu0
    %2431 = vmatprep.mubr.f32.mxu0 0.0
    %2432 = vmatmul.mubr.f32.gmra.mxu0 %v2347
    %v2433 = vpop.f32.mrf.mxu0
    %v2434 = vadd.f32 0.0, %v2433
    %v2435 = vpop.f32.mrf.mxu0
    %2436 = vdwg.mxu0
    %v2437 = vadd.f32 %v2148, %v2419
    %v2438 = vadd.f32 %v2153, %v2424
    %v2439 = vadd.f32 %v2158, %v2429
    %v2440 = vadd.f32 %v2163, %v2434
    %v2441 = vld [vmem:[%s1103] sm:$0xf]
    %v2442 = vld [vmem:[%s1103 + $0x8] sm:$0xf]
    %v2443 = vld [vmem:[%s1103 + $0x10] sm:$0xf]
    %v2444 = vld [vmem:[%s1103 + $0x18] sm:$0xf]
    %v2445 = vld [vmem:[%s1103 + $0x28] sm:$0xf]
    %v2446 = vld [vmem:[%s1103 + $0x30] sm:$0xf]
    %v2447 = vld [vmem:[%s1103 + $0x38] sm:$0xf]
    %v2448 = vld [vmem:[%s1103 + $0x40] sm:$0xf]
    %v2449 = vld [vmem:[%s1103 + $0x1] sm:$0xf]
    %v2450 = vld [vmem:[%s1103 + $0x9] sm:$0xf]
    %v2451 = vld [vmem:[%s1103 + $0x11] sm:$0xf]
    %v2452 = vld [vmem:[%s1103 + $0x19] sm:$0xf]
    %v2453 = vld [vmem:[%s1103 + $0x29] sm:$0xf]
    %v2454 = vld [vmem:[%s1103 + $0x31] sm:$0xf]
    %v2455 = vld [vmem:[%s1103 + $0x39] sm:$0xf]
    %v2456 = vld [vmem:[%s1103 + $0x41] sm:$0xf]
    %s2457 = scalar_lea.vmem [#allocation2], 248
    %v2458 = vld [vmem:[%s2457] sm:$0xf]
    %v2459 = vld [vmem:[%s2457 + $0x8] sm:$0xf]
    %v2460 = vld [vmem:[%s2457 + $0x10] sm:$0xf]
    %v2461 = vld [vmem:[%s2457 + $0x18] sm:$0xf]
    %v2462 = vld [vmem:[%s2457 + $0x28] sm:$0xf]
    %v2463 = vld [vmem:[%s2457 + $0x30] sm:$0xf]
    %v2464 = vld [vmem:[%s2457 + $0x38] sm:$0xf]
    %v2465 = vld [vmem:[%s2457 + $0x40] sm:$0xf]
    %v2466 = vld [vmem:[%s2457 + $0x1] sm:$0xf]
    %v2467 = vld [vmem:[%s2457 + $0x9] sm:$0xf]
    %v2468 = vld [vmem:[%s2457 + $0x11] sm:$0xf]
    %v2469 = vld [vmem:[%s2457 + $0x19] sm:$0xf]
    %v2470 = vld [vmem:[%s2457 + $0x29] sm:$0xf]
    %v2471 = vld [vmem:[%s2457 + $0x31] sm:$0xf]
    %v2472 = vld [vmem:[%s2457 + $0x39] sm:$0xf]
    %v2473 = vld [vmem:[%s2457 + $0x41] sm:$0xf]
    %2482 = vrot.lane.b32.xlu0 %v2449, 32
    %v2483 = vpop.permute.xlu0 %2482
    %2484 = vrot.lane.b32.xlu0 %v2450, 32
    %v2485 = vpop.permute.xlu0 %2484
    %2486 = vrot.lane.b32.xlu0 %v2451, 32
    %v2487 = vpop.permute.xlu0 %2486
    %2488 = vrot.lane.b32.xlu0 %v2452, 32
    %v2489 = vpop.permute.xlu0 %2488
    %2490 = vrot.lane.b32.xlu0 %v2453, 32
    %v2491 = vpop.permute.xlu0 %2490
    %2492 = vrot.lane.b32.xlu0 %v2454, 32
    %v2493 = vpop.permute.xlu0 %2492
    %2494 = vrot.lane.b32.xlu0 %v2455, 32
    %v2495 = vpop.permute.xlu0 %2494
    %2496 = vrot.lane.b32.xlu0 %v2456, 32
    %v2497 = vpop.permute.xlu0 %2496
    %2514 = vrot.lane.b32.xlu0 %v2458, 64
    %v2515 = vpop.permute.xlu0 %2514
    %2516 = vrot.lane.b32.xlu0 %v2459, 64
    %v2517 = vpop.permute.xlu0 %2516
    %2518 = vrot.lane.b32.xlu0 %v2460, 64
    %v2519 = vpop.permute.xlu0 %2518
    %2520 = vrot.lane.b32.xlu0 %v2461, 64
    %v2521 = vpop.permute.xlu0 %2520
    %2522 = vrot.lane.b32.xlu0 %v2462, 64
    %v2523 = vpop.permute.xlu0 %2522
    %2524 = vrot.lane.b32.xlu0 %v2463, 64
    %v2525 = vpop.permute.xlu0 %2524
    %2526 = vrot.lane.b32.xlu0 %v2464, 64
    %v2527 = vpop.permute.xlu0 %2526
    %2528 = vrot.lane.b32.xlu0 %v2465, 64
    %v2529 = vpop.permute.xlu0 %2528
    %2546 = vrot.lane.b32.xlu0 %v2466, 96
    %v2547 = vpop.permute.xlu0 %2546
    %2548 = vrot.lane.b32.xlu0 %v2467, 96
    %v2549 = vpop.permute.xlu0 %2548
    %2550 = vrot.lane.b32.xlu0 %v2468, 96
    %v2551 = vpop.permute.xlu0 %2550
    %2552 = vrot.lane.b32.xlu0 %v2469, 96
    %v2553 = vpop.permute.xlu0 %2552
    %2554 = vrot.lane.b32.xlu0 %v2470, 96
    %v2555 = vpop.permute.xlu0 %2554
    %2556 = vrot.lane.b32.xlu0 %v2471, 96
    %v2557 = vpop.permute.xlu0 %2556
    %2558 = vrot.lane.b32.xlu0 %v2472, 96
    %v2559 = vpop.permute.xlu0 %2558
    %2560 = vrot.lane.b32.xlu0 %v2473, 96
    %v2561 = vpop.permute.xlu0 %2560
    %v2570 = vsel %vm1752, %v2441, %v2483
    %v2571 = vsel %vm1752, %v2442, %v2485
    %v2572 = vsel %vm1752, %v2443, %v2487
    %v2573 = vsel %vm1752, %v2444, %v2489
    %v2574 = vsel %vm1752, %v2445, %v2491
    %v2575 = vsel %vm1752, %v2446, %v2493
    %v2576 = vsel %vm1752, %v2447, %v2495
    %v2577 = vsel %vm1752, %v2448, %v2497
    %v2578 = vsel %vm52, %v2570, %v2515
    %v2579 = vsel %vm52, %v2571, %v2517
    %v2580 = vsel %vm52, %v2572, %v2519
    %v2581 = vsel %vm52, %v2573, %v2521
    %v2582 = vsel %vm52, %v2574, %v2523
    %v2583 = vsel %vm52, %v2575, %v2525
    %v2584 = vsel %vm52, %v2576, %v2527
    %v2585 = vsel %vm52, %v2577, %v2529
    %v2586 = vsel %vm1769, %v2578, %v2547
    %v2587 = vsel %vm1769, %v2579, %v2549
    %v2588 = vsel %vm1769, %v2580, %v2551
    %v2589 = vsel %vm1769, %v2581, %v2553
    %v2590 = vsel %vm1769, %v2582, %v2555
    %v2591 = vsel %vm1769, %v2583, %v2557
    %v2592 = vsel %vm1769, %v2584, %v2559
    %v2593 = vsel %vm1769, %v2585, %v2561
    %s2594 = scalar_lea.vmem %s3, 384
    %v2595 = vld [vmem:[%s2594] sm:$0xff]
    %v2596 = vld [vmem:[%s2594 + $0x8] sm:$0xff]
    %v2597 = vld [vmem:[%s2594 + $0x10] sm:$0xff]
    %v2598 = vld [vmem:[%s2594 + $0x18] sm:$0xff]
    %v2599 = vld [vmem:[%s2594 + $0x20] sm:$0xff]
    %v2600 = vld [vmem:[%s2594 + $0x28] sm:$0xff]
    %v2601 = vld [vmem:[%s2594 + $0x30] sm:$0xff]
    %v2602 = vld [vmem:[%s2594 + $0x38] sm:$0xff]
    %v2603 = vld [vmem:[%s2594 + $0x40] sm:$0xff]
    %v2604 = vld [vmem:[%s2594 + $0x48] sm:$0xff]
    %v2605 = vld [vmem:[%s2594 + $0x50] sm:$0xff]
    %v2606 = vld [vmem:[%s2594 + $0x58] sm:$0xff]
    %v2607 = vld [vmem:[%s2594 + $0x60] sm:$0xff]
    %v2608 = vld [vmem:[%s2594 + $0x68] sm:$0xff]
    %v2609 = vld [vmem:[%s2594 + $0x70] sm:$0xff]
    %v2610 = vld [vmem:[%s2594 + $0x78] sm:$0xff]
    %v2619 = vcombine.low %v2586, %v2587
    %v2620 = vcombine.low %v2588, %v2589
    %v2621 = vcombine.low %v2590, %v2591
    %v2622 = vcombine.low %v2592, %v2593
    %2627 = vmatprep.subr.mxu0 0.0
    %2628 = vmatpush1.msra.mxu0 %v2610
    %2629 = vmatprep.subr.mxu0 0.0
    %2630 = vmatpush1.msra.mxu0 %v2609
    %2631 = vmatprep.subr.mxu0 0.0
    %2632 = vmatpush1.msra.mxu0 %v2608
    %2633 = vmatprep.subr.mxu0 0.0
    %2634 = vmatpush1.msra.mxu0 %v2607
    %2635 = vmatprep.subr.mxu0 0.0
    %2636 = vmatpush1.msra.mxu0 %v2606
    %2637 = vmatprep.subr.mxu0 0.0
    %2638 = vmatpush1.msra.mxu0 %v2605
    %2639 = vmatprep.subr.mxu0 0.0
    %2640 = vmatpush1.msra.mxu0 %v2604
    %2641 = vmatprep.subr.mxu0 0.0
    %2642 = vmatpush1.msra.mxu0 %v2603
    %2643 = vmatprep.subr.mxu0 0.0
    %2644 = vmatpush1.msra.mxu0 %v2602
    %2645 = vmatprep.subr.mxu0 0.0
    %2646 = vmatpush1.msra.mxu0 %v2601
    %2647 = vmatprep.subr.mxu0 0.0
    %2648 = vmatpush1.msra.mxu0 %v2600
    %2649 = vmatprep.subr.mxu0 0.0
    %2650 = vmatpush1.msra.mxu0 %v2599
    %2651 = vmatprep.subr.mxu0 0.0
    %2652 = vmatpush1.msra.mxu0 %v2598
    %2653 = vmatprep.subr.mxu0 0.0
    %2654 = vmatpush1.msra.mxu0 %v2597
    %2655 = vmatprep.subr.mxu0 0.0
    %2656 = vmatpush1.msra.mxu0 %v2596
    %2657 = vmatprep.subr.mxu0 0.0
    %2658 = vmatpush1.msra.mxu0 %v2595
    %2659 = vmatprep.subr.mxu0 0.0
    %2660 = vmatpush2.msra.mxu0 0.0
    %2661 = vmatprep.subr.mxu0 0.0
    %2662 = vmatpush2.msra.mxu0 0.0
    %2663 = vmatprep.subr.mxu0 0.0
    %2664 = vmatpush2.msra.mxu0 0.0
    %2665 = vmatprep.subr.mxu0 0.0
    %2666 = vmatpush2.msra.mxu0 0.0
    %2667 = vmatprep.subr.mxu0 0.0
    %2668 = vmatpush2.msra.mxu0 0.0
    %2669 = vmatprep.subr.mxu0 0.0
    %2670 = vmatpush2.msra.mxu0 0.0
    %2671 = vmatprep.subr.mxu0 0.0
    %2672 = vmatpush2.msra.mxu0 0.0
    %2673 = vmatprep.subr.mxu0 0.0
    %2674 = vmatpush2.msra.mxu0 0.0
    %2675 = vmatprep.subr.mxu0 0.0
    %2676 = vmatpush2.msra.mxu0 0.0
    %2677 = vmatprep.subr.mxu0 0.0
    %2678 = vmatpush2.msra.mxu0 0.0
    %2679 = vmatprep.subr.mxu0 0.0
    %2680 = vmatpush2.msra.mxu0 0.0
    %2681 = vmatprep.subr.mxu0 0.0
    %2682 = vmatpush2.msra.mxu0 0.0
    %2683 = vmatprep.subr.mxu0 0.0
    %2684 = vmatpush2.msra.mxu0 0.0
    %2685 = vmatprep.subr.mxu0 0.0
    %2686 = vmatpush2.msra.mxu0 0.0
    %2687 = vmatprep.subr.mxu0 0.0
    %2688 = vmatpush2.msra.mxu0 0.0
    %2689 = vmatprep.subr.mxu0 0.0
    %2690 = vmatpush2.msra.mxu0 0.0
    %2691 = vmatprep.mubr.f32.mxu0 0.0
    %2692 = vmatmul.mubr.f32.gmra.mxu0 %v2619
    %v2693 = vpop.f32.mrf.mxu0
    %v2694 = vadd.f32 0.0, %v2693
    %v2695 = vpop.f32.mrf.mxu0
    %2696 = vmatprep.mubr.f32.mxu0 0.0
    %2697 = vmatmul.mubr.f32.gmra.mxu0 %v2620
    %v2698 = vpop.f32.mrf.mxu0
    %v2699 = vadd.f32 0.0, %v2698
    %v2700 = vpop.f32.mrf.mxu0
    %2701 = vmatprep.mubr.f32.mxu0 0.0
    %2702 = vmatmul.mubr.f32.gmra.mxu0 %v2621
    %v2703 = vpop.f32.mrf.mxu0
    %v2704 = vadd.f32 0.0, %v2703
    %v2705 = vpop.f32.mrf.mxu0
    %2706 = vmatprep.mubr.f32.mxu0 0.0
    %2707 = vmatmul.mubr.f32.gmra.mxu0 %v2622
    %v2708 = vpop.f32.mrf.mxu0
    %v2709 = vadd.f32 0.0, %v2708
    %v2710 = vpop.f32.mrf.mxu0
    %2711 = vdwg.mxu0
    %v2712 = vadd.f32 %v2437, %v2694
    %v2713 = vadd.f32 %v2438, %v2699
    %v2714 = vadd.f32 %v2439, %v2704
    %v2715 = vadd.f32 %v2440, %v2709
    %v2717 = vlaneseq
    %v2718 = vshrl.u32 %v2717, 7
    %v2719 = vsub.s32 0, %v2718
    %v2720 = vrot.slane %v1623, %v2719
    %v2722 = vadd.f32 %v2712, %v2720
    %v2723 = vadd.f32 %v2713, %v2720
    %v2724 = vadd.f32 %v2714, %v2720
    %v2725 = vadd.f32 %v2715, %v2720
    %vm2726 = vcmp.ge.f32.partialorder %v2722, 0.0
    %vm2727 = vcmp.ge.f32.partialorder %v2723, 0.0
    %vm2728 = vcmp.ge.f32.partialorder %v2724, 0.0
    %vm2729 = vcmp.ge.f32.partialorder %v2725, 0.0
    %v2730 = vmul.f32 %v2722, 0.2
    %v2731 = vmul.f32 %v2723, 0.2
    %v2732 = vmul.f32 %v2724, 0.2
    %v2733 = vmul.f32 %v2725, 0.2
    %v2734 = vsel %vm2726, %v2722, %v2730
    %v2735 = vsel %vm2727, %v2723, %v2731
    %v2736 = vsel %vm2728, %v2724, %v2732
    %v2737 = vsel %vm2729, %v2725, %v2733
    %v2742 = vcombine.high %v2734, %v2734
    %v2744 = vunpack.c.l.s4 1983009808
    %v2745 = vunpack.c.0.s8 %v2744
    %v2746 = vlaneseq
    %v2747 = vshrl.u32 %v2746, 7
    %v2748 = vsub.s32 %v2745, %v2747
    %v2749 = vrot.slane %v2734, %v2748
    %v2751 = vunpack.c.l.s4 1983009808
    %v2752 = vunpack.c.0.s8 %v2751
    %v2753 = vlaneseq
    %v2754 = vshrl.u32 %v2753, 7
    %v2755 = vsub.s32 %v2752, %v2754
    %v2756 = vrot.slane %v2742, %v2755
    %v2757 = vcombine.high %v2749, %v2749
    %v2758 = vcombine.high %v2756, %v2756
    %v2759 = vcombine.high %v2735, %v2735
    %v2761 = vunpack.c.l.s4 1983009808
    %v2762 = vunpack.c.0.s8 %v2761
    %v2763 = vlaneseq
    %v2764 = vshrl.u32 %v2763, 7
    %v2765 = vsub.s32 %v2762, %v2764
    %v2766 = vrot.slane %v2735, %v2765
    %v2768 = vunpack.c.l.s4 1983009808
    %v2769 = vunpack.c.0.s8 %v2768
    %v2770 = vlaneseq
    %v2771 = vshrl.u32 %v2770, 7
    %v2772 = vsub.s32 %v2769, %v2771
    %v2773 = vrot.slane %v2759, %v2772
    %v2774 = vcombine.high %v2766, %v2766
    %v2775 = vcombine.high %v2773, %v2773
    %v2776 = vcombine.high %v2736, %v2736
    %v2778 = vunpack.c.l.s4 1983009808
    %v2779 = vunpack.c.0.s8 %v2778
    %v2780 = vlaneseq
    %v2781 = vshrl.u32 %v2780, 7
    %v2782 = vsub.s32 %v2779, %v2781
    %v2783 = vrot.slane %v2736, %v2782
    %v2785 = vunpack.c.l.s4 1983009808
    %v2786 = vunpack.c.0.s8 %v2785
    %v2787 = vlaneseq
    %v2788 = vshrl.u32 %v2787, 7
    %v2789 = vsub.s32 %v2786, %v2788
    %v2790 = vrot.slane %v2776, %v2789
    %v2791 = vcombine.high %v2783, %v2783
    %v2792 = vcombine.high %v2790, %v2790
    %v2793 = vcombine.high %v2737, %v2737
    %v2795 = vunpack.c.l.s4 1983009808
    %v2796 = vunpack.c.0.s8 %v2795
    %v2797 = vlaneseq
    %v2798 = vshrl.u32 %v2797, 7
    %v2799 = vsub.s32 %v2796, %v2798
    %v2800 = vrot.slane %v2737, %v2799
    %v2802 = vunpack.c.l.s4 1983009808
    %v2803 = vunpack.c.0.s8 %v2802
    %v2804 = vlaneseq
    %v2805 = vshrl.u32 %v2804, 7
    %v2806 = vsub.s32 %v2803, %v2805
    %v2807 = vrot.slane %v2793, %v2806
    %v2808 = vcombine.high %v2800, %v2800
    %v2809 = vcombine.high %v2807, %v2807
    %v2810 = vlaneseq
    %v2811 = vshrl.u32 %v2810, 7
    %v2812 = vsub.s32 0, %v2811
    %v2813 = vrot.slane %v2749, %v2812
    %v2814 = vlaneseq
    %v2815 = vshrl.u32 %v2814, 7
    %v2816 = vsub.s32 0, %v2815
    %v2817 = vrot.slane %v2757, %v2816
    %v2818 = vlaneseq
    %v2819 = vshrl.u32 %v2818, 7
    %v2820 = vsub.s32 0, %v2819
    %v2821 = vrot.slane %v2766, %v2820
    %v2822 = vlaneseq
    %v2823 = vshrl.u32 %v2822, 7
    %v2824 = vsub.s32 0, %v2823
    %v2825 = vrot.slane %v2774, %v2824
    %v2826 = vlaneseq
    %v2827 = vshrl.u32 %v2826, 7
    %v2828 = vsub.s32 0, %v2827
    %v2829 = vrot.slane %v2783, %v2828
    %v2830 = vlaneseq
    %v2831 = vshrl.u32 %v2830, 7
    %v2832 = vsub.s32 0, %v2831
    %v2833 = vrot.slane %v2791, %v2832
    %v2834 = vlaneseq
    %v2835 = vshrl.u32 %v2834, 7
    %v2836 = vsub.s32 0, %v2835
    %v2837 = vrot.slane %v2800, %v2836
    %v2838 = vlaneseq
    %v2839 = vshrl.u32 %v2838, 7
    %v2840 = vsub.s32 0, %v2839
    %v2841 = vrot.slane %v2808, %v2840
    %v2842 = vsel %vm1068, %v2817, %v2813
    %v2843 = vsel %vm1068, %v2825, %v2821
    %v2844 = vsel %vm1068, %v2833, %v2829
    %v2845 = vsel %vm1068, %v2841, %v2837
    %s2850 = scalar_lea.vmem [#allocation3], 72
    %vm2851 = vcmask 254976
    %2852 = vst.msk [vmem:[%s2850] sm:$0x3] %vm2851, %v2842
    %2853 = vst.msk [vmem:[%s2850 + $0x4] sm:$0x3] %vm2851, %v2843
    %2854 = vst.msk [vmem:[%s2850 + $0xc] sm:$0x3] %vm2851, %v2844
    %2855 = vst.msk [vmem:[%s2850 + $0x10] sm:$0x3] %vm2851, %v2845
    %v2856 = vlaneseq
    %v2857 = vshrl.u32 %v2856, 7
    %v2858 = vsub.s32 1, %v2857
    %v2859 = vrot.slane %v2749, %v2858
    %v2860 = vlaneseq
    %v2861 = vshrl.u32 %v2860, 7
    %v2862 = vsub.s32 1, %v2861
    %v2863 = vrot.slane %v2757, %v2862
    %v2864 = vlaneseq
    %v2865 = vshrl.u32 %v2864, 7
    %v2866 = vsub.s32 1, %v2865
    %v2867 = vrot.slane %v2766, %v2866
    %v2868 = vlaneseq
    %v2869 = vshrl.u32 %v2868, 7
    %v2870 = vsub.s32 1, %v2869
    %v2871 = vrot.slane %v2774, %v2870
    %v2872 = vlaneseq
    %v2873 = vshrl.u32 %v2872, 7
    %v2874 = vsub.s32 1, %v2873
    %v2875 = vrot.slane %v2783, %v2874
    %v2876 = vlaneseq
    %v2877 = vshrl.u32 %v2876, 7
    %v2878 = vsub.s32 1, %v2877
    %v2879 = vrot.slane %v2791, %v2878
    %v2880 = vlaneseq
    %v2881 = vshrl.u32 %v2880, 7
    %v2882 = vsub.s32 1, %v2881
    %v2883 = vrot.slane %v2800, %v2882
    %v2884 = vlaneseq
    %v2885 = vshrl.u32 %v2884, 7
    %v2886 = vsub.s32 1, %v2885
    %v2887 = vrot.slane %v2808, %v2886
    %v2888 = vsel %vm1070, %v2863, %v2859
    %v2889 = vsel %vm1070, %v2871, %v2867
    %v2890 = vsel %vm1070, %v2879, %v2875
    %v2891 = vsel %vm1070, %v2887, %v2883
    %s2896 = scalar_lea.vmem [#allocation3], 48
    %vm2897 = vcmask 256001
    %2898 = vst.msk [vmem:[%s2896] sm:$0x6] %vm2897, %v2888
    %2899 = vst.msk [vmem:[%s2896 + $0x4] sm:$0x6] %vm2897, %v2889
    %2900 = vst.msk [vmem:[%s2896 + $0xc] sm:$0x6] %vm2897, %v2890
    %2901 = vst.msk [vmem:[%s2896 + $0x10] sm:$0x6] %vm2897, %v2891
    %v2902 = vlaneseq
    %v2903 = vshrl.u32 %v2902, 7
    %v2904 = vsub.s32 0, %v2903
    %v2905 = vrot.slane %v2756, %v2904
    %v2906 = vlaneseq
    %v2907 = vshrl.u32 %v2906, 7
    %v2908 = vsub.s32 0, %v2907
    %v2909 = vrot.slane %v2758, %v2908
    %v2910 = vlaneseq
    %v2911 = vshrl.u32 %v2910, 7
    %v2912 = vsub.s32 0, %v2911
    %v2913 = vrot.slane %v2773, %v2912
    %v2914 = vlaneseq
    %v2915 = vshrl.u32 %v2914, 7
    %v2916 = vsub.s32 0, %v2915
    %v2917 = vrot.slane %v2775, %v2916
    %v2918 = vlaneseq
    %v2919 = vshrl.u32 %v2918, 7
    %v2920 = vsub.s32 0, %v2919
    %v2921 = vrot.slane %v2790, %v2920
    %v2922 = vlaneseq
    %v2923 = vshrl.u32 %v2922, 7
    %v2924 = vsub.s32 0, %v2923
    %v2925 = vrot.slane %v2792, %v2924
    %v2926 = vlaneseq
    %v2927 = vshrl.u32 %v2926, 7
    %v2928 = vsub.s32 0, %v2927
    %v2929 = vrot.slane %v2807, %v2928
    %v2930 = vlaneseq
    %v2931 = vshrl.u32 %v2930, 7
    %v2932 = vsub.s32 0, %v2931
    %v2933 = vrot.slane %v2809, %v2932
    %v2934 = vsel %vm1068, %v2909, %v2905
    %v2935 = vsel %vm1068, %v2917, %v2913
    %v2936 = vsel %vm1068, %v2925, %v2921
    %v2937 = vsel %vm1068, %v2933, %v2929
    %s2942 = scalar_lea.vmem [#allocation3], 28
    %2943 = vst.msk [vmem:[%s2942] sm:$0x3] %vm2851, %v2934
    %2944 = vst.msk [vmem:[%s2942 + $0x4] sm:$0x3] %vm2851, %v2935
    %2945 = vst.msk [vmem:[%s2942 + $0xc] sm:$0x3] %vm2851, %v2936
    %2946 = vst.msk [vmem:[%s2942 + $0x10] sm:$0x3] %vm2851, %v2937
    %v2947 = vlaneseq
    %v2948 = vshrl.u32 %v2947, 7
    %v2949 = vsub.s32 1, %v2948
    %v2950 = vrot.slane %v2756, %v2949
    %v2951 = vlaneseq
    %v2952 = vshrl.u32 %v2951, 7
    %v2953 = vsub.s32 1, %v2952
    %v2954 = vrot.slane %v2758, %v2953
    %v2955 = vlaneseq
    %v2956 = vshrl.u32 %v2955, 7
    %v2957 = vsub.s32 1, %v2956
    %v2958 = vrot.slane %v2773, %v2957
    %v2959 = vlaneseq
    %v2960 = vshrl.u32 %v2959, 7
    %v2961 = vsub.s32 1, %v2960
    %v2962 = vrot.slane %v2775, %v2961
    %v2963 = vlaneseq
    %v2964 = vshrl.u32 %v2963, 7
    %v2965 = vsub.s32 1, %v2964
    %v2966 = vrot.slane %v2790, %v2965
    %v2967 = vlaneseq
    %v2968 = vshrl.u32 %v2967, 7
    %v2969 = vsub.s32 1, %v2968
    %v2970 = vrot.slane %v2792, %v2969
    %v2971 = vlaneseq
    %v2972 = vshrl.u32 %v2971, 7
    %v2973 = vsub.s32 1, %v2972
    %v2974 = vrot.slane %v2807, %v2973
    %v2975 = vlaneseq
    %v2976 = vshrl.u32 %v2975, 7
    %v2977 = vsub.s32 1, %v2976
    %v2978 = vrot.slane %v2809, %v2977
    %v2979 = vsel %vm1070, %v2954, %v2950
    %v2980 = vsel %vm1070, %v2962, %v2958
    %v2981 = vsel %vm1070, %v2970, %v2966
    %v2982 = vsel %vm1070, %v2978, %v2974
    %s2987 = scalar_lea.vmem [#allocation3], 4
    %2988 = vst.msk [vmem:[%s2987] sm:$0x6] %vm2897, %v2979
    %2989 = vst.msk [vmem:[%s2987 + $0x4] sm:$0x6] %vm2897, %v2980
    %2990 = vst.msk [vmem:[%s2987 + $0xc] sm:$0x6] %vm2897, %v2981
    %2991 = vst.msk [vmem:[%s2987 + $0x10] sm:$0x6] %vm2897, %v2982
    %s2992 = scalar_lea.vmem %s4, 2
    %v2993 = vld [vmem:[%s2992] sm:$0x1]
    %v2994 = vld [vmem:[#allocation3] sm:$0x3]
    %v2995 = vld [vmem:[#allocation3 + $0x4] sm:$0x3]
    %v2996 = vld [vmem:[#allocation3 + $0xc] sm:$0x3]
    %v2997 = vld [vmem:[#allocation3 + $0x10] sm:$0x3]
    %v2998 = vld [vmem:[#allocation3 + $0x1] sm:$0x3]
    %v2999 = vld [vmem:[#allocation3 + $0x5] sm:$0x3]
    %v3000 = vld [vmem:[#allocation3 + $0xd] sm:$0x3]
    %v3001 = vld [vmem:[#allocation3 + $0x11] sm:$0x3]
    %v3002 = vld [vmem:[%s2987] sm:$0x3]
    %v3003 = vld [vmem:[%s2987 + $0x4] sm:$0x3]
    %v3004 = vld [vmem:[%s2987 + $0xc] sm:$0x3]
    %v3005 = vld [vmem:[%s2987 + $0x10] sm:$0x3]
    %v3006 = vld [vmem:[%s2987 + $0x1] sm:$0x3]
    %v3007 = vld [vmem:[%s2987 + $0x5] sm:$0x3]
    %v3008 = vld [vmem:[%s2987 + $0xd] sm:$0x3]
    %v3009 = vld [vmem:[%s2987 + $0x11] sm:$0x3]
    %3014 = vrot.lane.b32.xlu0 %v2998, 32
    %v3015 = vpop.permute.xlu0 %3014
    %3016 = vrot.lane.b32.xlu0 %v2999, 32
    %v3017 = vpop.permute.xlu0 %3016
    %3018 = vrot.lane.b32.xlu0 %v3000, 32
    %v3019 = vpop.permute.xlu0 %3018
    %3020 = vrot.lane.b32.xlu0 %v3001, 32
    %v3021 = vpop.permute.xlu0 %3020
    %3030 = vrot.lane.b32.xlu0 %v3002, 64
    %v3031 = vpop.permute.xlu0 %3030
    %3032 = vrot.lane.b32.xlu0 %v3003, 64
    %v3033 = vpop.permute.xlu0 %3032
    %3034 = vrot.lane.b32.xlu0 %v3004, 64
    %v3035 = vpop.permute.xlu0 %3034
    %3036 = vrot.lane.b32.xlu0 %v3005, 64
    %v3037 = vpop.permute.xlu0 %3036
    %3046 = vrot.lane.b32.xlu0 %v3006, 96
    %v3047 = vpop.permute.xlu0 %3046
    %3048 = vrot.lane.b32.xlu0 %v3007, 96
    %v3049 = vpop.permute.xlu0 %3048
    %3050 = vrot.lane.b32.xlu0 %v3008, 96
    %v3051 = vpop.permute.xlu0 %3050
    %3052 = vrot.lane.b32.xlu0 %v3009, 96
    %v3053 = vpop.permute.xlu0 %3052
    %v3058 = vsel %vm1752, %v2994, %v3015
    %v3059 = vsel %vm1752, %v2995, %v3017
    %v3060 = vsel %vm1752, %v2996, %v3019
    %v3061 = vsel %vm1752, %v2997, %v3021
    %v3062 = vsel %vm52, %v3058, %v3031
    %v3063 = vsel %vm52, %v3059, %v3033
    %v3064 = vsel %vm52, %v3060, %v3035
    %v3065 = vsel %vm52, %v3061, %v3037
    %v3066 = vsel %vm1769, %v3062, %v3047
    %v3067 = vsel %vm1769, %v3063, %v3049
    %v3068 = vsel %vm1769, %v3064, %v3051
    %v3069 = vsel %vm1769, %v3065, %v3053
    %s3070 = scalar_lea.vmem %s3, 512
    %v3071 = vld [vmem:[%s3070] sm:$0xff]
    %v3072 = vld [vmem:[%s3070 + $0x8] sm:$0xff]
    %v3073 = vld [vmem:[%s3070 + $0x10] sm:$0xff]
    %v3074 = vld [vmem:[%s3070 + $0x18] sm:$0xff]
    %v3075 = vld [vmem:[%s3070 + $0x20] sm:$0xff]
    %v3076 = vld [vmem:[%s3070 + $0x28] sm:$0xff]
    %v3077 = vld [vmem:[%s3070 + $0x30] sm:$0xff]
    %v3078 = vld [vmem:[%s3070 + $0x38] sm:$0xff]
    %v3079 = vld [vmem:[%s3070 + $0x40] sm:$0xff]
    %v3080 = vld [vmem:[%s3070 + $0x48] sm:$0xff]
    %v3081 = vld [vmem:[%s3070 + $0x50] sm:$0xff]
    %v3082 = vld [vmem:[%s3070 + $0x58] sm:$0xff]
    %v3083 = vld [vmem:[%s3070 + $0x60] sm:$0xff]
    %v3084 = vld [vmem:[%s3070 + $0x68] sm:$0xff]
    %v3085 = vld [vmem:[%s3070 + $0x70] sm:$0xff]
    %v3086 = vld [vmem:[%s3070 + $0x78] sm:$0xff]
    %s3087 = scalar_lea.vmem [#allocation3], 24
    %v3088 = vld [vmem:[%s3087] sm:$0x3]
    %v3089 = vld [vmem:[%s3087 + $0x4] sm:$0x3]
    %v3090 = vld [vmem:[%s3087 + $0xc] sm:$0x3]
    %v3091 = vld [vmem:[%s3087 + $0x10] sm:$0x3]
    %v3092 = vld [vmem:[%s3087 + $0x1] sm:$0x3]
    %v3093 = vld [vmem:[%s3087 + $0x5] sm:$0x3]
    %v3094 = vld [vmem:[%s3087 + $0xd] sm:$0x3]
    %v3095 = vld [vmem:[%s3087 + $0x11] sm:$0x3]
    %v3096 = vld [vmem:[%s2942] sm:$0x3]
    %v3097 = vld [vmem:[%s2942 + $0x4] sm:$0x3]
    %v3098 = vld [vmem:[%s2942 + $0xc] sm:$0x3]
    %v3099 = vld [vmem:[%s2942 + $0x10] sm:$0x3]
    %v3100 = vld [vmem:[%s2942 + $0x1] sm:$0x3]
    %v3101 = vld [vmem:[%s2942 + $0x5] sm:$0x3]
    %v3102 = vld [vmem:[%s2942 + $0xd] sm:$0x3]
    %v3103 = vld [vmem:[%s2942 + $0x11] sm:$0x3]
    %3108 = vrot.lane.b32.xlu0 %v3092, 32
    %v3109 = vpop.permute.xlu0 %3108
    %3110 = vrot.lane.b32.xlu0 %v3093, 32
    %v3111 = vpop.permute.xlu0 %3110
    %3112 = vrot.lane.b32.xlu0 %v3094, 32
    %v3113 = vpop.permute.xlu0 %3112
    %3114 = vrot.lane.b32.xlu0 %v3095, 32
    %v3115 = vpop.permute.xlu0 %3114
    %3124 = vrot.lane.b32.xlu0 %v3096, 64
    %v3125 = vpop.permute.xlu0 %3124
    %3126 = vrot.lane.b32.xlu0 %v3097, 64
    %v3127 = vpop.permute.xlu0 %3126
    %3128 = vrot.lane.b32.xlu0 %v3098, 64
    %v3129 = vpop.permute.xlu0 %3128
    %3130 = vrot.lane.b32.xlu0 %v3099, 64
    %v3131 = vpop.permute.xlu0 %3130
    %3140 = vrot.lane.b32.xlu0 %v3100, 96
    %v3141 = vpop.permute.xlu0 %3140
    %3142 = vrot.lane.b32.xlu0 %v3101, 96
    %v3143 = vpop.permute.xlu0 %3142
    %3144 = vrot.lane.b32.xlu0 %v3102, 96
    %v3145 = vpop.permute.xlu0 %3144
    %3146 = vrot.lane.b32.xlu0 %v3103, 96
    %v3147 = vpop.permute.xlu0 %3146
    %v3152 = vsel %vm1752, %v3088, %v3109
    %v3153 = vsel %vm1752, %v3089, %v3111
    %v3154 = vsel %vm1752, %v3090, %v3113
    %v3155 = vsel %vm1752, %v3091, %v3115
    %v3156 = vsel %vm52, %v3152, %v3125
    %v3157 = vsel %vm52, %v3153, %v3127
    %v3158 = vsel %vm52, %v3154, %v3129
    %v3159 = vsel %vm52, %v3155, %v3131
    %v3160 = vsel %vm1769, %v3156, %v3141
    %v3161 = vsel %vm1769, %v3157, %v3143
    %v3162 = vsel %vm1769, %v3158, %v3145
    %v3163 = vsel %vm1769, %v3159, %v3147
    %s3164 = scalar_lea.vmem %s3, 640
    %v3165 = vld [vmem:[%s3164] sm:$0xff]
    %v3166 = vld [vmem:[%s3164 + $0x8] sm:$0xff]
    %v3167 = vld [vmem:[%s3164 + $0x10] sm:$0xff]
    %v3168 = vld [vmem:[%s3164 + $0x18] sm:$0xff]
    %v3169 = vld [vmem:[%s3164 + $0x20] sm:$0xff]
    %v3170 = vld [vmem:[%s3164 + $0x28] sm:$0xff]
    %v3171 = vld [vmem:[%s3164 + $0x30] sm:$0xff]
    %v3172 = vld [vmem:[%s3164 + $0x38] sm:$0xff]
    %v3173 = vld [vmem:[%s3164 + $0x40] sm:$0xff]
    %v3174 = vld [vmem:[%s3164 + $0x48] sm:$0xff]
    %v3175 = vld [vmem:[%s3164 + $0x50] sm:$0xff]
    %v3176 = vld [vmem:[%s3164 + $0x58] sm:$0xff]
    %v3177 = vld [vmem:[%s3164 + $0x60] sm:$0xff]
    %v3178 = vld [vmem:[%s3164 + $0x68] sm:$0xff]
    %v3179 = vld [vmem:[%s3164 + $0x70] sm:$0xff]
    %v3180 = vld [vmem:[%s3164 + $0x78] sm:$0xff]
    %v3185 = vcombine.low %v3160, %v3161
    %v3186 = vcombine.low %v3162, %v3163
    %v3188 = vunpack.c.l.s4 1983009808
    %v3189 = vunpack.c.0.s8 %v3188
    %v3190 = vlaneseq
    %v3191 = vshrl.u32 %v3190, 7
    %v3192 = vsub.s32 %v3189, %v3191
    %v3193 = vrot.slane %v3185, %v3192
    %v3195 = vunpack.c.l.s4 1983009808
    %v3196 = vunpack.c.0.s8 %v3195
    %v3197 = vlaneseq
    %v3198 = vshrl.u32 %v3197, 7
    %v3199 = vsub.s32 %v3196, %v3198
    %v3200 = vrot.slane %v3186, %v3199
    %v3201 = vcombine.low %v3193, %v3200
    %3203 = vmatprep.subr.mxu0 0.0
    %3204 = vmatpush1.msra.mxu0 %v3180
    %3205 = vmatprep.subr.mxu0 0.0
    %3206 = vmatpush1.msra.mxu0 %v3179
    %3207 = vmatprep.subr.mxu0 0.0
    %3208 = vmatpush1.msra.mxu0 %v3178
    %3209 = vmatprep.subr.mxu0 0.0
    %3210 = vmatpush1.msra.mxu0 %v3177
    %3211 = vmatprep.subr.mxu0 0.0
    %3212 = vmatpush1.msra.mxu0 %v3176
    %3213 = vmatprep.subr.mxu0 0.0
    %3214 = vmatpush1.msra.mxu0 %v3175
    %3215 = vmatprep.subr.mxu0 0.0
    %3216 = vmatpush1.msra.mxu0 %v3174
    %3217 = vmatprep.subr.mxu0 0.0
    %3218 = vmatpush1.msra.mxu0 %v3173
    %3219 = vmatprep.subr.mxu0 0.0
    %3220 = vmatpush1.msra.mxu0 %v3172
    %3221 = vmatprep.subr.mxu0 0.0
    %3222 = vmatpush1.msra.mxu0 %v3171
    %3223 = vmatprep.subr.mxu0 0.0
    %3224 = vmatpush1.msra.mxu0 %v3170
    %3225 = vmatprep.subr.mxu0 0.0
    %3226 = vmatpush1.msra.mxu0 %v3169
    %3227 = vmatprep.subr.mxu0 0.0
    %3228 = vmatpush1.msra.mxu0 %v3168
    %3229 = vmatprep.subr.mxu0 0.0
    %3230 = vmatpush1.msra.mxu0 %v3167
    %3231 = vmatprep.subr.mxu0 0.0
    %3232 = vmatpush1.msra.mxu0 %v3166
    %3233 = vmatprep.subr.mxu0 0.0
    %3234 = vmatpush1.msra.mxu0 %v3165
    %3235 = vmatprep.subr.mxu0 0.0
    %3236 = vmatpush2.msra.mxu0 0.0
    %3237 = vmatprep.subr.mxu0 0.0
    %3238 = vmatpush2.msra.mxu0 0.0
    %3239 = vmatprep.subr.mxu0 0.0
    %3240 = vmatpush2.msra.mxu0 0.0
    %3241 = vmatprep.subr.mxu0 0.0
    %3242 = vmatpush2.msra.mxu0 0.0
    %3243 = vmatprep.subr.mxu0 0.0
    %3244 = vmatpush2.msra.mxu0 0.0
    %3245 = vmatprep.subr.mxu0 0.0
    %3246 = vmatpush2.msra.mxu0 0.0
    %3247 = vmatprep.subr.mxu0 0.0
    %3248 = vmatpush2.msra.mxu0 0.0
    %3249 = vmatprep.subr.mxu0 0.0
    %3250 = vmatpush2.msra.mxu0 0.0
    %3251 = vmatprep.subr.mxu0 0.0
    %3252 = vmatpush2.msra.mxu0 0.0
    %3253 = vmatprep.subr.mxu0 0.0
    %3254 = vmatpush2.msra.mxu0 0.0
    %3255 = vmatprep.subr.mxu0 0.0
    %3256 = vmatpush2.msra.mxu0 0.0
    %3257 = vmatprep.subr.mxu0 0.0
    %3258 = vmatpush2.msra.mxu0 0.0
    %3259 = vmatprep.subr.mxu0 0.0
    %3260 = vmatpush2.msra.mxu0 0.0
    %3261 = vmatprep.subr.mxu0 0.0
    %3262 = vmatpush2.msra.mxu0 0.0
    %3263 = vmatprep.subr.mxu0 0.0
    %3264 = vmatpush2.msra.mxu0 0.0
    %3265 = vmatprep.subr.mxu0 0.0
    %3266 = vmatpush2.msra.mxu0 0.0
    %3267 = vmatprep.mubr.f32.mxu0 0.0
    %3268 = vmatmul.mubr.f32.gmra.mxu0 %v3201
    %v3269 = vpop.f32.mrf.mxu0
    %v3270 = vadd.f32 0.0, %v3269
    %v3271 = vpop.f32.mrf.mxu0
    %3272 = vdwg.mxu0
    %v3277 = vcombine.low %v3066, %v3067
    %v3278 = vcombine.low %v3068, %v3069
    %v3280 = vunpack.c.l.s4 1983009808
    %v3281 = vunpack.c.0.s8 %v3280
    %v3282 = vlaneseq
    %v3283 = vshrl.u32 %v3282, 7
    %v3284 = vsub.s32 %v3281, %v3283
    %v3285 = vrot.slane %v3277, %v3284
    %v3287 = vunpack.c.l.s4 1983009808
    %v3288 = vunpack.c.0.s8 %v3287
    %v3289 = vlaneseq
    %v3290 = vshrl.u32 %v3289, 7
    %v3291 = vsub.s32 %v3288, %v3290
    %v3292 = vrot.slane %v3278, %v3291
    %v3293 = vcombine.low %v3285, %v3292
    %3295 = vmatprep.subr.mxu0 0.0
    %3296 = vmatpush1.msra.mxu0 %v3086
    %3297 = vmatprep.subr.mxu0 0.0
    %3298 = vmatpush1.msra.mxu0 %v3085
    %3299 = vmatprep.subr.mxu0 0.0
    %3300 = vmatpush1.msra.mxu0 %v3084
    %3301 = vmatprep.subr.mxu0 0.0
    %3302 = vmatpush1.msra.mxu0 %v3083
    %3303 = vmatprep.subr.mxu0 0.0
    %3304 = vmatpush1.msra.mxu0 %v3082
    %3305 = vmatprep.subr.mxu0 0.0
    %3306 = vmatpush1.msra.mxu0 %v3081
    %3307 = vmatprep.subr.mxu0 0.0
    %3308 = vmatpush1.msra.mxu0 %v3080
    %3309 = vmatprep.subr.mxu0 0.0
    %3310 = vmatpush1.msra.mxu0 %v3079
    %3311 = vmatprep.subr.mxu0 0.0
    %3312 = vmatpush1.msra.mxu0 %v3078
    %3313 = vmatprep.subr.mxu0 0.0
    %3314 = vmatpush1.msra.mxu0 %v3077
    %3315 = vmatprep.subr.mxu0 0.0
    %3316 = vmatpush1.msra.mxu0 %v3076
    %3317 = vmatprep.subr.mxu0 0.0
    %3318 = vmatpush1.msra.mxu0 %v3075
    %3319 = vmatprep.subr.mxu0 0.0
    %3320 = vmatpush1.msra.mxu0 %v3074
    %3321 = vmatprep.subr.mxu0 0.0
    %3322 = vmatpush1.msra.mxu0 %v3073
    %3323 = vmatprep.subr.mxu0 0.0
    %3324 = vmatpush1.msra.mxu0 %v3072
    %3325 = vmatprep.subr.mxu0 0.0
    %3326 = vmatpush1.msra.mxu0 %v3071
    %3327 = vmatprep.subr.mxu0 0.0
    %3328 = vmatpush2.msra.mxu0 0.0
    %3329 = vmatprep.subr.mxu0 0.0
    %3330 = vmatpush2.msra.mxu0 0.0
    %3331 = vmatprep.subr.mxu0 0.0
    %3332 = vmatpush2.msra.mxu0 0.0
    %3333 = vmatprep.subr.mxu0 0.0
    %3334 = vmatpush2.msra.mxu0 0.0
    %3335 = vmatprep.subr.mxu0 0.0
    %3336 = vmatpush2.msra.mxu0 0.0
    %3337 = vmatprep.subr.mxu0 0.0
    %3338 = vmatpush2.msra.mxu0 0.0
    %3339 = vmatprep.subr.mxu0 0.0
    %3340 = vmatpush2.msra.mxu0 0.0
    %3341 = vmatprep.subr.mxu0 0.0
    %3342 = vmatpush2.msra.mxu0 0.0
    %3343 = vmatprep.subr.mxu0 0.0
    %3344 = vmatpush2.msra.mxu0 0.0
    %3345 = vmatprep.subr.mxu0 0.0
    %3346 = vmatpush2.msra.mxu0 0.0
    %3347 = vmatprep.subr.mxu0 0.0
    %3348 = vmatpush2.msra.mxu0 0.0
    %3349 = vmatprep.subr.mxu0 0.0
    %3350 = vmatpush2.msra.mxu0 0.0
    %3351 = vmatprep.subr.mxu0 0.0
    %3352 = vmatpush2.msra.mxu0 0.0
    %3353 = vmatprep.subr.mxu0 0.0
    %3354 = vmatpush2.msra.mxu0 0.0
    %3355 = vmatprep.subr.mxu0 0.0
    %3356 = vmatpush2.msra.mxu0 0.0
    %3357 = vmatprep.subr.mxu0 0.0
    %3358 = vmatpush2.msra.mxu0 0.0
    %3359 = vmatprep.mubr.f32.mxu0 0.0
    %3360 = vmatmul.mubr.f32.gmra.mxu0 %v3293
    %v3361 = vpop.f32.mrf.mxu0
    %v3362 = vadd.f32 %v3270, %v3361
    %v3363 = vpop.f32.mrf.mxu0
    %3364 = vdwg.mxu0
    %v3365 = vld [vmem:[%s2896] sm:$0x3]
    %v3366 = vld [vmem:[%s2896 + $0x4] sm:$0x3]
    %v3367 = vld [vmem:[%s2896 + $0xc] sm:$0x3]
    %v3368 = vld [vmem:[%s2896 + $0x10] sm:$0x3]
    %v3369 = vld [vmem:[%s2896 + $0x1] sm:$0x3]
    %v3370 = vld [vmem:[%s2896 + $0x5] sm:$0x3]
    %v3371 = vld [vmem:[%s2896 + $0xd] sm:$0x3]
    %v3372 = vld [vmem:[%s2896 + $0x11] sm:$0x3]
    %s3373 = scalar_lea.vmem [#allocation3], 52
    %v3374 = vld [vmem:[%s3373] sm:$0x3]
    %v3375 = vld [vmem:[%s3373 + $0x4] sm:$0x3]
    %v3376 = vld [vmem:[%s3373 + $0xc] sm:$0x3]
    %v3377 = vld [vmem:[%s3373 + $0x10] sm:$0x3]
    %v3378 = vld [vmem:[%s3373 + $0x1] sm:$0x3]
    %v3379 = vld [vmem:[%s3373 + $0x5] sm:$0x3]
    %v3380 = vld [vmem:[%s3373 + $0xd] sm:$0x3]
    %v3381 = vld [vmem:[%s3373 + $0x11] sm:$0x3]
    %3386 = vrot.lane.b32.xlu0 %v3369, 32
    %v3387 = vpop.permute.xlu0 %3386
    %3388 = vrot.lane.b32.xlu0 %v3370, 32
    %v3389 = vpop.permute.xlu0 %3388
    %3390 = vrot.lane.b32.xlu0 %v3371, 32
    %v3391 = vpop.permute.xlu0 %3390
    %3392 = vrot.lane.b32.xlu0 %v3372, 32
    %v3393 = vpop.permute.xlu0 %3392
    %3402 = vrot.lane.b32.xlu0 %v3374, 64
    %v3403 = vpop.permute.xlu0 %3402
    %3404 = vrot.lane.b32.xlu0 %v3375, 64
    %v3405 = vpop.permute.xlu0 %3404
    %3406 = vrot.lane.b32.xlu0 %v3376, 64
    %v3407 = vpop.permute.xlu0 %3406
    %3408 = vrot.lane.b32.xlu0 %v3377, 64
    %v3409 = vpop.permute.xlu0 %3408
    %3418 = vrot.lane.b32.xlu0 %v3378, 96
    %v3419 = vpop.permute.xlu0 %3418
    %3420 = vrot.lane.b32.xlu0 %v3379, 96
    %v3421 = vpop.permute.xlu0 %3420
    %3422 = vrot.lane.b32.xlu0 %v3380, 96
    %v3423 = vpop.permute.xlu0 %3422
    %3424 = vrot.lane.b32.xlu0 %v3381, 96
    %v3425 = vpop.permute.xlu0 %3424
    %v3430 = vsel %vm1752, %v3365, %v3387
    %v3431 = vsel %vm1752, %v3366, %v3389
    %v3432 = vsel %vm1752, %v3367, %v3391
    %v3433 = vsel %vm1752, %v3368, %v3393
    %v3434 = vsel %vm52, %v3430, %v3403
    %v3435 = vsel %vm52, %v3431, %v3405
    %v3436 = vsel %vm52, %v3432, %v3407
    %v3437 = vsel %vm52, %v3433, %v3409
    %v3438 = vsel %vm1769, %v3434, %v3419
    %v3439 = vsel %vm1769, %v3435, %v3421
    %v3440 = vsel %vm1769, %v3436, %v3423
    %v3441 = vsel %vm1769, %v3437, %v3425
    %s3442 = scalar_lea.vmem %s3, 768
    %v3443 = vld [vmem:[%s3442] sm:$0xff]
    %v3444 = vld [vmem:[%s3442 + $0x8] sm:$0xff]
    %v3445 = vld [vmem:[%s3442 + $0x10] sm:$0xff]
    %v3446 = vld [vmem:[%s3442 + $0x18] sm:$0xff]
    %v3447 = vld [vmem:[%s3442 + $0x20] sm:$0xff]
    %v3448 = vld [vmem:[%s3442 + $0x28] sm:$0xff]
    %v3449 = vld [vmem:[%s3442 + $0x30] sm:$0xff]
    %v3450 = vld [vmem:[%s3442 + $0x38] sm:$0xff]
    %v3451 = vld [vmem:[%s3442 + $0x40] sm:$0xff]
    %v3452 = vld [vmem:[%s3442 + $0x48] sm:$0xff]
    %v3453 = vld [vmem:[%s3442 + $0x50] sm:$0xff]
    %v3454 = vld [vmem:[%s3442 + $0x58] sm:$0xff]
    %v3455 = vld [vmem:[%s3442 + $0x60] sm:$0xff]
    %v3456 = vld [vmem:[%s3442 + $0x68] sm:$0xff]
    %v3457 = vld [vmem:[%s3442 + $0x70] sm:$0xff]
    %v3458 = vld [vmem:[%s3442 + $0x78] sm:$0xff]
    %v3463 = vcombine.low %v3438, %v3439
    %v3464 = vcombine.low %v3440, %v3441
    %v3466 = vunpack.c.l.s4 1983009808
    %v3467 = vunpack.c.0.s8 %v3466
    %v3468 = vlaneseq
    %v3469 = vshrl.u32 %v3468, 7
    %v3470 = vsub.s32 %v3467, %v3469
    %v3471 = vrot.slane %v3463, %v3470
    %v3473 = vunpack.c.l.s4 1983009808
    %v3474 = vunpack.c.0.s8 %v3473
    %v3475 = vlaneseq
    %v3476 = vshrl.u32 %v3475, 7
    %v3477 = vsub.s32 %v3474, %v3476
    %v3478 = vrot.slane %v3464, %v3477
    %v3479 = vcombine.low %v3471, %v3478
    %3481 = vmatprep.subr.mxu0 0.0
    %3482 = vmatpush1.msra.mxu0 %v3458
    %3483 = vmatprep.subr.mxu0 0.0
    %3484 = vmatpush1.msra.mxu0 %v3457
    %3485 = vmatprep.subr.mxu0 0.0
    %3486 = vmatpush1.msra.mxu0 %v3456
    %3487 = vmatprep.subr.mxu0 0.0
    %3488 = vmatpush1.msra.mxu0 %v3455
    %3489 = vmatprep.subr.mxu0 0.0
    %3490 = vmatpush1.msra.mxu0 %v3454
    %3491 = vmatprep.subr.mxu0 0.0
    %3492 = vmatpush1.msra.mxu0 %v3453
    %3493 = vmatprep.subr.mxu0 0.0
    %3494 = vmatpush1.msra.mxu0 %v3452
    %3495 = vmatprep.subr.mxu0 0.0
    %3496 = vmatpush1.msra.mxu0 %v3451
    %3497 = vmatprep.subr.mxu0 0.0
    %3498 = vmatpush1.msra.mxu0 %v3450
    %3499 = vmatprep.subr.mxu0 0.0
    %3500 = vmatpush1.msra.mxu0 %v3449
    %3501 = vmatprep.subr.mxu0 0.0
    %3502 = vmatpush1.msra.mxu0 %v3448
    %3503 = vmatprep.subr.mxu0 0.0
    %3504 = vmatpush1.msra.mxu0 %v3447
    %3505 = vmatprep.subr.mxu0 0.0
    %3506 = vmatpush1.msra.mxu0 %v3446
    %3507 = vmatprep.subr.mxu0 0.0
    %3508 = vmatpush1.msra.mxu0 %v3445
    %3509 = vmatprep.subr.mxu0 0.0
    %3510 = vmatpush1.msra.mxu0 %v3444
    %3511 = vmatprep.subr.mxu0 0.0
    %3512 = vmatpush1.msra.mxu0 %v3443
    %3513 = vmatprep.subr.mxu0 0.0
    %3514 = vmatpush2.msra.mxu0 0.0
    %3515 = vmatprep.subr.mxu0 0.0
    %3516 = vmatpush2.msra.mxu0 0.0
    %3517 = vmatprep.subr.mxu0 0.0
    %3518 = vmatpush2.msra.mxu0 0.0
    %3519 = vmatprep.subr.mxu0 0.0
    %3520 = vmatpush2.msra.mxu0 0.0
    %3521 = vmatprep.subr.mxu0 0.0
    %3522 = vmatpush2.msra.mxu0 0.0
    %3523 = vmatprep.subr.mxu0 0.0
    %3524 = vmatpush2.msra.mxu0 0.0
    %3525 = vmatprep.subr.mxu0 0.0
    %3526 = vmatpush2.msra.mxu0 0.0
    %3527 = vmatprep.subr.mxu0 0.0
    %3528 = vmatpush2.msra.mxu0 0.0
    %3529 = vmatprep.subr.mxu0 0.0
    %3530 = vmatpush2.msra.mxu0 0.0
    %3531 = vmatprep.subr.mxu0 0.0
    %3532 = vmatpush2.msra.mxu0 0.0
    %3533 = vmatprep.subr.mxu0 0.0
    %3534 = vmatpush2.msra.mxu0 0.0
    %3535 = vmatprep.subr.mxu0 0.0
    %3536 = vmatpush2.msra.mxu0 0.0
    %3537 = vmatprep.subr.mxu0 0.0
    %3538 = vmatpush2.msra.mxu0 0.0
    %3539 = vmatprep.subr.mxu0 0.0
    %3540 = vmatpush2.msra.mxu0 0.0
    %3541 = vmatprep.subr.mxu0 0.0
    %3542 = vmatpush2.msra.mxu0 0.0
    %3543 = vmatprep.subr.mxu0 0.0
    %3544 = vmatpush2.msra.mxu0 0.0
    %3545 = vmatprep.mubr.f32.mxu0 0.0
    %3546 = vmatmul.mubr.f32.gmra.mxu0 %v3479
    %v3547 = vpop.f32.mrf.mxu0
    %v3548 = vadd.f32 0.0, %v3547
    %v3549 = vpop.f32.mrf.mxu0
    %3550 = vdwg.mxu0
    %v3551 = vadd.f32 %v3362, %v3548
    %v3552 = vld [vmem:[%s2850] sm:$0x3]
    %v3553 = vld [vmem:[%s2850 + $0x4] sm:$0x3]
    %v3554 = vld [vmem:[%s2850 + $0xc] sm:$0x3]
    %v3555 = vld [vmem:[%s2850 + $0x10] sm:$0x3]
    %v3556 = vld [vmem:[%s2850 + $0x1] sm:$0x3]
    %v3557 = vld [vmem:[%s2850 + $0x5] sm:$0x3]
    %v3558 = vld [vmem:[%s2850 + $0xd] sm:$0x3]
    %v3559 = vld [vmem:[%s2850 + $0x11] sm:$0x3]
    %s3560 = scalar_lea.vmem [#allocation3], 76
    %v3561 = vld [vmem:[%s3560] sm:$0x3]
    %v3562 = vld [vmem:[%s3560 + $0x4] sm:$0x3]
    %v3563 = vld [vmem:[%s3560 + $0xc] sm:$0x3]
    %v3564 = vld [vmem:[%s3560 + $0x10] sm:$0x3]
    %v3565 = vld [vmem:[%s3560 + $0x1] sm:$0x3]
    %v3566 = vld [vmem:[%s3560 + $0x5] sm:$0x3]
    %v3567 = vld [vmem:[%s3560 + $0xd] sm:$0x3]
    %v3568 = vld [vmem:[%s3560 + $0x11] sm:$0x3]
    %3573 = vrot.lane.b32.xlu0 %v3556, 32
    %v3574 = vpop.permute.xlu0 %3573
    %3575 = vrot.lane.b32.xlu0 %v3557, 32
    %v3576 = vpop.permute.xlu0 %3575
    %3577 = vrot.lane.b32.xlu0 %v3558, 32
    %v3578 = vpop.permute.xlu0 %3577
    %3579 = vrot.lane.b32.xlu0 %v3559, 32
    %v3580 = vpop.permute.xlu0 %3579
    %3589 = vrot.lane.b32.xlu0 %v3561, 64
    %v3590 = vpop.permute.xlu0 %3589
    %3591 = vrot.lane.b32.xlu0 %v3562, 64
    %v3592 = vpop.permute.xlu0 %3591
    %3593 = vrot.lane.b32.xlu0 %v3563, 64
    %v3594 = vpop.permute.xlu0 %3593
    %3595 = vrot.lane.b32.xlu0 %v3564, 64
    %v3596 = vpop.permute.xlu0 %3595
    %3605 = vrot.lane.b32.xlu0 %v3565, 96
    %v3606 = vpop.permute.xlu0 %3605
    %3607 = vrot.lane.b32.xlu0 %v3566, 96
    %v3608 = vpop.permute.xlu0 %3607
    %3609 = vrot.lane.b32.xlu0 %v3567, 96
    %v3610 = vpop.permute.xlu0 %3609
    %3611 = vrot.lane.b32.xlu0 %v3568, 96
    %v3612 = vpop.permute.xlu0 %3611
    %v3617 = vsel %vm1752, %v3552, %v3574
    %v3618 = vsel %vm1752, %v3553, %v3576
    %v3619 = vsel %vm1752, %v3554, %v3578
    %v3620 = vsel %vm1752, %v3555, %v3580
    %v3621 = vsel %vm52, %v3617, %v3590
    %v3622 = vsel %vm52, %v3618, %v3592
    %v3623 = vsel %vm52, %v3619, %v3594
    %v3624 = vsel %vm52, %v3620, %v3596
    %v3625 = vsel %vm1769, %v3621, %v3606
    %v3626 = vsel %vm1769, %v3622, %v3608
    %v3627 = vsel %vm1769, %v3623, %v3610
    %v3628 = vsel %vm1769, %v3624, %v3612
    %s3629 = scalar_lea.vmem %s3, 896
    %v3630 = vld [vmem:[%s3629] sm:$0xff]
    %v3631 = vld [vmem:[%s3629 + $0x8] sm:$0xff]
    %v3632 = vld [vmem:[%s3629 + $0x10] sm:$0xff]
    %v3633 = vld [vmem:[%s3629 + $0x18] sm:$0xff]
    %v3634 = vld [vmem:[%s3629 + $0x20] sm:$0xff]
    %v3635 = vld [vmem:[%s3629 + $0x28] sm:$0xff]
    %v3636 = vld [vmem:[%s3629 + $0x30] sm:$0xff]
    %v3637 = vld [vmem:[%s3629 + $0x38] sm:$0xff]
    %v3638 = vld [vmem:[%s3629 + $0x40] sm:$0xff]
    %v3639 = vld [vmem:[%s3629 + $0x48] sm:$0xff]
    %v3640 = vld [vmem:[%s3629 + $0x50] sm:$0xff]
    %v3641 = vld [vmem:[%s3629 + $0x58] sm:$0xff]
    %v3642 = vld [vmem:[%s3629 + $0x60] sm:$0xff]
    %v3643 = vld [vmem:[%s3629 + $0x68] sm:$0xff]
    %v3644 = vld [vmem:[%s3629 + $0x70] sm:$0xff]
    %v3645 = vld [vmem:[%s3629 + $0x78] sm:$0xff]
    %v3650 = vcombine.low %v3625, %v3626
    %v3651 = vcombine.low %v3627, %v3628
    %v3653 = vunpack.c.l.s4 1983009808
    %v3654 = vunpack.c.0.s8 %v3653
    %v3655 = vlaneseq
    %v3656 = vshrl.u32 %v3655, 7
    %v3657 = vsub.s32 %v3654, %v3656
    %v3658 = vrot.slane %v3650, %v3657
    %v3660 = vunpack.c.l.s4 1983009808
    %v3661 = vunpack.c.0.s8 %v3660
    %v3662 = vlaneseq
    %v3663 = vshrl.u32 %v3662, 7
    %v3664 = vsub.s32 %v3661, %v3663
    %v3665 = vrot.slane %v3651, %v3664
    %v3666 = vcombine.low %v3658, %v3665
    %3668 = vmatprep.subr.mxu0 0.0
    %3669 = vmatpush1.msra.mxu0 %v3645
    %3670 = vmatprep.subr.mxu0 0.0
    %3671 = vmatpush1.msra.mxu0 %v3644
    %3672 = vmatprep.subr.mxu0 0.0
    %3673 = vmatpush1.msra.mxu0 %v3643
    %3674 = vmatprep.subr.mxu0 0.0
    %3675 = vmatpush1.msra.mxu0 %v3642
    %3676 = vmatprep.subr.mxu0 0.0
    %3677 = vmatpush1.msra.mxu0 %v3641
    %3678 = vmatprep.subr.mxu0 0.0
    %3679 = vmatpush1.msra.mxu0 %v3640
    %3680 = vmatprep.subr.mxu0 0.0
    %3681 = vmatpush1.msra.mxu0 %v3639
    %3682 = vmatprep.subr.mxu0 0.0
    %3683 = vmatpush1.msra.mxu0 %v3638
    %3684 = vmatprep.subr.mxu0 0.0
    %3685 = vmatpush1.msra.mxu0 %v3637
    %3686 = vmatprep.subr.mxu0 0.0
    %3687 = vmatpush1.msra.mxu0 %v3636
    %3688 = vmatprep.subr.mxu0 0.0
    %3689 = vmatpush1.msra.mxu0 %v3635
    %3690 = vmatprep.subr.mxu0 0.0
    %3691 = vmatpush1.msra.mxu0 %v3634
    %3692 = vmatprep.subr.mxu0 0.0
    %3693 = vmatpush1.msra.mxu0 %v3633
    %3694 = vmatprep.subr.mxu0 0.0
    %3695 = vmatpush1.msra.mxu0 %v3632
    %3696 = vmatprep.subr.mxu0 0.0
    %3697 = vmatpush1.msra.mxu0 %v3631
    %3698 = vmatprep.subr.mxu0 0.0
    %3699 = vmatpush1.msra.mxu0 %v3630
    %3700 = vmatprep.subr.mxu0 0.0
    %3701 = vmatpush2.msra.mxu0 0.0
    %3702 = vmatprep.subr.mxu0 0.0
    %3703 = vmatpush2.msra.mxu0 0.0
    %3704 = vmatprep.subr.mxu0 0.0
    %3705 = vmatpush2.msra.mxu0 0.0
    %3706 = vmatprep.subr.mxu0 0.0
    %3707 = vmatpush2.msra.mxu0 0.0
    %3708 = vmatprep.subr.mxu0 0.0
    %3709 = vmatpush2.msra.mxu0 0.0
    %3710 = vmatprep.subr.mxu0 0.0
    %3711 = vmatpush2.msra.mxu0 0.0
    %3712 = vmatprep.subr.mxu0 0.0
    %3713 = vmatpush2.msra.mxu0 0.0
    %3714 = vmatprep.subr.mxu0 0.0
    %3715 = vmatpush2.msra.mxu0 0.0
    %3716 = vmatprep.subr.mxu0 0.0
    %3717 = vmatpush2.msra.mxu0 0.0
    %3718 = vmatprep.subr.mxu0 0.0
    %3719 = vmatpush2.msra.mxu0 0.0
    %3720 = vmatprep.subr.mxu0 0.0
    %3721 = vmatpush2.msra.mxu0 0.0
    %3722 = vmatprep.subr.mxu0 0.0
    %3723 = vmatpush2.msra.mxu0 0.0
    %3724 = vmatprep.subr.mxu0 0.0
    %3725 = vmatpush2.msra.mxu0 0.0
    %3726 = vmatprep.subr.mxu0 0.0
    %3727 = vmatpush2.msra.mxu0 0.0
    %3728 = vmatprep.subr.mxu0 0.0
    %3729 = vmatpush2.msra.mxu0 0.0
    %3730 = vmatprep.subr.mxu0 0.0
    %3731 = vmatpush2.msra.mxu0 0.0
    %3732 = vmatprep.mubr.f32.mxu0 0.0
    %3733 = vmatmul.mubr.f32.gmra.mxu0 %v3666
    %v3734 = vpop.f32.mrf.mxu0
    %v3735 = vadd.f32 0.0, %v3734
    %v3736 = vpop.f32.mrf.mxu0
    %3737 = vdwg.mxu0
    %v3738 = vadd.f32 %v3551, %v3735
    %v3740 = vlaneseq
    %v3741 = vshrl.u32 %v3740, 7
    %v3742 = vsub.s32 0, %v3741
    %v3743 = vrot.slane %v2993, %v3742
    %v3745 = vadd.f32 %v3738, %v3743
    %vm3746 = vcmp.ge.f32.partialorder %v3745, 0.0
    %v3747 = vmul.f32 %v3745, 0.2
    %v3748 = vsel %vm3746, %v3745, %v3747
    %v3750 = vcombine.high %v3748, %v3748
    %v3752 = vsel %vm1104, %v3748, 0.0
    %v3753 = vrot.slane %v3752, 4
    %v3754 = vadd.f32 %v3752, %v3753
    %v3755 = vrot.slane %v3754, 2
    %v3756 = vadd.f32 %v3754, %v3755
    %v3757 = vrot.slane %v3756, 1
    %v3758 = vadd.f32 %v3756, %v3757
    %v3759 = vsel %vm1104, %v3750, 0.0
    %v3760 = vrot.slane %v3759, 4
    %v3761 = vadd.f32 %v3759, %v3760
    %v3762 = vrot.slane %v3761, 2
    %v3763 = vadd.f32 %v3761, %v3762
    %v3764 = vrot.slane %v3763, 1
    %v3765 = vadd.f32 %v3763, %v3764
    %v3766 = vrcp.pop 4.0
    %v3767 = vmul.f32 %v3758, %v3766
    %v3768 = vmul.f32 %v3765, %v3766
    %v3771 = vsel %vm1068, %v3768, %v3767
    %3774 = vrot.lane.b32.xlu0 %v313, 32
    %v3775 = vpop.permute.xlu0 %3774
    %v3777 = vsel %vm1752, %v3771, %v3775
    %v3778 = vld [vmem:[%s8] sm:$0xff]
    %v3779 = vld [vmem:[%s8 + $0x8] sm:$0xff]
    %v3780 = vld [vmem:[%s8 + $0x10] sm:$0xff]
    %v3781 = vld [vmem:[%s8 + $0x18] sm:$0xff]
    %v3782 = vld [vmem:[%s8 + $0x20] sm:$0xff]
    %v3783 = vld [vmem:[%s8 + $0x28] sm:$0xff]
    %v3784 = vld [vmem:[%s8 + $0x30] sm:$0xff]
    %v3785 = vld [vmem:[%s8 + $0x38] sm:$0xff]
    %v3786 = vld [vmem:[%s8 + $0x40] sm:$0xff]
    %v3787 = vld [vmem:[%s8 + $0x48] sm:$0xff]
    %v3788 = vld [vmem:[%s8 + $0x50] sm:$0xff]
    %v3789 = vld [vmem:[%s8 + $0x58] sm:$0xff]
    %v3790 = vld [vmem:[%s9] sm:$0x1]
    %v3792 = vlaneseq
    %v3793 = vshrl.u32 %v3792, 7
    %v3794 = vsub.s32 0, %v3793
    %v3795 = vrot.slane %v3790, %v3794
    %v3798 = vsel %vm1769, %v3777, 0
    %3800 = vmatprep.subr.mxu0 0.0
    %3801 = vmatpush1.msra.mxu0 0.0
    %3802 = vmatprep.subr.mxu0 0.0
    %3803 = vmatpush1.msra.mxu0 0.0
    %3804 = vmatprep.subr.mxu0 0.0
    %3805 = vmatpush1.msra.mxu0 0.0
    %3806 = vmatprep.subr.mxu0 0.0
    %3807 = vmatpush1.msra.mxu0 0.0
    %3808 = vmatprep.subr.mxu0 0.0
    %3809 = vmatpush1.msra.mxu0 %v3789
    %3810 = vmatprep.subr.mxu0 0.0
    %3811 = vmatpush1.msra.mxu0 %v3788
    %3812 = vmatprep.subr.mxu0 0.0
    %3813 = vmatpush1.msra.mxu0 %v3787
    %3814 = vmatprep.subr.mxu0 0.0
    %3815 = vmatpush1.msra.mxu0 %v3786
    %3816 = vmatprep.subr.mxu0 0.0
    %3817 = vmatpush1.msra.mxu0 %v3785
    %3818 = vmatprep.subr.mxu0 0.0
    %3819 = vmatpush1.msra.mxu0 %v3784
    %3820 = vmatprep.subr.mxu0 0.0
    %3821 = vmatpush1.msra.mxu0 %v3783
    %3822 = vmatprep.subr.mxu0 0.0
    %3823 = vmatpush1.msra.mxu0 %v3782
    %3824 = vmatprep.subr.mxu0 0.0
    %3825 = vmatpush1.msra.mxu0 %v3781
    %3826 = vmatprep.subr.mxu0 0.0
    %3827 = vmatpush1.msra.mxu0 %v3780
    %3828 = vmatprep.subr.mxu0 0.0
    %3829 = vmatpush1.msra.mxu0 %v3779
    %3830 = vmatprep.subr.mxu0 0.0
    %3831 = vmatpush1.msra.mxu0 %v3778
    %3832 = vmatprep.subr.mxu0 0.0
    %3833 = vmatpush2.msra.mxu0 0.0
    %3834 = vmatprep.subr.mxu0 0.0
    %3835 = vmatpush2.msra.mxu0 0.0
    %3836 = vmatprep.subr.mxu0 0.0
    %3837 = vmatpush2.msra.mxu0 0.0
    %3838 = vmatprep.subr.mxu0 0.0
    %3839 = vmatpush2.msra.mxu0 0.0
    %3840 = vmatprep.subr.mxu0 0.0
    %3841 = vmatpush2.msra.mxu0 0.0
    %3842 = vmatprep.subr.mxu0 0.0
    %3843 = vmatpush2.msra.mxu0 0.0
    %3844 = vmatprep.subr.mxu0 0.0
    %3845 = vmatpush2.msra.mxu0 0.0
    %3846 = vmatprep.subr.mxu0 0.0
    %3847 = vmatpush2.msra.mxu0 0.0
    %3848 = vmatprep.subr.mxu0 0.0
    %3849 = vmatpush2.msra.mxu0 0.0
    %3850 = vmatprep.subr.mxu0 0.0
    %3851 = vmatpush2.msra.mxu0 0.0
    %3852 = vmatprep.subr.mxu0 0.0
    %3853 = vmatpush2.msra.mxu0 0.0
    %3854 = vmatprep.subr.mxu0 0.0
    %3855 = vmatpush2.msra.mxu0 0.0
    %3856 = vmatprep.subr.mxu0 0.0
    %3857 = vmatpush2.msra.mxu0 0.0
    %3858 = vmatprep.subr.mxu0 0.0
    %3859 = vmatpush2.msra.mxu0 0.0
    %3860 = vmatprep.subr.mxu0 0.0
    %3861 = vmatpush2.msra.mxu0 0.0
    %3862 = vmatprep.subr.mxu0 0.0
    %3863 = vmatpush2.msra.mxu0 0.0
    %3864 = vmatprep.mubr.f32.mxu0 0.0
    %3865 = vmatmul.mubr.f32.gmra.mxu0 %v3798
    %v3866 = vpop.f32.mrf.mxu0
    %v3867 = vadd.f32 %v3795, %v3866
    %v3868 = vpop.f32.mrf.mxu0
    %3869 = vdwg.mxu0
    %vm3870 = vcmask 123904
    %3871 = vst.msk [vmem:[#allocation4] sm:$0x3] %vm3870, %v3867
    // Predicated region
    $region42: #{encoder_forward.1} parent=1 // pred_check
      _
    $region43: #{encoder_forward.1} parent=1 // pred_check_branch
      %3873 = sbr.rel (0) target = $region45
    $region44: #{encoder_forward.1} parent=1 // pred_region
      %s3875 = ssub.s32 32, 32
      %3876 = vsyncadd [#allocation5], %s3875
      %s3878 = sshll.u32 [#allocation4], 4
      %s3879 = int_to_ptr.vmem [resolvable:$true] %s3878
      %3881 = dma.vmem_to_hbm [thread:$0]  %s3879, 32, %s10, [#allocation5]
    $region45: #{encoder_forward.1} parent=1 // pred_fallthru
      _
    // Predicated region
    $region46: #{encoder_forward.1} parent=1 // pred_check
      _
    $region47: #{encoder_forward.1} parent=1 // pred_check_branch
      %3883 = sbr.rel (0) target = $region49
    $region48: #{encoder_forward.1} parent=1 // pred_region
      %3884 = dma.done [#allocation5], 32
    $region49: #{encoder_forward.1} parent=1 // pred_fallthru
      _
    %3885 = vsyncpa [#allocation5], 1

</llo_original>
